<compile_context>
chip_gen: v5e
topology: v5e:2x2
jax: 0.10.0
libtpu: 0.0.40
codegen_flags: <defaults>
</compile_context>

<pallas_src>
import functools

import jax
import jax.numpy as jnp
import numpy as np
from jax.experimental import pallas as pl
from jax.experimental.pallas import tpu as pltpu


# ----------------------------- fused-kernel config ------------------------- #
H = W = 16                     # input spatial size expected by the fused kernel
S = H * W                      # 256 flat spatial positions (lane dim)
S_EXT = S + 128                # resident-activation lane width (slack zeroed)
FW = 320                       # lanes filled when staging the ki-stacked buffer
HSTK_W = 384                   # allocated lane width of the staging buffer
S_OUT = 128                    # lane-dense output slab (valid lanes 0,2,32,34)
CMAX = 64                      # max padded channel count across layers
NUM_LAYERS = 4

LAYER_DILATION = (1, 1, 2, 2)          # lane-read dilation per layer
LAYER_RELU = (True, True, True, False)
LAYER_WIDTH = (S, S, S, S_OUT)         # output lanes computed per layer
OUT_HW = 2                             # 16 -> 14 -> 6 -> 4 -> 2
OUT_GRID_DIL = 2                       # final outputs live at lanes 2*(r*W + c)

# Static sanity: every lane index touched stays inside the buffers.
assert 2 * W * max(LAYER_DILATION) + FW <= S_EXT        # staging reads of h_scr
assert S + 2 * max(LAYER_DILATION) <= FW <= HSTK_W      # matmul reads of stk_scr


# ------------------------------- Pallas kernel ----------------------------- #

def _conv_encoder_kernel(x_ref, w0_ref, w1_ref, w2_ref, w3_ref, b_ref, o_ref,
                         h_scr, stk_scr, acc_scr):
    """Fused 4-layer conv encoder for one image.

    x_ref  : (1, cin_pad0, S) f32        image, channels on sublanes, flat HW on lanes
    w*_ref : (3, cout_l, 3*cin_pad_l) bf16  per-kj LHS, the 3 ki taps stacked along K
    b_ref  : (4, CMAX, 1) f32            per-layer bias (lane broadcast)
    o_ref  : (1, cout_3, S_OUT) f32      layer-3 activations (valid lanes 0,2,32,34)
    h_scr  : (CMAX, S_EXT) bf16          VMEM-resident activation on the flat grid
    stk_scr: (3*CMAX, HSTK_W) bf16       ki-stacked staging buffer (K-packed RHS)
    acc_scr: (CMAX, S) f32               f32 accumulator
    """
    w_refs = (w0_ref, w1_ref, w2_ref, w3_ref)

    # Zero the lane slack once per image (read by the shifted staging copies).
    h_scr[:, S:S_EXT] = jnp.zeros((CMAX, S_EXT - S), jnp.bfloat16)
    # Load the (host channel-padded) image into the resident buffer.
    cin0 = x_ref.shape[1]
    h_scr[0:cin0, 0:S] = x_ref[0].astype(jnp.bfloat16)

    for l in range(NUM_LAYERS):
        w_l = w_refs[l]
        cout = w_l.shape[1]                 # padded output channels (==real here)
        cp = w_l.shape[2] // 3              # padded input channels of this layer
        d = LAYER_DILATION[l]
        roff = W * d                        # lane offset of one image row
        nw = LAYER_WIDTH[l]

        # Stage the 3 row taps (ki) of the input along sublanes so each matmul
        # contracts K = 3*cin_pad of real data instead of 9 tiny contractions.
        for t in range(3):
            stk_scr[t * cp:(t + 1) * cp, 0:FW] = \
                h_scr[0:cp, t * roff:t * roff + FW]

        # One matmul per kernel column kj; accumulate in f32 VMEM scratch.
        for kj in range(3):
            contrib = jnp.dot(w_l[kj],
                              stk_scr[0:3 * cp, kj * d:kj * d + nw],
                              preferred_element_type=jnp.float32)
            if kj == 0:
                acc_scr[0:cout, 0:nw] = contrib
            else:
                acc_scr[0:cout, 0:nw] += contrib

        a = acc_scr[0:cout, 0:nw] + b_ref[l, 0:cout]      # (cout,1) lane bcast
        if LAYER_RELU[l]:
            a = jnp.maximum(a, 0.0)
        if l + 1 < NUM_LAYERS:
            h_scr[0:cout, 0:nw] = a.astype(jnp.bfloat16)   # stays resident in VMEM
        else:
            o_ref[0] = a.astype(o_ref.dtype)               # lane-dense 128-wide store


# ------------------------------ host wrappers ------------------------------ #

def _round_up(x, m):
    return ((x + m - 1) // m) * m


def prepare_params(params):
    """Pack OIHW weights once into per-kj (cout, 3*cin_pad) bf16 LHS + f32 bias."""
    w_packs, b_packs = [], []
    for (w, b) in params:
        cout, cin, kh, kw = w.shape
        assert (kh, kw) == (3, 3)
        cp = _round_up(cin, 16)             # bf16 sublane packing = 16
        cop = _round_up(cout, 16)
        assert cp <= CMAX and cop <= CMAX
        wp = jnp.pad(w.astype(jnp.float32),
                     ((0, cop - cout), (0, cp - cin), (0, 0), (0, 0)))
        # (cout, cin, ki, kj) -> (kj, cout, ki, cin) -> [kj, cout, ki*cp + cin]
        wk = jnp.transpose(wp, (3, 0, 2, 1)).reshape(kw, cop, kh * cp)
        w_packs.append(wk.astype(jnp.bfloat16))
        b_packs.append(jnp.pad(b.astype(jnp.float32),
                               (0, CMAX - b.shape[0])).reshape(CMAX, 1))
    return tuple(w_packs), jnp.stack(b_packs)   # 4x(3,cout,3cp) bf16, (4,64,1) f32


@functools.partial(jax.jit, static_argnames=("out_dim",))
def conv_encoder_forward(packed_params, x, out_dim=64):
    """x: NCHW (N, Cin, 16, 16) -> (N, out_dim, 2, 2), matching the module."""
    w_all, b_all = packed_params
    n, cin, hh, ww = x.shape
    assert (hh, ww) == (H, W)
    cp0 = w_all[0].shape[2] // 3
    cout3 = w_all[3].shape[1]
    assert cin <= cp0 and out_dim <= cout3 <= CMAX

    # NCHW -> channels on sublanes / flat HW on lanes; pad C only to layer-0 K pad.
    x_flat = x.reshape(n, cin, S).astype(jnp.float32)
    x_pad = jnp.pad(x_flat, ((0, 0), (0, cp0 - cin), (0, 0)))

    grid_spec = pltpu.PrefetchScalarGridSpec(
        num_scalar_prefetch=0,
        grid=(n,),
        in_specs=[
            pl.BlockSpec((1, cp0, S), lambda b: (b, 0, 0)),
            pl.BlockSpec(w_all[0].shape, lambda b: (0, 0, 0)),
            pl.BlockSpec(w_all[1].shape, lambda b: (0, 0, 0)),
            pl.BlockSpec(w_all[2].shape, lambda b: (0, 0, 0)),
            pl.BlockSpec(w_all[3].shape, lambda b: (0, 0, 0)),
            pl.BlockSpec(b_all.shape, lambda b: (0, 0, 0)),
        ],
        out_specs=pl.BlockSpec((1, cout3, S_OUT), lambda b: (b, 0, 0)),
        scratch_shapes=[
            pltpu.VMEM((CMAX, S_EXT), jnp.bfloat16),        # resident activation
            pltpu.VMEM((3 * CMAX, HSTK_W), jnp.bfloat16),   # ki-stacked RHS staging
            pltpu.VMEM((CMAX, S), jnp.float32),             # f32 accumulator
        ],
    )

    out_k = pl.pallas_call(
        _conv_encoder_kernel,
        out_shape=jax.ShapeDtypeStruct((n, cout3, S_OUT), jnp.float32),
        grid_spec=grid_spec,
        compiler_params=pltpu.CompilerParams(
            dimension_semantics=("parallel",)),
    )(x_pad, *w_all, b_all)

    # Valid 2x2 outputs (r, c) live at flat lane OUT_GRID_DIL*(r*W + c).
    idx = jnp.array([OUT_GRID_DIL * (r * W + c)
                     for r in range(OUT_HW) for c in range(OUT_HW)],
                    dtype=jnp.int32)
    out = jnp.take(out_k[:, :out_dim, :], idx, axis=2)      # (N, out_dim, 4)
    return out.reshape(n, out_dim, OUT_HW, OUT_HW)


# --------------------------------- params ---------------------------------- #

def init_conv_encoder_params(key, in_channels, out_dim):
    """Deterministic synthetic init (fan-in scaled), shapes match the module."""
    chans = [(in_channels, 16), (16, 32), (32, 64), (64, out_dim)]
    params = []
    for li, (cin, cout) in enumerate(chans):
        kw_, kb = jax.random.split(jax.random.fold_in(key, li))
        fan_in = cin * 3 * 3
        bound = 1.0 / np.sqrt(fan_in)
        w = jax.random.uniform(kw_, (cout, cin, 3, 3), jnp.float32, -bound, bound)
        b = jax.random.uniform(kb, (cout,), jnp.float32, -bound, bound)
        params.append((w, b))
    return params


def conv_encoder_reference(params, x):
    """Pure-JAX f32 reference (lax conv) for the correctness check."""
    h = x
    for li, (w, b) in enumerate(params):
        stride = 2 if li == 1 else 1
        h = jax.lax.conv_general_dilated(
            h, w, window_strides=(stride, stride), padding="VALID",
            dimension_numbers=("NCHW", "OIHW", "NCHW"))
        h = h + b.reshape(1, -1, 1, 1)
        if li < 3:
            h = jnp.maximum(h, 0.0)
    return h


# ----------------------------------- main ----------------------------------- #

if __name__ == "__main__":
    key = jax.random.PRNGKey(0)
    k_x, k_p = jax.random.split(key)

    batch, in_channels, spatial, out_dim = 2, 4, 16, 64
    x = jax.random.normal(k_x, (batch, in_channels, spatial, spatial), jnp.float32)
    params = init_conv_encoder_params(k_p, in_channels, out_dim)
    packed = prepare_params(params)

    out = conv_encoder_forward(packed, x, out_dim=out_dim)
    out = jax.block_until_ready(out)

    # sanity: 16 -> 14 -> 6 -> 4 -> 2 spatial, out_dim channels
    assert out.shape == (batch, out_dim, 2, 2), out.shape

    ref = jax.block_until_ready(conv_encoder_reference(params, x))
    # bf16 MXU inputs with f32 accumulation over 4 stacked layers.
    np.testing.assert_allclose(np.asarray(out), np.asarray(ref),
                               rtol=2e-2, atol=2e-2)

    print("KERNEL_OK")
</pallas_src>

<mosaic_0001>
module attributes {stable_mosaic.version = 11 : i64} {
  func.func @_conv_encoder_kernel(%arg0: i32, %arg1: memref<1x16x256xf32, #tpu.memory_space<vmem>>, %arg2: memref<3x16x48xbf16, #tpu.memory_space<vmem>>, %arg3: memref<3x32x48xbf16, #tpu.memory_space<vmem>>, %arg4: memref<3x64x96xbf16, #tpu.memory_space<vmem>>, %arg5: memref<3x64x192xbf16, #tpu.memory_space<vmem>>, %arg6: memref<4x64x1xf32, #tpu.memory_space<vmem>>, %arg7: memref<1x64x128xf32, #tpu.memory_space<vmem>>, %arg8: memref<64x384xbf16, #tpu.memory_space<vmem>>, %arg9: memref<192x384xbf16, #tpu.memory_space<vmem>>, %arg10: memref<64x256xf32, #tpu.memory_space<vmem>>) attributes {dimension_semantics = [#tpu.dimension_semantics<parallel>], iteration_bounds = array<i64: 2>, scalar_prefetch = 0 : i64, scratch_operands = 3 : i64, tpu.core_type = #tpu.core_type<tc>, window_params = [{transform_indices = @transform_0, window_bounds = array<i64: 1, 16, 256>}, {pipeline_mode = #tpu.pipeline_mode<synchronous>, transform_indices = @transform_1, window_bounds = array<i64: 3, 16, 48>}, {pipeline_mode = #tpu.pipeline_mode<synchronous>, transform_indices = @transform_2, window_bounds = array<i64: 3, 32, 48>}, {pipeline_mode = #tpu.pipeline_mode<synchronous>, transform_indices = @transform_3, window_bounds = array<i64: 3, 64, 96>}, {pipeline_mode = #tpu.pipeline_mode<synchronous>, transform_indices = @transform_4, window_bounds = array<i64: 3, 64, 192>}, {pipeline_mode = #tpu.pipeline_mode<synchronous>, transform_indices = @transform_5, window_bounds = array<i64: 4, 64, 1>}, {transform_indices = @transform_6, window_bounds = array<i64: 1, 64, 128>}]} {
    %cst = arith.constant 0.000000e+00 : bf16
    %0 = vector.broadcast %cst : bf16 to vector<64x128xbf16>
    %c0 = arith.constant 0 : index
    %c256 = arith.constant 256 : index
    %1 = vector.load %arg8[%c0, %c256] : memref<64x384xbf16, #tpu.memory_space<vmem>>, vector<64x128xbf16>
    tpu.vector_store %arg8[%c0, %c256], %0 {strides = array<i32>} : memref<64x384xbf16, #tpu.memory_space<vmem>>, vector<64x128xbf16>,
    %c0_0 = arith.constant 0 : index
    %c0_1 = arith.constant 0 : index
    %c0_2 = arith.constant 0 : index
    %2 = vector.load %arg1[%c0_0, %c0_1, %c0_2] : memref<1x16x256xf32, #tpu.memory_space<vmem>>, vector<1x16x256xf32>
    %3 = vector.shape_cast %2 : vector<1x16x256xf32> to vector<16x256xf32>
    %4 = arith.truncf %3 : vector<16x256xf32> to vector<16x256xbf16>
    %c0_3 = arith.constant 0 : index
    %c0_4 = arith.constant 0 : index
    %5 = vector.load %arg8[%c0_3, %c0_4] : memref<64x384xbf16, #tpu.memory_space<vmem>>, vector<16x256xbf16>
    tpu.vector_store %arg8[%c0_3, %c0_4], %4 {strides = array<i32>} : memref<64x384xbf16, #tpu.memory_space<vmem>>, vector<16x256xbf16>,
    %c0_5 = arith.constant 0 : index
    %c0_6 = arith.constant 0 : index
    %6 = vector.load %arg8[%c0_5, %c0_6] : memref<64x384xbf16, #tpu.memory_space<vmem>>, vector<16x320xbf16>
    %c0_7 = arith.constant 0 : index
    %c0_8 = arith.constant 0 : index
    %7 = vector.load %arg9[%c0_7, %c0_8] : memref<192x384xbf16, #tpu.memory_space<vmem>>, vector<16x320xbf16>
    tpu.vector_store %arg9[%c0_7, %c0_8], %6 {strides = array<i32>} : memref<192x384xbf16, #tpu.memory_space<vmem>>, vector<16x320xbf16>,
    %c0_9 = arith.constant 0 : index
    %c16 = arith.constant 16 : index
    %8 = vector.load %arg8[%c0_9, %c16] : memref<64x384xbf16, #tpu.memory_space<vmem>>, vector<16x320xbf16>
    %c16_10 = arith.constant 16 : index
    %c0_11 = arith.constant 0 : index
    %9 = vector.load %arg9[%c16_10, %c0_11] : memref<192x384xbf16, #tpu.memory_space<vmem>>, vector<16x320xbf16>
    tpu.vector_store %arg9[%c16_10, %c0_11], %8 {strides = array<i32>} : memref<192x384xbf16, #tpu.memory_space<vmem>>, vector<16x320xbf16>,
    %c0_12 = arith.constant 0 : index
    %c32 = arith.constant 32 : index
    %10 = vector.load %arg8[%c0_12, %c32] : memref<64x384xbf16, #tpu.memory_space<vmem>>, vector<16x320xbf16>
    %c32_13 = arith.constant 32 : index
    %c0_14 = arith.constant 0 : index
    %11 = vector.load %arg9[%c32_13, %c0_14] : memref<192x384xbf16, #tpu.memory_space<vmem>>, vector<16x320xbf16>
    tpu.vector_store %arg9[%c32_13, %c0_14], %10 {strides = array<i32>} : memref<192x384xbf16, #tpu.memory_space<vmem>>, vector<16x320xbf16>,
    %c0_15 = arith.constant 0 : index
    %c0_16 = arith.constant 0 : index
    %c0_17 = arith.constant 0 : index
    %12 = vector.load %arg2[%c0_15, %c0_16, %c0_17] : memref<3x16x48xbf16, #tpu.memory_space<vmem>>, vector<1x16x48xbf16>
    %13 = vector.shape_cast %12 : vector<1x16x48xbf16> to vector<16x48xbf16>
    %c0_18 = arith.constant 0 : index
    %c0_19 = arith.constant 0 : index
    %14 = vector.load %arg9[%c0_18, %c0_19] : memref<192x384xbf16, #tpu.memory_space<vmem>>, vector<48x256xbf16>
    %cst_20 = arith.constant dense<0.000000e+00> : vector<16x256xf32>
    %15 = tpu.matmul %13, %14, %cst_20 {dimension_numbers = #tpu.dot_dimension_numbers<[1], [0], [0], [1], [0, 0, 1, 1], [], []>} : vector<16x48xbf16>, vector<48x256xbf16>, vector<16x256xf32> -> vector<16x256xf32>
    %c0_21 = arith.constant 0 : index
    %c0_22 = arith.constant 0 : index
    %16 = vector.load %arg10[%c0_21, %c0_22] : memref<64x256xf32, #tpu.memory_space<vmem>>, vector<16x256xf32>
    tpu.vector_store %arg10[%c0_21, %c0_22], %15 {strides = array<i32>} : memref<64x256xf32, #tpu.memory_space<vmem>>, vector<16x256xf32>,
    %c1 = arith.constant 1 : index
    %c0_23 = arith.constant 0 : index
    %c0_24 = arith.constant 0 : index
    %17 = vector.load %arg2[%c1, %c0_23, %c0_24] : memref<3x16x48xbf16, #tpu.memory_space<vmem>>, vector<1x16x48xbf16>
    %18 = vector.shape_cast %17 : vector<1x16x48xbf16> to vector<16x48xbf16>
    %c0_25 = arith.constant 0 : index
    %c1_26 = arith.constant 1 : index
    %19 = vector.load %arg9[%c0_25, %c1_26] : memref<192x384xbf16, #tpu.memory_space<vmem>>, vector<48x256xbf16>
    %cst_27 = arith.constant dense<0.000000e+00> : vector<16x256xf32>
    %20 = tpu.matmul %18, %19, %cst_27 {dimension_numbers = #tpu.dot_dimension_numbers<[1], [0], [0], [1], [0, 0, 1, 1], [], []>} : vector<16x48xbf16>, vector<48x256xbf16>, vector<16x256xf32> -> vector<16x256xf32>
    %c0_28 = arith.constant 0 : index
    %c0_29 = arith.constant 0 : index
    %21 = vector.load %arg10[%c0_28, %c0_29] : memref<64x256xf32, #tpu.memory_space<vmem>>, vector<16x256xf32>
    %22 = arith.addf %21, %20 : vector<16x256xf32>
    %c0_30 = arith.constant 0 : index
    %c0_31 = arith.constant 0 : index
    %23 = vector.load %arg10[%c0_30, %c0_31] : memref<64x256xf32, #tpu.memory_space<vmem>>, vector<16x256xf32>
    tpu.vector_store %arg10[%c0_30, %c0_31], %22 {strides = array<i32>} : memref<64x256xf32, #tpu.memory_space<vmem>>, vector<16x256xf32>,
    %c2 = arith.constant 2 : index
    %c0_32 = arith.constant 0 : index
    %c0_33 = arith.constant 0 : index
    %24 = vector.load %arg2[%c2, %c0_32, %c0_33] : memref<3x16x48xbf16, #tpu.memory_space<vmem>>, vector<1x16x48xbf16>
    %25 = vector.shape_cast %24 : vector<1x16x48xbf16> to vector<16x48xbf16>
    %c0_34 = arith.constant 0 : index
    %c2_35 = arith.constant 2 : index
    %26 = vector.load %arg9[%c0_34, %c2_35] : memref<192x384xbf16, #tpu.memory_space<vmem>>, vector<48x256xbf16>
    %cst_36 = arith.constant dense<0.000000e+00> : vector<16x256xf32>
    %27 = tpu.matmul %25, %26, %cst_36 {dimension_numbers = #tpu.dot_dimension_numbers<[1], [0], [0], [1], [0, 0, 1, 1], [], []>} : vector<16x48xbf16>, vector<48x256xbf16>, vector<16x256xf32> -> vector<16x256xf32>
    %c0_37 = arith.constant 0 : index
    %c0_38 = arith.constant 0 : index
    %28 = vector.load %arg10[%c0_37, %c0_38] : memref<64x256xf32, #tpu.memory_space<vmem>>, vector<16x256xf32>
    %29 = arith.addf %28, %27 : vector<16x256xf32>
    %c0_39 = arith.constant 0 : index
    %c0_40 = arith.constant 0 : index
    %30 = vector.load %arg10[%c0_39, %c0_40] : memref<64x256xf32, #tpu.memory_space<vmem>>, vector<16x256xf32>
    tpu.vector_store %arg10[%c0_39, %c0_40], %29 {strides = array<i32>} : memref<64x256xf32, #tpu.memory_space<vmem>>, vector<16x256xf32>,
    %c0_41 = arith.constant 0 : index
    %c0_42 = arith.constant 0 : index
    %31 = vector.load %arg10[%c0_41, %c0_42] : memref<64x256xf32, #tpu.memory_space<vmem>>, vector<16x256xf32>
    %c0_43 = arith.constant 0 : index
    %c0_44 = arith.constant 0 : index
    %c0_45 = arith.constant 0 : index
    %32 = vector.load %arg6[%c0_43, %c0_44, %c0_45] : memref<4x64x1xf32, #tpu.memory_space<vmem>>, vector<1x16x1xf32>
    %33 = vector.shape_cast %32 : vector<1x16x1xf32> to vector<16x1xf32>
    %34 = vector.broadcast %33 : vector<16x1xf32> to vector<16x256xf32>
    %35 = arith.addf %31, %34 : vector<16x256xf32>
    %cst_46 = arith.constant 0.000000e+00 : f32
    %36 = vector.broadcast %cst_46 : f32 to vector<16x256xf32>
    %37 = arith.maximumf %35, %36 : vector<16x256xf32>
    %38 = arith.truncf %37 : vector<16x256xf32> to vector<16x256xbf16>
    %c0_47 = arith.constant 0 : index
    %c0_48 = arith.constant 0 : index
    %39 = vector.load %arg8[%c0_47, %c0_48] : memref<64x384xbf16, #tpu.memory_space<vmem>>, vector<16x256xbf16>
    tpu.vector_store %arg8[%c0_47, %c0_48], %38 {strides = array<i32>} : memref<64x384xbf16, #tpu.memory_space<vmem>>, vector<16x256xbf16>,
    %c0_49 = arith.constant 0 : index
    %c0_50 = arith.constant 0 : index
    %40 = vector.load %arg8[%c0_49, %c0_50] : memref<64x384xbf16, #tpu.memory_space<vmem>>, vector<16x320xbf16>
    %c0_51 = arith.constant 0 : index
    %c0_52 = arith.constant 0 : index
    %41 = vector.load %arg9[%c0_51, %c0_52] : memref<192x384xbf16, #tpu.memory_space<vmem>>, vector<16x320xbf16>
    tpu.vector_store %arg9[%c0_51, %c0_52], %40 {strides = array<i32>} : memref<192x384xbf16, #tpu.memory_space<vmem>>, vector<16x320xbf16>,
    %c0_53 = arith.constant 0 : index
    %c16_54 = arith.constant 16 : index
    %42 = vector.load %arg8[%c0_53, %c16_54] : memref<64x384xbf16, #tpu.memory_space<vmem>>, vector<16x320xbf16>
    %c16_55 = arith.constant 16 : index
    %c0_56 = arith.constant 0 : index
    %43 = vector.load %arg9[%c16_55, %c0_56] : memref<192x384xbf16, #tpu.memory_space<vmem>>, vector<16x320xbf16>
    tpu.vector_store %arg9[%c16_55, %c0_56], %42 {strides = array<i32>} : memref<192x384xbf16, #tpu.memory_space<vmem>>, vector<16x320xbf16>,
    %c0_57 = arith.constant 0 : index
    %c32_58 = arith.constant 32 : index
    %44 = vector.load %arg8[%c0_57, %c32_58] : memref<64x384xbf16, #tpu.memory_space<vmem>>, vector<16x320xbf16>
    %c32_59 = arith.constant 32 : index
    %c0_60 = arith.constant 0 : index
    %45 = vector.load %arg9[%c32_59, %c0_60] : memref<192x384xbf16, #tpu.memory_space<vmem>>, vector<16x320xbf16>
    tpu.vector_store %arg9[%c32_59, %c0_60], %44 {strides = array<i32>} : memref<192x384xbf16, #tpu.memory_space<vmem>>, vector<16x320xbf16>,
    %c0_61 = arith.constant 0 : index
    %c0_62 = arith.constant 0 : index
    %c0_63 = arith.constant 0 : index
    %46 = vector.load %arg3[%c0_61, %c0_62, %c0_63] : memref<3x32x48xbf16, #tpu.memory_space<vmem>>, vector<1x32x48xbf16>
    %47 = vector.shape_cast %46 : vector<1x32x48xbf16> to vector<32x48xbf16>
    %c0_64 = arith.constant 0 : index
    %c0_65 = arith.constant 0 : index
    %48 = vector.load %arg9[%c0_64, %c0_65] : memref<192x384xbf16, #tpu.memory_space<vmem>>, vector<48x256xbf16>
    %cst_66 = arith.constant dense<0.000000e+00> : vector<32x256xf32>
    %49 = tpu.matmul %47, %48, %cst_66 {dimension_numbers = #tpu.dot_dimension_numbers<[1], [0], [0], [1], [0, 0, 1, 1], [], []>} : vector<32x48xbf16>, vector<48x256xbf16>, vector<32x256xf32> -> vector<32x256xf32>
    %c0_67 = arith.constant 0 : index
    %c0_68 = arith.constant 0 : index
    %50 = vector.load %arg10[%c0_67, %c0_68] : memref<64x256xf32, #tpu.memory_space<vmem>>, vector<32x256xf32>
    tpu.vector_store %arg10[%c0_67, %c0_68], %49 {strides = array<i32>} : memref<64x256xf32, #tpu.memory_space<vmem>>, vector<32x256xf32>,
    %c1_69 = arith.constant 1 : index
    %c0_70 = arith.constant 0 : index
    %c0_71 = arith.constant 0 : index
    %51 = vector.load %arg3[%c1_69, %c0_70, %c0_71] : memref<3x32x48xbf16, #tpu.memory_space<vmem>>, vector<1x32x48xbf16>
    %52 = vector.shape_cast %51 : vector<1x32x48xbf16> to vector<32x48xbf16>
    %c0_72 = arith.constant 0 : index
    %c1_73 = arith.constant 1 : index
    %53 = vector.load %arg9[%c0_72, %c1_73] : memref<192x384xbf16, #tpu.memory_space<vmem>>, vector<48x256xbf16>
    %cst_74 = arith.constant dense<0.000000e+00> : vector<32x256xf32>
    %54 = tpu.matmul %52, %53, %cst_74 {dimension_numbers = #tpu.dot_dimension_numbers<[1], [0], [0], [1], [0, 0, 1, 1], [], []>} : vector<32x48xbf16>, vector<48x256xbf16>, vector<32x256xf32> -> vector<32x256xf32>
    %c0_75 = arith.constant 0 : index
    %c0_76 = arith.constant 0 : index
    %55 = vector.load %arg10[%c0_75, %c0_76] : memref<64x256xf32, #tpu.memory_space<vmem>>, vector<32x256xf32>
    %56 = arith.addf %55, %54 : vector<32x256xf32>
    %c0_77 = arith.constant 0 : index
    %c0_78 = arith.constant 0 : index
    %57 = vector.load %arg10[%c0_77, %c0_78] : memref<64x256xf32, #tpu.memory_space<vmem>>, vector<32x256xf32>
    tpu.vector_store %arg10[%c0_77, %c0_78], %56 {strides = array<i32>} : memref<64x256xf32, #tpu.memory_space<vmem>>, vector<32x256xf32>,
    %c2_79 = arith.constant 2 : index
    %c0_80 = arith.constant 0 : index
    %c0_81 = arith.constant 0 : index
    %58 = vector.load %arg3[%c2_79, %c0_80, %c0_81] : memref<3x32x48xbf16, #tpu.memory_space<vmem>>, vector<1x32x48xbf16>
    %59 = vector.shape_cast %58 : vector<1x32x48xbf16> to vector<32x48xbf16>
    %c0_82 = arith.constant 0 : index
    %c2_83 = arith.constant 2 : index
    %60 = vector.load %arg9[%c0_82, %c2_83] : memref<192x384xbf16, #tpu.memory_space<vmem>>, vector<48x256xbf16>
    %cst_84 = arith.constant dense<0.000000e+00> : vector<32x256xf32>
    %61 = tpu.matmul %59, %60, %cst_84 {dimension_numbers = #tpu.dot_dimension_numbers<[1], [0], [0], [1], [0, 0, 1, 1], [], []>} : vector<32x48xbf16>, vector<48x256xbf16>, vector<32x256xf32> -> vector<32x256xf32>
    %c0_85 = arith.constant 0 : index
    %c0_86 = arith.constant 0 : index
    %62 = vector.load %arg10[%c0_85, %c0_86] : memref<64x256xf32, #tpu.memory_space<vmem>>, vector<32x256xf32>
    %63 = arith.addf %62, %61 : vector<32x256xf32>
    %c0_87 = arith.constant 0 : index
    %c0_88 = arith.constant 0 : index
    %64 = vector.load %arg10[%c0_87, %c0_88] : memref<64x256xf32, #tpu.memory_space<vmem>>, vector<32x256xf32>
    tpu.vector_store %arg10[%c0_87, %c0_88], %63 {strides = array<i32>} : memref<64x256xf32, #tpu.memory_space<vmem>>, vector<32x256xf32>,
    %c0_89 = arith.constant 0 : index
    %c0_90 = arith.constant 0 : index
    %65 = vector.load %arg10[%c0_89, %c0_90] : memref<64x256xf32, #tpu.memory_space<vmem>>, vector<32x256xf32>
    %c1_91 = arith.constant 1 : index
    %c0_92 = arith.constant 0 : index
    %c0_93 = arith.constant 0 : index
    %66 = vector.load %arg6[%c1_91, %c0_92, %c0_93] : memref<4x64x1xf32, #tpu.memory_space<vmem>>, vector<1x32x1xf32>
    %67 = vector.shape_cast %66 : vector<1x32x1xf32> to vector<32x1xf32>
    %68 = vector.broadcast %67 : vector<32x1xf32> to vector<32x256xf32>
    %69 = arith.addf %65, %68 : vector<32x256xf32>
    %cst_94 = arith.constant 0.000000e+00 : f32
    %70 = vector.broadcast %cst_94 : f32 to vector<32x256xf32>
    %71 = arith.maximumf %69, %70 : vector<32x256xf32>
    %72 = arith.truncf %71 : vector<32x256xf32> to vector<32x256xbf16>
    %c0_95 = arith.constant 0 : index
    %c0_96 = arith.constant 0 : index
    %73 = vector.load %arg8[%c0_95, %c0_96] : memref<64x384xbf16, #tpu.memory_space<vmem>>, vector<32x256xbf16>
    tpu.vector_store %arg8[%c0_95, %c0_96], %72 {strides = array<i32>} : memref<64x384xbf16, #tpu.memory_space<vmem>>, vector<32x256xbf16>,
    %c0_97 = arith.constant 0 : index
    %c0_98 = arith.constant 0 : index
    %74 = vector.load %arg8[%c0_97, %c0_98] : memref<64x384xbf16, #tpu.memory_space<vmem>>, vector<32x320xbf16>
    %c0_99 = arith.constant 0 : index
    %c0_100 = arith.constant 0 : index
    %75 = vector.load %arg9[%c0_99, %c0_100] : memref<192x384xbf16, #tpu.memory_space<vmem>>, vector<32x320xbf16>
    tpu.vector_store %arg9[%c0_99, %c0_100], %74 {strides = array<i32>} : memref<192x384xbf16, #tpu.memory_space<vmem>>, vector<32x320xbf16>,
    %c0_101 = arith.constant 0 : index
    %c32_102 = arith.constant 32 : index
    %76 = vector.load %arg8[%c0_101, %c32_102] : memref<64x384xbf16, #tpu.memory_space<vmem>>, vector<32x320xbf16>
    %c32_103 = arith.constant 32 : index
    %c0_104 = arith.constant 0 : index
    %77 = vector.load %arg9[%c32_103, %c0_104] : memref<192x384xbf16, #tpu.memory_space<vmem>>, vector<32x320xbf16>
    tpu.vector_store %arg9[%c32_103, %c0_104], %76 {strides = array<i32>} : memref<192x384xbf16, #tpu.memory_space<vmem>>, vector<32x320xbf16>,
    %c0_105 = arith.constant 0 : index
    %c64 = arith.constant 64 : index
    %78 = vector.load %arg8[%c0_105, %c64] : memref<64x384xbf16, #tpu.memory_space<vmem>>, vector<32x320xbf16>
    %c64_106 = arith.constant 64 : index
    %c0_107 = arith.constant 0 : index
    %79 = vector.load %arg9[%c64_106, %c0_107] : memref<192x384xbf16, #tpu.memory_space<vmem>>, vector<32x320xbf16>
    tpu.vector_store %arg9[%c64_106, %c0_107], %78 {strides = array<i32>} : memref<192x384xbf16, #tpu.memory_space<vmem>>, vector<32x320xbf16>,
    %c0_108 = arith.constant 0 : index
    %c0_109 = arith.constant 0 : index
    %c0_110 = arith.constant 0 : index
    %80 = vector.load %arg4[%c0_108, %c0_109, %c0_110] : memref<3x64x96xbf16, #tpu.memory_space<vmem>>, vector<1x64x96xbf16>
    %81 = vector.shape_cast %80 : vector<1x64x96xbf16> to vector<64x96xbf16>
    %c0_111 = arith.constant 0 : index
    %c0_112 = arith.constant 0 : index
    %82 = vector.load %arg9[%c0_111, %c0_112] : memref<192x384xbf16, #tpu.memory_space<vmem>>, vector<96x256xbf16>
    %cst_113 = arith.constant dense<0.000000e+00> : vector<64x256xf32>
    %83 = tpu.matmul %81, %82, %cst_113 {dimension_numbers = #tpu.dot_dimension_numbers<[1], [0], [0], [1], [0, 0, 1, 1], [], []>} : vector<64x96xbf16>, vector<96x256xbf16>, vector<64x256xf32> -> vector<64x256xf32>
    %c0_114 = arith.constant 0 : index
    %c0_115 = arith.constant 0 : index
    %84 = vector.load %arg10[%c0_114, %c0_115] : memref<64x256xf32, #tpu.memory_space<vmem>>, vector<64x256xf32>
    tpu.vector_store %arg10[%c0_114, %c0_115], %83 {strides = array<i32>} : memref<64x256xf32, #tpu.memory_space<vmem>>, vector<64x256xf32>,
    %c1_116 = arith.constant 1 : index
    %c0_117 = arith.constant 0 : index
    %c0_118 = arith.constant 0 : index
    %85 = vector.load %arg4[%c1_116, %c0_117, %c0_118] : memref<3x64x96xbf16, #tpu.memory_space<vmem>>, vector<1x64x96xbf16>
    %86 = vector.shape_cast %85 : vector<1x64x96xbf16> to vector<64x96xbf16>
    %c0_119 = arith.constant 0 : index
    %c2_120 = arith.constant 2 : index
    %87 = vector.load %arg9[%c0_119, %c2_120] : memref<192x384xbf16, #tpu.memory_space<vmem>>, vector<96x256xbf16>
    %cst_121 = arith.constant dense<0.000000e+00> : vector<64x256xf32>
    %88 = tpu.matmul %86, %87, %cst_121 {dimension_numbers = #tpu.dot_dimension_numbers<[1], [0], [0], [1], [0, 0, 1, 1], [], []>} : vector<64x96xbf16>, vector<96x256xbf16>, vector<64x256xf32> -> vector<64x256xf32>
    %c0_122 = arith.constant 0 : index
    %c0_123 = arith.constant 0 : index
    %89 = vector.load %arg10[%c0_122, %c0_123] : memref<64x256xf32, #tpu.memory_space<vmem>>, vector<64x256xf32>
    %90 = arith.addf %89, %88 : vector<64x256xf32>
    %c0_124 = arith.constant 0 : index
    %c0_125 = arith.constant 0 : index
    %91 = vector.load %arg10[%c0_124, %c0_125] : memref<64x256xf32, #tpu.memory_space<vmem>>, vector<64x256xf32>
    tpu.vector_store %arg10[%c0_124, %c0_125], %90 {strides = array<i32>} : memref<64x256xf32, #tpu.memory_space<vmem>>, vector<64x256xf32>,
    %c2_126 = arith.constant 2 : index
    %c0_127 = arith.constant 0 : index
    %c0_128 = arith.constant 0 : index
    %92 = vector.load %arg4[%c2_126, %c0_127, %c0_128] : memref<3x64x96xbf16, #tpu.memory_space<vmem>>, vector<1x64x96xbf16>
    %93 = vector.shape_cast %92 : vector<1x64x96xbf16> to vector<64x96xbf16>
    %c0_129 = arith.constant 0 : index
    %c4 = arith.constant 4 : index
    %94 = vector.load %arg9[%c0_129, %c4] : memref<192x384xbf16, #tpu.memory_space<vmem>>, vector<96x256xbf16>
    %cst_130 = arith.constant dense<0.000000e+00> : vector<64x256xf32>
    %95 = tpu.matmul %93, %94, %cst_130 {dimension_numbers = #tpu.dot_dimension_numbers<[1], [0], [0], [1], [0, 0, 1, 1], [], []>} : vector<64x96xbf16>, vector<96x256xbf16>, vector<64x256xf32> -> vector<64x256xf32>
    %c0_131 = arith.constant 0 : index
    %c0_132 = arith.constant 0 : index
    %96 = vector.load %arg10[%c0_131, %c0_132] : memref<64x256xf32, #tpu.memory_space<vmem>>, vector<64x256xf32>
    %97 = arith.addf %96, %95 : vector<64x256xf32>
    %c0_133 = arith.constant 0 : index
    %c0_134 = arith.constant 0 : index
    %98 = vector.load %arg10[%c0_133, %c0_134] : memref<64x256xf32, #tpu.memory_space<vmem>>, vector<64x256xf32>
    tpu.vector_store %arg10[%c0_133, %c0_134], %97 {strides = array<i32>} : memref<64x256xf32, #tpu.memory_space<vmem>>, vector<64x256xf32>,
    %c0_135 = arith.constant 0 : index
    %c0_136 = arith.constant 0 : index
    %99 = vector.load %arg10[%c0_135, %c0_136] : memref<64x256xf32, #tpu.memory_space<vmem>>, vector<64x256xf32>
    %c2_137 = arith.constant 2 : index
    %c0_138 = arith.constant 0 : index
    %c0_139 = arith.constant 0 : index
    %100 = vector.load %arg6[%c2_137, %c0_138, %c0_139] : memref<4x64x1xf32, #tpu.memory_space<vmem>>, vector<1x64x1xf32>
    %101 = vector.shape_cast %100 : vector<1x64x1xf32> to vector<64x1xf32>
    %102 = vector.broadcast %101 : vector<64x1xf32> to vector<64x256xf32>
    %103 = arith.addf %99, %102 : vector<64x256xf32>
    %cst_140 = arith.constant 0.000000e+00 : f32
    %104 = vector.broadcast %cst_140 : f32 to vector<64x256xf32>
    %105 = arith.maximumf %103, %104 : vector<64x256xf32>
    %106 = arith.truncf %105 : vector<64x256xf32> to vector<64x256xbf16>
    %c0_141 = arith.constant 0 : index
    %c0_142 = arith.constant 0 : index
    %107 = vector.load %arg8[%c0_141, %c0_142] : memref<64x384xbf16, #tpu.memory_space<vmem>>, vector<64x256xbf16>
    tpu.vector_store %arg8[%c0_141, %c0_142], %106 {strides = array<i32>} : memref<64x384xbf16, #tpu.memory_space<vmem>>, vector<64x256xbf16>,
    %c0_143 = arith.constant 0 : index
    %c0_144 = arith.constant 0 : index
    %108 = vector.load %arg8[%c0_143, %c0_144] : memref<64x384xbf16, #tpu.memory_space<vmem>>, vector<64x320xbf16>
    %c0_145 = arith.constant 0 : index
    %c0_146 = arith.constant 0 : index
    %109 = vector.load %arg9[%c0_145, %c0_146] : memref<192x384xbf16, #tpu.memory_space<vmem>>, vector<64x320xbf16>
    tpu.vector_store %arg9[%c0_145, %c0_146], %108 {strides = array<i32>} : memref<192x384xbf16, #tpu.memory_space<vmem>>, vector<64x320xbf16>,
    %c0_147 = arith.constant 0 : index
    %c32_148 = arith.constant 32 : index
    %110 = vector.load %arg8[%c0_147, %c32_148] : memref<64x384xbf16, #tpu.memory_space<vmem>>, vector<64x320xbf16>
    %c64_149 = arith.constant 64 : index
    %c0_150 = arith.constant 0 : index
    %111 = vector.load %arg9[%c64_149, %c0_150] : memref<192x384xbf16, #tpu.memory_space<vmem>>, vector<64x320xbf16>
    tpu.vector_store %arg9[%c64_149, %c0_150], %110 {strides = array<i32>} : memref<192x384xbf16, #tpu.memory_space<vmem>>, vector<64x320xbf16>,
    %c0_151 = arith.constant 0 : index
    %c64_152 = arith.constant 64 : index
    %112 = vector.load %arg8[%c0_151, %c64_152] : memref<64x384xbf16, #tpu.memory_space<vmem>>, vector<64x320xbf16>
    %c128 = arith.constant 128 : index
    %c0_153 = arith.constant 0 : index
    %113 = vector.load %arg9[%c128, %c0_153] : memref<192x384xbf16, #tpu.memory_space<vmem>>, vector<64x320xbf16>
    tpu.vector_store %arg9[%c128, %c0_153], %112 {strides = array<i32>} : memref<192x384xbf16, #tpu.memory_space<vmem>>, vector<64x320xbf16>,
    %c0_154 = arith.constant 0 : index
    %c0_155 = arith.constant 0 : index
    %c0_156 = arith.constant 0 : index
    %114 = vector.load %arg5[%c0_154, %c0_155, %c0_156] : memref<3x64x192xbf16, #tpu.memory_space<vmem>>, vector<1x64x192xbf16>
    %115 = vector.shape_cast %114 : vector<1x64x192xbf16> to vector<64x192xbf16>
    %c0_157 = arith.constant 0 : index
    %c0_158 = arith.constant 0 : index
    %116 = vector.load %arg9[%c0_157, %c0_158] : memref<192x384xbf16, #tpu.memory_space<vmem>>, vector<192x128xbf16>
    %cst_159 = arith.constant dense<0.000000e+00> : vector<64x128xf32>
    %117 = tpu.matmul %115, %116, %cst_159 {dimension_numbers = #tpu.dot_dimension_numbers<[1], [0], [0], [1], [0, 0, 1, 1], [], []>} : vector<64x192xbf16>, vector<192x128xbf16>, vector<64x128xf32> -> vector<64x128xf32>
    %c0_160 = arith.constant 0 : index
    %c0_161 = arith.constant 0 : index
    %118 = vector.load %arg10[%c0_160, %c0_161] : memref<64x256xf32, #tpu.memory_space<vmem>>, vector<64x128xf32>
    tpu.vector_store %arg10[%c0_160, %c0_161], %117 {strides = array<i32>} : memref<64x256xf32, #tpu.memory_space<vmem>>, vector<64x128xf32>,
    %c1_162 = arith.constant 1 : index
    %c0_163 = arith.constant 0 : index
    %c0_164 = arith.constant 0 : index
    %119 = vector.load %arg5[%c1_162, %c0_163, %c0_164] : memref<3x64x192xbf16, #tpu.memory_space<vmem>>, vector<1x64x192xbf16>
    %120 = vector.shape_cast %119 : vector<1x64x192xbf16> to vector<64x192xbf16>
    %c0_165 = arith.constant 0 : index
    %c2_166 = arith.constant 2 : index
    %121 = vector.load %arg9[%c0_165, %c2_166] : memref<192x384xbf16, #tpu.memory_space<vmem>>, vector<192x128xbf16>
    %cst_167 = arith.constant dense<0.000000e+00> : vector<64x128xf32>
    %122 = tpu.matmul %120, %121, %cst_167 {dimension_numbers = #tpu.dot_dimension_numbers<[1], [0], [0], [1], [0, 0, 1, 1], [], []>} : vector<64x192xbf16>, vector<192x128xbf16>, vector<64x128xf32> -> vector<64x128xf32>
    %c0_168 = arith.constant 0 : index
    %c0_169 = arith.constant 0 : index
    %123 = vector.load %arg10[%c0_168, %c0_169] : memref<64x256xf32, #tpu.memory_space<vmem>>, vector<64x128xf32>
    %124 = arith.addf %123, %122 : vector<64x128xf32>
    %c0_170 = arith.constant 0 : index
    %c0_171 = arith.constant 0 : index
    %125 = vector.load %arg10[%c0_170, %c0_171] : memref<64x256xf32, #tpu.memory_space<vmem>>, vector<64x128xf32>
    tpu.vector_store %arg10[%c0_170, %c0_171], %124 {strides = array<i32>} : memref<64x256xf32, #tpu.memory_space<vmem>>, vector<64x128xf32>,
    %c2_172 = arith.constant 2 : index
    %c0_173 = arith.constant 0 : index
    %c0_174 = arith.constant 0 : index
    %126 = vector.load %arg5[%c2_172, %c0_173, %c0_174] : memref<3x64x192xbf16, #tpu.memory_space<vmem>>, vector<1x64x192xbf16>
    %127 = vector.shape_cast %126 : vector<1x64x192xbf16> to vector<64x192xbf16>
    %c0_175 = arith.constant 0 : index
    %c4_176 = arith.constant 4 : index
    %128 = vector.load %arg9[%c0_175, %c4_176] : memref<192x384xbf16, #tpu.memory_space<vmem>>, vector<192x128xbf16>
    %cst_177 = arith.constant dense<0.000000e+00> : vector<64x128xf32>
    %129 = tpu.matmul %127, %128, %cst_177 {dimension_numbers = #tpu.dot_dimension_numbers<[1], [0], [0], [1], [0, 0, 1, 1], [], []>} : vector<64x192xbf16>, vector<192x128xbf16>, vector<64x128xf32> -> vector<64x128xf32>
    %c0_178 = arith.constant 0 : index
    %c0_179 = arith.constant 0 : index
    %130 = vector.load %arg10[%c0_178, %c0_179] : memref<64x256xf32, #tpu.memory_space<vmem>>, vector<64x128xf32>
    %131 = arith.addf %130, %129 : vector<64x128xf32>
    %c0_180 = arith.constant 0 : index
    %c0_181 = arith.constant 0 : index
    %132 = vector.load %arg10[%c0_180, %c0_181] : memref<64x256xf32, #tpu.memory_space<vmem>>, vector<64x128xf32>
    tpu.vector_store %arg10[%c0_180, %c0_181], %131 {strides = array<i32>} : memref<64x256xf32, #tpu.memory_space<vmem>>, vector<64x128xf32>,
    %c0_182 = arith.constant 0 : index
    %c0_183 = arith.constant 0 : index
    %133 = vector.load %arg10[%c0_182, %c0_183] : memref<64x256xf32, #tpu.memory_space<vmem>>, vector<64x128xf32>
    %c3 = arith.constant 3 : index
    %c0_184 = arith.constant 0 : index
    %c0_185 = arith.constant 0 : index
    %134 = vector.load %arg6[%c3, %c0_184, %c0_185] : memref<4x64x1xf32, #tpu.memory_space<vmem>>, vector<1x64x1xf32>
    %135 = vector.shape_cast %134 : vector<1x64x1xf32> to vector<64x1xf32>
    %136 = vector.broadcast %135 : vector<64x1xf32> to vector<64x128xf32>
    %137 = arith.addf %133, %136 : vector<64x128xf32>
    %c0_186 = arith.constant 0 : index
    %c0_187 = arith.constant 0 : index
    %c0_188 = arith.constant 0 : index
    %138 = vector.load %arg7[%c0_186, %c0_187, %c0_188] : memref<1x64x128xf32, #tpu.memory_space<vmem>>, vector<1x64x128xf32>
    %139 = vector.shape_cast %138 : vector<1x64x128xf32> to vector<64x128xf32>
    %140 = vector.shape_cast %137 : vector<64x128xf32> to vector<1x64x128xf32>
    tpu.vector_store %arg7[%c0_186, %c0_187, %c0_188], %140 {strides = array<i32>} : memref<1x64x128xf32, #tpu.memory_space<vmem>>, vector<1x64x128xf32>,
    return
  }
  func.func @transform_0(%arg0: i32) -> (i32, i32, i32) {
    %c0_i32 = arith.constant 0 : i32
    %c0_i32_0 = arith.constant 0 : i32
    %c0_i32_1 = arith.constant 0 : i32
    return %arg0, %c0_i32, %c0_i32_0 : i32, i32, i32
  }
  func.func @transform_1(%arg0: i32) -> (i32, i32, i32) {
    %c0_i32 = arith.constant 0 : i32
    %c0_i32_0 = arith.constant 0 : i32
    %c0_i32_1 = arith.constant 0 : i32
    %c0_i32_2 = arith.constant 0 : i32
    return %c0_i32, %c0_i32_0, %c0_i32_1 : i32, i32, i32
  }
  func.func @transform_2(%arg0: i32) -> (i32, i32, i32) {
    %c0_i32 = arith.constant 0 : i32
    %c0_i32_0 = arith.constant 0 : i32
    %c0_i32_1 = arith.constant 0 : i32
    %c0_i32_2 = arith.constant 0 : i32
    return %c0_i32, %c0_i32_0, %c0_i32_1 : i32, i32, i32
  }
  func.func @transform_3(%arg0: i32) -> (i32, i32, i32) {
    %c0_i32 = arith.constant 0 : i32
    %c0_i32_0 = arith.constant 0 : i32
    %c0_i32_1 = arith.constant 0 : i32
    %c0_i32_2 = arith.constant 0 : i32
    return %c0_i32, %c0_i32_0, %c0_i32_1 : i32, i32, i32
  }
  func.func @transform_4(%arg0: i32) -> (i32, i32, i32) {
    %c0_i32 = arith.constant 0 : i32
    %c0_i32_0 = arith.constant 0 : i32
    %c0_i32_1 = arith.constant 0 : i32
    %c0_i32_2 = arith.constant 0 : i32
    return %c0_i32, %c0_i32_0, %c0_i32_1 : i32, i32, i32
  }
  func.func @transform_5(%arg0: i32) -> (i32, i32, i32) {
    %c0_i32 = arith.constant 0 : i32
    %c0_i32_0 = arith.constant 0 : i32
    %c0_i32_1 = arith.constant 0 : i32
    %c0_i32_2 = arith.constant 0 : i32
    return %c0_i32, %c0_i32_0, %c0_i32_1 : i32, i32, i32
  }
  func.func @transform_6(%arg0: i32) -> (i32, i32, i32) {
    %c0_i32 = arith.constant 0 : i32
    %c0_i32_0 = arith.constant 0 : i32
    %c0_i32_1 = arith.constant 0 : i32
    return %arg0, %c0_i32, %c0_i32_0 : i32, i32, i32
  }
}

</mosaic_0001>

<llo_original>
// kernel: conv_encoder_forward.1
$region0: #{conv_encoder_forward.1}
  #allocation0 [shape = 'u32[]', space=smem, size = 0x4, offset = 0x4, fixed_abs, tag = 'smem constant byte address 0x4 - core index']
  #allocation1 [shape = 'u32[72,128]{1,0:T(1,128)}', space=vmem, size = 0x9000, scoped, tag = 'internal scratch']
  #allocation2 [shape = 'bf16[64,384]{1,0:T(8,128)(2,1)}', space=vmem, size = 0xc000, scoped, tag = 'scratch operand']
  #allocation3 [shape = 'bf16[192,384]{1,0:T(8,128)(2,1)}', space=vmem, size = 0x24000, scoped, tag = 'scratch operand']
  #allocation4 [shape = 'f32[64,256]{1,0:T(8,128)}', space=vmem, size = 0x10000, scoped, tag = 'scratch operand']
  %s0 = inlined_call_operand.vmem [shape: f32[2,16,256], index: 0, kind: input, shape index: {}]
  %s1 = inlined_call_operand.hbm [shape: bf16[3,16,48], index: 1, kind: input, shape index: {}]
  %s2 = inlined_call_operand.vmem [shape: bf16[3,32,48], index: 2, kind: input, shape index: {}]
  %s3 = inlined_call_operand.vmem [shape: bf16[3,64,96], index: 3, kind: input, shape index: {}]
  %s4 = inlined_call_operand.vmem [shape: bf16[3,64,192], index: 4, kind: input, shape index: {}]
  %s5 = inlined_call_operand.vmem [shape: f32[4,64,1], index: 5, kind: input, shape index: {}]
  %s6 = inlined_call_operand.vmem [shape: f32[2,64,128], index: 6, kind: output, shape index: {}]
  %s7 = sld [smem:[#allocation0]]
  $region61: #{conv_encoder_forward.1} parent=0
    _
  %s9 = ssub.s32 1, %s7
  %s10 = scalar_select 0, %s9, %s7
  $region1: #{conv_encoder_forward.1} parent=0
    #allocation5 [shape = 'u8[12288]{0}', space=vmem, size = 0x3000, scoped, tag = 'input window, operand 1, single buffered']
    #allocation6 [shape = 's32[2]{0}', space=sflag, size = 0x8, scoped, tag = 'scoped memory for conv_encoder_forward.1']
    %11 = vsyncpa [#allocation6], 0
    loop: start=0, step=1, limit=4
    $region2: #{conv_encoder_forward.1} parent=1 // loop_pre_header
      _
    $region3: #{conv_encoder_forward.1} parent=1 // loop_header
      %s13 = sphi 0, %s17
      %p14 = scmp.ge.s32.totalorder %s13, 4
      %s23 = sphi 0, %s25
      %s26 = sphi 0, %s23
      %s27 = sphi 0, %s26
      %s43 = sphi 0, %s27
      %s47 = sphi 0, %s47
      %s49 = sphi 0, %s47
      %s50 = sphi 0, %s49
      %s64 = sphi 0, %s50
      %s68 = sphi 0, %s68
      %s70 = sphi 0, %s68
      %s71 = sphi 0, %s70
      %s85 = sphi 0, %s71
      %s89 = sphi 0, %s89
      %s91 = sphi 0, %s89
      %s92 = sphi 0, %s91
      %s106 = sphi 0, %s92
      %s110 = sphi 0, %s110
      %s112 = sphi 0, %s110
      %s113 = sphi 0, %s112
      %s127 = sphi 0, %s113
      %s131 = sphi 0, %s131
      %s133 = sphi 0, %s131
      %s134 = sphi 0, %s133
      %s148 = sphi 0, %s134
      %s154 = sphi 0, %s156
      %s157 = sphi 0, %s154
      %s158 = sphi 0, %s157
      %s174 = sphi 0, %s158
    $region4: #{conv_encoder_forward.1} parent=1 // loop_header_branch
      %16 = sbr.rel (%p14) target = $region8
    $region5: #{conv_encoder_forward.1} parent=1 // loop_body
      %s18 = ssub.s32 %s13, 1
      %s19 = ssub.s32 %s13, 2
      %s20 = sadd.s32 %s13, 1
      %s21 = ssub.s32 %s13, %s20
      %p22 = scmp.eq.s32.totalorder %s21, 0
      %s24 = sadd.s32 %s23, 1
      %s25 = scalar_select %p22, %s23, %s24
      %p28 = pneg %p22
      %p29 = scmp.eq.s32.totalorder %s13, 1
      %p30 = por %p28, %p29
      %p31 = scmp.ne.s32.totalorder %s23, %s26
      %p32 = scmp.eq.s32.totalorder %s13, 0
      %p33 = por %p31, %p32
      %p34 = scmp.ne.s32.totalorder %s23, %s26
      %p35 = scmp.eq.s32.totalorder %s18, 1
      %p36 = por %p34, %p35
      %p37 = scmp.ne.s32.totalorder %s26, %s27
      %p38 = scmp.eq.s32.totalorder %s18, 0
      %p39 = por %p37, %p38
      %p40 = scmp.ne.s32.totalorder %s26, %s27
      %p41 = scmp.eq.s32.totalorder %s19, 1
      %p42 = por %p40, %p41
      %p44 = scmp.ne.s32.totalorder %s27, %s43
      %p45 = scmp.eq.s32.totalorder %s19, 0
      %p46 = por %p44, %p45
      %s48 = sadd.s32 %s47, 1
      %p51 = scmp.eq.s32.totalorder %s13, 1
      %p52 = scmp.ne.s32.totalorder %s47, %s49
      %p53 = scmp.eq.s32.totalorder %s13, 0
      %p54 = por %p52, %p53
      %p55 = scmp.ne.s32.totalorder %s47, %s49
      %p56 = scmp.eq.s32.totalorder %s18, 1
      %p57 = por %p55, %p56
      %p58 = scmp.ne.s32.totalorder %s49, %s50
      %p59 = scmp.eq.s32.totalorder %s18, 0
      %p60 = por %p58, %p59
      %p61 = scmp.ne.s32.totalorder %s49, %s50
      %p62 = scmp.eq.s32.totalorder %s19, 1
      %p63 = por %p61, %p62
      %p65 = scmp.ne.s32.totalorder %s50, %s64
      %p66 = scmp.eq.s32.totalorder %s19, 0
      %p67 = por %p65, %p66
      %s69 = sadd.s32 %s68, 1
      %p72 = scmp.eq.s32.totalorder %s13, 1
      %p73 = scmp.ne.s32.totalorder %s68, %s70
      %p74 = scmp.eq.s32.totalorder %s13, 0
      %p75 = por %p73, %p74
      %p76 = scmp.ne.s32.totalorder %s68, %s70
      %p77 = scmp.eq.s32.totalorder %s18, 1
      %p78 = por %p76, %p77
      %p79 = scmp.ne.s32.totalorder %s70, %s71
      %p80 = scmp.eq.s32.totalorder %s18, 0
      %p81 = por %p79, %p80
      %p82 = scmp.ne.s32.totalorder %s70, %s71
      %p83 = scmp.eq.s32.totalorder %s19, 1
      %p84 = por %p82, %p83
      %p86 = scmp.ne.s32.totalorder %s71, %s85
      %p87 = scmp.eq.s32.totalorder %s19, 0
      %p88 = por %p86, %p87
      %s90 = sadd.s32 %s89, 1
      %p93 = scmp.eq.s32.totalorder %s13, 1
      %p94 = scmp.ne.s32.totalorder %s89, %s91
      %p95 = scmp.eq.s32.totalorder %s13, 0
      %p96 = por %p94, %p95
      %p97 = scmp.ne.s32.totalorder %s89, %s91
      %p98 = scmp.eq.s32.totalorder %s18, 1
      %p99 = por %p97, %p98
      %p100 = scmp.ne.s32.totalorder %s91, %s92
      %p101 = scmp.eq.s32.totalorder %s18, 0
      %p102 = por %p100, %p101
      %p103 = scmp.ne.s32.totalorder %s91, %s92
      %p104 = scmp.eq.s32.totalorder %s19, 1
      %p105 = por %p103, %p104
      %p107 = scmp.ne.s32.totalorder %s92, %s106
      %p108 = scmp.eq.s32.totalorder %s19, 0
      %p109 = por %p107, %p108
      %s111 = sadd.s32 %s110, 1
      %p114 = scmp.eq.s32.totalorder %s13, 1
      %p115 = scmp.ne.s32.totalorder %s110, %s112
      %p116 = scmp.eq.s32.totalorder %s13, 0
      %p117 = por %p115, %p116
      %p118 = scmp.ne.s32.totalorder %s110, %s112
      %p119 = scmp.eq.s32.totalorder %s18, 1
      %p120 = por %p118, %p119
      %p121 = scmp.ne.s32.totalorder %s112, %s113
      %p122 = scmp.eq.s32.totalorder %s18, 0
      %p123 = por %p121, %p122
      %p124 = scmp.ne.s32.totalorder %s112, %s113
      %p125 = scmp.eq.s32.totalorder %s19, 1
      %p126 = por %p124, %p125
      %p128 = scmp.ne.s32.totalorder %s113, %s127
      %p129 = scmp.eq.s32.totalorder %s19, 0
      %p130 = por %p128, %p129
      %s132 = sadd.s32 %s131, 1
      %p135 = scmp.eq.s32.totalorder %s13, 1
      %p136 = scmp.ne.s32.totalorder %s131, %s133
      %p137 = scmp.eq.s32.totalorder %s13, 0
      %p138 = por %p136, %p137
      %p139 = scmp.ne.s32.totalorder %s131, %s133
      %p140 = scmp.eq.s32.totalorder %s18, 1
      %p141 = por %p139, %p140
      %p142 = scmp.ne.s32.totalorder %s133, %s134
      %p143 = scmp.eq.s32.totalorder %s18, 0
      %p144 = por %p142, %p143
      %p145 = scmp.ne.s32.totalorder %s133, %s134
      %p146 = scmp.eq.s32.totalorder %s19, 1
      %p147 = por %p145, %p146
      %p149 = scmp.ne.s32.totalorder %s134, %s148
      %p150 = scmp.eq.s32.totalorder %s19, 0
      %p151 = por %p149, %p150
      %s152 = ssub.s32 %s13, %s20
      %p153 = scmp.eq.s32.totalorder %s152, 0
      %s155 = sadd.s32 %s154, 1
      %s156 = scalar_select %p153, %s154, %s155
      %p159 = pneg %p153
      %p160 = scmp.eq.s32.totalorder %s13, 1
      %p161 = por %p159, %p160
      %p162 = scmp.ne.s32.totalorder %s154, %s157
      %p163 = scmp.eq.s32.totalorder %s13, 0
      %p164 = por %p162, %p163
      %p165 = scmp.ne.s32.totalorder %s154, %s157
      %p166 = scmp.eq.s32.totalorder %s18, 1
      %p167 = por %p165, %p166
      %p168 = scmp.ne.s32.totalorder %s157, %s158
      %p169 = scmp.eq.s32.totalorder %s18, 0
      %p170 = por %p168, %p169
      %p171 = scmp.ne.s32.totalorder %s157, %s158
      %p172 = scmp.eq.s32.totalorder %s19, 1
      %p173 = por %p171, %p172
      %p175 = scmp.ne.s32.totalorder %s158, %s174
      %p176 = scmp.eq.s32.totalorder %s19, 0
      %p177 = por %p175, %p176
      %p178 = scmp.le.s32.totalorder 1, %s13
      %p179 = scmp.lt.s32.totalorder %s13, 3
      %p180 = pnand %p178, %p179
      %p181 = pneg %p180
      // Predicated region
      $region9: #{conv_encoder_forward.1} parent=5 // pred_check
        _
      $region10: #{conv_encoder_forward.1} parent=5 // pred_check_branch
        %183 = sbr.rel (%p180) target = $region12
      $region11: #{conv_encoder_forward.1} parent=5 // pred_region
        %s184 = ssub.s32 %s13, 1
        // Predicated region
        $region13: #{conv_encoder_forward.1} parent=11 // pred_check
          %p185 = pneg %p60
        $region14: #{conv_encoder_forward.1} parent=11 // pred_check_branch
          %187 = sbr.rel (%p185) target = $region16
        $region15: #{conv_encoder_forward.1} parent=11 // pred_region
          %189 = vsyncadd [#allocation6], 0
          %s190 = sshll.u32 %s1, 4
          %s191 = int_to_ptr.hbm [resolvable:$true] %s190
          %s192 = sshll.u32 [#allocation5], 4
          %s193 = int_to_ptr.vmem [resolvable:$true] %s192
          %198 = dma.hbm_to_vmem [thread:$0]  %s191, 384, %s193, [#allocation6], 64, 64, 4
        $region16: #{conv_encoder_forward.1} parent=11 // pred_fallthru
          _
        // Predicated region
        $region17: #{conv_encoder_forward.1} parent=11 // pred_check
          %p199 = pneg %p81
        $region18: #{conv_encoder_forward.1} parent=11 // pred_check_branch
          %201 = sbr.rel (%p199) target = $region20
        $region19: #{conv_encoder_forward.1} parent=11 // pred_region
          _
        $region20: #{conv_encoder_forward.1} parent=11 // pred_fallthru
          _
        // Predicated region
        $region21: #{conv_encoder_forward.1} parent=11 // pred_check
          %p202 = pneg %p102
        $region22: #{conv_encoder_forward.1} parent=11 // pred_check_branch
          %204 = sbr.rel (%p202) target = $region24
        $region23: #{conv_encoder_forward.1} parent=11 // pred_region
          _
        $region24: #{conv_encoder_forward.1} parent=11 // pred_fallthru
          _
        // Predicated region
        $region25: #{conv_encoder_forward.1} parent=11 // pred_check
          %p205 = pneg %p123
        $region26: #{conv_encoder_forward.1} parent=11 // pred_check_branch
          %207 = sbr.rel (%p205) target = $region28
        $region27: #{conv_encoder_forward.1} parent=11 // pred_region
          _
        $region28: #{conv_encoder_forward.1} parent=11 // pred_fallthru
          _
        // Predicated region
        $region29: #{conv_encoder_forward.1} parent=11 // pred_check
          %p208 = pneg %p144
        $region30: #{conv_encoder_forward.1} parent=11 // pred_check_branch
          %210 = sbr.rel (%p208) target = $region32
        $region31: #{conv_encoder_forward.1} parent=11 // pred_region
          _
        $region32: #{conv_encoder_forward.1} parent=11 // pred_fallthru
          _
      $region12: #{conv_encoder_forward.1} parent=5 // pred_fallthru
        _
      %p211 = scmp.lt.s32.totalorder %s13, 2
      // Predicated region
      $region33: #{conv_encoder_forward.1} parent=5 // pred_check
        %p212 = pneg %p211
      $region34: #{conv_encoder_forward.1} parent=5 // pred_check_branch
        %214 = sbr.rel (%p212) target = $region36
      $region35: #{conv_encoder_forward.1} parent=5 // pred_region
        // Predicated region
        $region37: #{conv_encoder_forward.1} parent=35 // pred_check
          %p215 = pneg %p33
        $region38: #{conv_encoder_forward.1} parent=35 // pred_check_branch
          %217 = sbr.rel (%p215) target = $region40
        $region39: #{conv_encoder_forward.1} parent=35 // pred_region
          %p218 = scmp.lt.s32.totalorder %s13, 1
          %s219 = scalar_select %p218, %s13, 1
          %s220 = smul.addr %s219, 4
          %s221 = smul.addr %s220, 8
          %s222 = scalar_lea.vmem %s0, %s221
        $region40: #{conv_encoder_forward.1} parent=35 // pred_fallthru
          _
      $region36: #{conv_encoder_forward.1} parent=5 // pred_fallthru
        _
      %p223 = scmp.le.s32.totalorder 1, %s13
      %p224 = scmp.lt.s32.totalorder %s13, 3
      %p225 = pnand %p223, %p224
      %p226 = pneg %p225
      // Predicated region
      $region41: #{conv_encoder_forward.1} parent=5 // pred_check
        _
      $region42: #{conv_encoder_forward.1} parent=5 // pred_check_branch
        %228 = sbr.rel (%p225) target = $region44
      $region43: #{conv_encoder_forward.1} parent=5 // pred_region
        %s229 = ssub.s32 %s13, 1
        // Predicated region
        $region45: #{conv_encoder_forward.1} parent=43 // pred_check
          %p230 = pneg %p60
        $region46: #{conv_encoder_forward.1} parent=43 // pred_check_branch
          %232 = sbr.rel (%p230) target = $region48
        $region47: #{conv_encoder_forward.1} parent=43 // pred_region
          %234 = dma.done [#allocation6], 384
        $region48: #{conv_encoder_forward.1} parent=43 // pred_fallthru
          _
        %p235 = scmp.lt.s32.totalorder %s18, 1
        %s236 = scalar_select %p235, %s18, 1
        %s237 = smul.addr %s236, 4
        %s238 = smul.addr %s237, 8
        %s239 = scalar_lea.vmem %s0, %s238
        %p240 = pneg %p39
        %p241 = pneg %p36
        %p242 = pneg %p60
        %p243 = pneg %p57
        %p244 = pneg %p81
        %p245 = pneg %p78
        %p246 = pneg %p102
        %p247 = pneg %p99
        %p248 = pneg %p123
        %p249 = pneg %p120
        %p250 = pneg %p144
        %p251 = pneg %p141
        %p252 = pneg %p170
        %p253 = pneg %p167
        %p254 = scmp.lt.s32.totalorder %s18, 1
        %s255 = scalar_select %p254, %s18, 1
        %s256 = smul.addr %s255, 8
        %s257 = smul.addr %s256, 8
        %s258 = scalar_lea.vmem %s6, %s257
        %p259 = scmp.lt.s32.totalorder %s18, 1
        %s260 = scalar_select %p259, %s18, 1
        %s261 = smul.addr %s260, 4
        %s262 = smul.addr %s261, 8
        %s263 = scalar_lea.vmem %s0, %s262
        %p264 = scmp.lt.s32.totalorder %s18, 1
        %s265 = scalar_select %p264, %s18, 1
        %s266 = smul.addr %s265, 8
        %s267 = smul.addr %s266, 8
        %s268 = scalar_lea.vmem %s6, %s267
        %270 = vst [vmem:[#allocation2 + $0x8] sm:$0xf] 0
        %271 = vst [vmem:[#allocation2 + $0x14] sm:$0xf] 0
        %272 = vst [vmem:[#allocation2 + $0x20] sm:$0xf] 0
        %273 = vst [vmem:[#allocation2 + $0x2c] sm:$0xf] 0
        %274 = vst [vmem:[#allocation2 + $0x38] sm:$0xf] 0
        %275 = vst [vmem:[#allocation2 + $0x44] sm:$0xf] 0
        %276 = vst [vmem:[#allocation2 + $0x50] sm:$0xf] 0
        %277 = vst [vmem:[#allocation2 + $0x5c] sm:$0xf] 0
        %v278 = vld [vmem:[%s263] sm:$0xff]
        %v279 = vld [vmem:[%s263 + $0x8] sm:$0xff]
        %v280 = vld [vmem:[%s263 + $0x10] sm:$0xff]
        %v281 = vld [vmem:[%s263 + $0x18] sm:$0xff]
        %v282 = vpack.c.bf16 %v279, %v278
        %v283 = vpack.c.bf16 %v281, %v280
        %284 = vst [vmem:[#allocation2] sm:$0xff] %v282
        %285 = vst [vmem:[#allocation2 + $0xc] sm:$0xff] %v283
        %v286 = vld [vmem:[#allocation2] sm:$0xff]
        %v287 = vld [vmem:[#allocation2 + $0x8] sm:$0xf]
        %v288 = vld [vmem:[#allocation2 + $0xc] sm:$0xff]
        %v289 = vld [vmem:[#allocation2 + $0x14] sm:$0xf]
        %290 = vst [vmem:[#allocation3] sm:$0xff] %v286
        %vm291 = vcmask 519168
        %292 = vst.msk [vmem:[#allocation3 + $0x8] sm:$0xf] %vm291, %v287
        %293 = vst [vmem:[#allocation3 + $0xc] sm:$0xff] %v288
        %294 = vst.msk [vmem:[#allocation3 + $0x14] sm:$0xf] %vm291, %v289
        %v295 = vld [vmem:[#allocation2] sm:$0xff]
        %v296 = vld [vmem:[#allocation2 + $0x8] sm:$0xf]
        %v297 = vld [vmem:[#allocation2 + $0xc] sm:$0xff]
        %v298 = vld [vmem:[#allocation2 + $0x14] sm:$0xf]
        %303 = vrot.lane.b32.xlu0 %v295, 112
        %v304 = vpop.permute.xlu0 %303
        %305 = vrot.lane.b32.xlu0 %v296, 112
        %v306 = vpop.permute.xlu0 %305
        %307 = vrot.lane.b32.xlu0 %v297, 112
        %v308 = vpop.permute.xlu0 %307
        %309 = vrot.lane.b32.xlu0 %v298, 112
        %v310 = vpop.permute.xlu0 %309
        %v311 = vrot.slane %v304, 4
        %v312 = vrot.slane %v306, 4
        %v313 = vrot.slane %v308, 4
        %v314 = vrot.slane %v310, 4
        %vm315 = vcmask 1043456
        %v316 = vsel %vm315, %v311, %v312
        %vm317 = vcmask 916480
        %v318 = vsel %vm317, %v304, %v316
        %v319 = vsel %vm315, %v313, %v314
        %v320 = vsel %vm317, %v308, %v319
        %325 = vst [vmem:[#allocation3 + $0x18] sm:$0xff] %v318
        %326 = vst.msk [vmem:[#allocation3 + $0x20] sm:$0xf] %vm291, %v306
        %327 = vst [vmem:[#allocation3 + $0x24] sm:$0xff] %v320
        %328 = vst.msk [vmem:[#allocation3 + $0x2c] sm:$0xf] %vm291, %v310
        %v329 = vld [vmem:[#allocation2] sm:$0xff]
        %v330 = vld [vmem:[#allocation2 + $0x8] sm:$0xf]
        %v331 = vld [vmem:[#allocation2 + $0xc] sm:$0xff]
        %v332 = vld [vmem:[#allocation2 + $0x14] sm:$0xf]
        %337 = vrot.lane.b32.xlu0 %v329, 96
        %v338 = vpop.permute.xlu0 %337
        %339 = vrot.lane.b32.xlu0 %v330, 96
        %v340 = vpop.permute.xlu0 %339
        %341 = vrot.lane.b32.xlu0 %v331, 96
        %v342 = vpop.permute.xlu0 %341
        %343 = vrot.lane.b32.xlu0 %v332, 96
        %v344 = vpop.permute.xlu0 %343
        %v345 = vrot.slane %v338, 4
        %v346 = vrot.slane %v340, 4
        %v347 = vrot.slane %v342, 4
        %v348 = vrot.slane %v344, 4
        %v349 = vsel %vm315, %v345, %v346
        %vm350 = vcmask 785408
        %v351 = vsel %vm350, %v338, %v349
        %v352 = vsel %vm315, %v347, %v348
        %v353 = vsel %vm350, %v342, %v352
        %358 = vst [vmem:[#allocation3 + $0x30] sm:$0xff] %v351
        %359 = vst.msk [vmem:[#allocation3 + $0x38] sm:$0xf] %vm291, %v340
        %360 = vst [vmem:[#allocation3 + $0x3c] sm:$0xff] %v353
        %361 = vst.msk [vmem:[#allocation3 + $0x44] sm:$0xf] %vm291, %v344
        %v362 = vld [vmem:[#allocation5] sm:$0xf]
        %v363 = vld [vmem:[#allocation5 + $0x4] sm:$0xf]
        %v364 = vld [vmem:[#allocation3] sm:$0xff]
        %v365 = vld [vmem:[#allocation3 + $0xc] sm:$0xff]
        %v366 = vld [vmem:[#allocation3 + $0x18] sm:$0xff]
        %v367 = vld [vmem:[#allocation3 + $0x24] sm:$0xff]
        %v368 = vld [vmem:[#allocation3 + $0x30] sm:$0xff]
        %v369 = vld [vmem:[#allocation3 + $0x3c] sm:$0xff]
        %v372 = vunpack.c.l.b16 %v362
        %v373 = vunpack.c.l.b16 %v363
        %v374 = vpack.c.b16 %v373, %v372
        %v381 = vunpack.c.l.b16 %v364
        %v382 = vunpack.c.h.b16 %v364
        %v383 = vunpack.c.l.b16 %v365
        %v384 = vunpack.c.h.b16 %v365
        %v385 = vunpack.c.l.b16 %v366
        %v386 = vunpack.c.h.b16 %v366
        %v387 = vunpack.c.l.b16 %v367
        %v388 = vunpack.c.h.b16 %v367
        %v389 = vunpack.c.l.b16 %v368
        %v390 = vunpack.c.h.b16 %v368
        %v391 = vunpack.c.l.b16 %v369
        %v392 = vunpack.c.h.b16 %v369
        %v393 = vpack.c.b16 %v383, %v381
        %v394 = vpack.c.b16 %v384, %v382
        %v395 = vpack.c.b16 %v387, %v385
        %v396 = vpack.c.b16 %v388, %v386
        %v397 = vpack.c.b16 %v391, %v389
        %v398 = vpack.c.b16 %v392, %v390
        %vm405 = vcmask 392192
        %v407 = vsel %vm405, %v374, 0
        %409 = vmatpush.bf16.msra.mxu0 0
        %410 = vmatpush.bf16.msra.mxu0 0
        %411 = vmatpush.bf16.msra.mxu0 0
        %412 = vmatpush.bf16.msra.mxu0 0
        %413 = vmatpush.bf16.msra.mxu0 0
        %414 = vmatpush.bf16.msra.mxu0 %v397
        %415 = vmatpush.bf16.msra.mxu0 %v395
        %416 = vmatpush.bf16.msra.mxu0 %v393
        %417 = vmatmul.bf16.gmra.mxu0 %v407
        %v418 = vpop.f32.mrf.mxu0
        %v419 = vadd.f32 0.0, %v418
        %v420 = vpop.f32.mrf.mxu0
        %v421 = vadd.f32 0.0, %v420
        %422 = vdwg.mxu0
        %423 = vmatpush.bf16.msra.mxu0 0
        %424 = vmatpush.bf16.msra.mxu0 0
        %425 = vmatpush.bf16.msra.mxu0 0
        %426 = vmatpush.bf16.msra.mxu0 0
        %427 = vmatpush.bf16.msra.mxu0 0
        %428 = vmatpush.bf16.msra.mxu0 %v398
        %429 = vmatpush.bf16.msra.mxu0 %v396
        %430 = vmatpush.bf16.msra.mxu0 %v394
        %431 = vmatmul.bf16.gmra.mxu0 %v407
        %v432 = vpop.f32.mrf.mxu0
        %v433 = vadd.f32 0.0, %v432
        %v434 = vpop.f32.mrf.mxu0
        %v435 = vadd.f32 0.0, %v434
        %436 = vdwg.mxu0
        %437 = vst [vmem:[#allocation4] sm:$0xff] %v419
        %438 = vst [vmem:[#allocation4 + $0x8] sm:$0xff] %v433
        %439 = vst [vmem:[#allocation4 + $0x10] sm:$0xff] %v421
        %440 = vst [vmem:[#allocation4 + $0x18] sm:$0xff] %v435
        %s441 = scalar_lea.vmem [#allocation5], 8
        %v442 = vld [vmem:[%s441] sm:$0xf]
        %v443 = vld [vmem:[%s441 + $0x4] sm:$0xf]
        %v444 = vld [vmem:[#allocation3] sm:$0xff]
        %v445 = vld [vmem:[#allocation3 + $0x8] sm:$0xf]
        %v446 = vld [vmem:[#allocation3 + $0xc] sm:$0xff]
        %v447 = vld [vmem:[#allocation3 + $0x14] sm:$0xf]
        %v448 = vld [vmem:[#allocation3 + $0x18] sm:$0xff]
        %v449 = vld [vmem:[#allocation3 + $0x20] sm:$0xf]
        %v450 = vld [vmem:[#allocation3 + $0x24] sm:$0xff]
        %v451 = vld [vmem:[#allocation3 + $0x2c] sm:$0xf]
        %v452 = vld [vmem:[#allocation3 + $0x30] sm:$0xff]
        %v453 = vld [vmem:[#allocation3 + $0x38] sm:$0xf]
        %v454 = vld [vmem:[#allocation3 + $0x3c] sm:$0xff]
        %v455 = vld [vmem:[#allocation3 + $0x44] sm:$0xf]
        %v458 = vunpack.c.l.b16 %v442
        %v459 = vunpack.c.l.b16 %v443
        %v460 = vpack.c.b16 %v459, %v458
        %v473 = vunpack.c.l.b16 %v444
        %v474 = vunpack.c.h.b16 %v444
        %v475 = vunpack.c.l.b16 %v445
        %v476 = vunpack.c.l.b16 %v446
        %v477 = vunpack.c.h.b16 %v446
        %v478 = vunpack.c.l.b16 %v447
        %v479 = vunpack.c.l.b16 %v448
        %v480 = vunpack.c.h.b16 %v448
        %v481 = vunpack.c.l.b16 %v449
        %v482 = vunpack.c.l.b16 %v450
        %v483 = vunpack.c.h.b16 %v450
        %v484 = vunpack.c.l.b16 %v451
        %v485 = vunpack.c.l.b16 %v452
        %v486 = vunpack.c.h.b16 %v452
        %v487 = vunpack.c.l.b16 %v453
        %v488 = vunpack.c.l.b16 %v454
        %v489 = vunpack.c.h.b16 %v454
        %v490 = vunpack.c.l.b16 %v455
        %v491 = vpack.c.b16 %v476, %v473
        %v492 = vpack.c.b16 %v477, %v474
        %v493 = vpack.c.b16 %v478, %v475
        %v494 = vpack.c.b16 %v482, %v479
        %v495 = vpack.c.b16 %v483, %v480
        %v496 = vpack.c.b16 %v484, %v481
        %v497 = vpack.c.b16 %v488, %v485
        %v498 = vpack.c.b16 %v489, %v486
        %v499 = vpack.c.b16 %v490, %v487
        %500 = vrot.lane.b32.xlu0 %v491, 127
        %v501 = vpop.permute.xlu0 %500
        %502 = vrot.lane.b32.xlu0 %v492, 127
        %v503 = vpop.permute.xlu0 %502
        %504 = vrot.lane.b32.xlu0 %v493, 127
        %v505 = vpop.permute.xlu0 %504
        %506 = vrot.lane.b32.xlu0 %v494, 127
        %v507 = vpop.permute.xlu0 %506
        %508 = vrot.lane.b32.xlu0 %v495, 127
        %v509 = vpop.permute.xlu0 %508
        %510 = vrot.lane.b32.xlu0 %v496, 127
        %v511 = vpop.permute.xlu0 %510
        %512 = vrot.lane.b32.xlu0 %v497, 127
        %v513 = vpop.permute.xlu0 %512
        %514 = vrot.lane.b32.xlu0 %v498, 127
        %v515 = vpop.permute.xlu0 %514
        %516 = vrot.lane.b32.xlu0 %v499, 127
        %v517 = vpop.permute.xlu0 %516
        %vm518 = vcmask 1039360
        %v519 = vsel %vm518, %v501, %v503
        %v520 = vsel %vm518, %v503, %v505
        %v521 = vsel %vm518, %v507, %v509
        %v522 = vsel %vm518, %v509, %v511
        %v523 = vsel %vm518, %v513, %v515
        %v524 = vsel %vm518, %v515, %v517
        %v532 = vsel %vm405, %v460, 0
        %534 = vmatpush.bf16.msra.mxu0 0
        %535 = vmatpush.bf16.msra.mxu0 0
        %536 = vmatpush.bf16.msra.mxu0 0
        %537 = vmatpush.bf16.msra.mxu0 0
        %538 = vmatpush.bf16.msra.mxu0 0
        %539 = vmatpush.bf16.msra.mxu0 %v523
        %540 = vmatpush.bf16.msra.mxu0 %v521
        %541 = vmatpush.bf16.msra.mxu0 %v519
        %542 = vmatmul.bf16.gmra.mxu0 %v532
        %v543 = vpop.f32.mrf.mxu0
        %v544 = vadd.f32 0.0, %v543
        %v545 = vpop.f32.mrf.mxu0
        %v546 = vadd.f32 0.0, %v545
        %547 = vdwg.mxu0
        %548 = vmatpush.bf16.msra.mxu0 0
        %549 = vmatpush.bf16.msra.mxu0 0
        %550 = vmatpush.bf16.msra.mxu0 0
        %551 = vmatpush.bf16.msra.mxu0 0
        %552 = vmatpush.bf16.msra.mxu0 0
        %553 = vmatpush.bf16.msra.mxu0 %v524
        %554 = vmatpush.bf16.msra.mxu0 %v522
        %555 = vmatpush.bf16.msra.mxu0 %v520
        %556 = vmatmul.bf16.gmra.mxu0 %v532
        %v557 = vpop.f32.mrf.mxu0
        %v558 = vadd.f32 0.0, %v557
        %v559 = vpop.f32.mrf.mxu0
        %v560 = vadd.f32 0.0, %v559
        %561 = vdwg.mxu0
        %v562 = vld [vmem:[#allocation4] sm:$0xff]
        %v563 = vld [vmem:[#allocation4 + $0x8] sm:$0xff]
        %v564 = vld [vmem:[#allocation4 + $0x10] sm:$0xff]
        %v565 = vld [vmem:[#allocation4 + $0x18] sm:$0xff]
        %v566 = vadd.f32 %v562, %v544
        %v567 = vadd.f32 %v563, %v558
        %v568 = vadd.f32 %v564, %v546
        %v569 = vadd.f32 %v565, %v560
        %570 = vst [vmem:[#allocation4] sm:$0xff] %v566
        %571 = vst [vmem:[#allocation4 + $0x8] sm:$0xff] %v567
        %572 = vst [vmem:[#allocation4 + $0x10] sm:$0xff] %v568
        %573 = vst [vmem:[#allocation4 + $0x18] sm:$0xff] %v569
        %s574 = scalar_lea.vmem [#allocation5], 16
        %v575 = vld [vmem:[%s574] sm:$0xf]
        %v576 = vld [vmem:[%s574 + $0x4] sm:$0xf]
        %v577 = vld [vmem:[#allocation3] sm:$0xff]
        %v578 = vld [vmem:[#allocation3 + $0x8] sm:$0xf]
        %v579 = vld [vmem:[#allocation3 + $0xc] sm:$0xff]
        %v580 = vld [vmem:[#allocation3 + $0x14] sm:$0xf]
        %v581 = vld [vmem:[#allocation3 + $0x18] sm:$0xff]
        %v582 = vld [vmem:[#allocation3 + $0x20] sm:$0xf]
        %v583 = vld [vmem:[#allocation3 + $0x24] sm:$0xff]
        %v584 = vld [vmem:[#allocation3 + $0x2c] sm:$0xf]
        %v585 = vld [vmem:[#allocation3 + $0x30] sm:$0xff]
        %v586 = vld [vmem:[#allocation3 + $0x38] sm:$0xf]
        %v587 = vld [vmem:[#allocation3 + $0x3c] sm:$0xff]
        %v588 = vld [vmem:[#allocation3 + $0x44] sm:$0xf]
        %v591 = vunpack.c.l.b16 %v575
        %v592 = vunpack.c.l.b16 %v576
        %v593 = vpack.c.b16 %v592, %v591
        %v606 = vunpack.c.l.b16 %v577
        %v607 = vunpack.c.h.b16 %v577
        %v608 = vunpack.c.l.b16 %v578
        %v609 = vunpack.c.l.b16 %v579
        %v610 = vunpack.c.h.b16 %v579
        %v611 = vunpack.c.l.b16 %v580
        %v612 = vunpack.c.l.b16 %v581
        %v613 = vunpack.c.h.b16 %v581
        %v614 = vunpack.c.l.b16 %v582
        %v615 = vunpack.c.l.b16 %v583
        %v616 = vunpack.c.h.b16 %v583
        %v617 = vunpack.c.l.b16 %v584
        %v618 = vunpack.c.l.b16 %v585
        %v619 = vunpack.c.h.b16 %v585
        %v620 = vunpack.c.l.b16 %v586
        %v621 = vunpack.c.l.b16 %v587
        %v622 = vunpack.c.h.b16 %v587
        %v623 = vunpack.c.l.b16 %v588
        %v624 = vpack.c.b16 %v609, %v606
        %v625 = vpack.c.b16 %v610, %v607
        %v626 = vpack.c.b16 %v611, %v608
        %v627 = vpack.c.b16 %v615, %v612
        %v628 = vpack.c.b16 %v616, %v613
        %v629 = vpack.c.b16 %v617, %v614
        %v630 = vpack.c.b16 %v621, %v618
        %v631 = vpack.c.b16 %v622, %v619
        %v632 = vpack.c.b16 %v623, %v620
        %633 = vrot.lane.b32.xlu0 %v624, 126
        %v634 = vpop.permute.xlu0 %633
        %635 = vrot.lane.b32.xlu0 %v625, 126
        %v636 = vpop.permute.xlu0 %635
        %637 = vrot.lane.b32.xlu0 %v626, 126
        %v638 = vpop.permute.xlu0 %637
        %639 = vrot.lane.b32.xlu0 %v627, 126
        %v640 = vpop.permute.xlu0 %639
        %641 = vrot.lane.b32.xlu0 %v628, 126
        %v642 = vpop.permute.xlu0 %641
        %643 = vrot.lane.b32.xlu0 %v629, 126
        %v644 = vpop.permute.xlu0 %643
        %645 = vrot.lane.b32.xlu0 %v630, 126
        %v646 = vpop.permute.xlu0 %645
        %647 = vrot.lane.b32.xlu0 %v631, 126
        %v648 = vpop.permute.xlu0 %647
        %649 = vrot.lane.b32.xlu0 %v632, 126
        %v650 = vpop.permute.xlu0 %649
        %vm651 = vcmask 1031168
        %v652 = vsel %vm651, %v634, %v636
        %v653 = vsel %vm651, %v636, %v638
        %v654 = vsel %vm651, %v640, %v642
        %v655 = vsel %vm651, %v642, %v644
        %v656 = vsel %vm651, %v646, %v648
        %v657 = vsel %vm651, %v648, %v650
        %v665 = vsel %vm405, %v593, 0
        %667 = vmatpush.bf16.msra.mxu0 0
        %668 = vmatpush.bf16.msra.mxu0 0
        %669 = vmatpush.bf16.msra.mxu0 0
        %670 = vmatpush.bf16.msra.mxu0 0
        %671 = vmatpush.bf16.msra.mxu0 0
        %672 = vmatpush.bf16.msra.mxu0 %v656
        %673 = vmatpush.bf16.msra.mxu0 %v654
        %674 = vmatpush.bf16.msra.mxu0 %v652
        %675 = vmatmul.bf16.gmra.mxu0 %v665
        %v676 = vpop.f32.mrf.mxu0
        %v677 = vadd.f32 0.0, %v676
        %v678 = vpop.f32.mrf.mxu0
        %v679 = vadd.f32 0.0, %v678
        %680 = vdwg.mxu0
        %681 = vmatpush.bf16.msra.mxu0 0
        %682 = vmatpush.bf16.msra.mxu0 0
        %683 = vmatpush.bf16.msra.mxu0 0
        %684 = vmatpush.bf16.msra.mxu0 0
        %685 = vmatpush.bf16.msra.mxu0 0
        %686 = vmatpush.bf16.msra.mxu0 %v657
        %687 = vmatpush.bf16.msra.mxu0 %v655
        %688 = vmatpush.bf16.msra.mxu0 %v653
        %689 = vmatmul.bf16.gmra.mxu0 %v665
        %v690 = vpop.f32.mrf.mxu0
        %v691 = vadd.f32 0.0, %v690
        %v692 = vpop.f32.mrf.mxu0
        %v693 = vadd.f32 0.0, %v692
        %694 = vdwg.mxu0
        %v695 = vld [vmem:[#allocation4] sm:$0xff]
        %v696 = vld [vmem:[#allocation4 + $0x8] sm:$0xff]
        %v697 = vld [vmem:[#allocation4 + $0x10] sm:$0xff]
        %v698 = vld [vmem:[#allocation4 + $0x18] sm:$0xff]
        %v699 = vadd.f32 %v695, %v677
        %v700 = vadd.f32 %v696, %v691
        %v701 = vadd.f32 %v697, %v679
        %v702 = vadd.f32 %v698, %v693
        %703 = vst [vmem:[#allocation4] sm:$0xff] %v699
        %704 = vst [vmem:[#allocation4 + $0x8] sm:$0xff] %v700
        %705 = vst [vmem:[#allocation4 + $0x10] sm:$0xff] %v701
        %706 = vst [vmem:[#allocation4 + $0x18] sm:$0xff] %v702
        %v707 = vld [vmem:[#allocation4] sm:$0xff]
        %v708 = vld [vmem:[#allocation4 + $0x8] sm:$0xff]
        %v709 = vld [vmem:[#allocation4 + $0x10] sm:$0xff]
        %v710 = vld [vmem:[#allocation4 + $0x18] sm:$0xff]
        %v711 = vld [vmem:[%s5] sm:$0xff]
        %v712 = vld [vmem:[%s5 + $0x8] sm:$0xff]
        %714 = vset.pattern.permute.xlu0 0
        %715 = vperm.xlu0 %714, %v711
        %v716 = vpop.permute.xlu0 %715
        %719 = vset.pattern.permute.xlu0 0
        %720 = vperm.xlu0 %719, %v712
        %v721 = vpop.permute.xlu0 %720
        %v723 = vadd.f32 %v707, %v716
        %v724 = vadd.f32 %v708, %v716
        %v725 = vadd.f32 %v709, %v721
        %v726 = vadd.f32 %v710, %v721
        %v727 = vmax.f32 %v723, 0.0
        %v728 = vmax.f32 %v724, 0.0
        %v729 = vmax.f32 %v725, 0.0
        %v730 = vmax.f32 %v726, 0.0
        %v731 = vpack.c.bf16 %v728, %v727
        %v732 = vpack.c.bf16 %v730, %v729
        %733 = vst [vmem:[#allocation2] sm:$0xff] %v731
        %734 = vst [vmem:[#allocation2 + $0xc] sm:$0xff] %v732
        %v735 = vld [vmem:[#allocation2] sm:$0xff]
        %v736 = vld [vmem:[#allocation2 + $0x8] sm:$0xf]
        %v737 = vld [vmem:[#allocation2 + $0xc] sm:$0xff]
        %v738 = vld [vmem:[#allocation2 + $0x14] sm:$0xf]
        %739 = vst [vmem:[#allocation3] sm:$0xff] %v735
        %740 = vst.msk [vmem:[#allocation3 + $0x8] sm:$0xf] %vm291, %v736
        %741 = vst [vmem:[#allocation3 + $0xc] sm:$0xff] %v737
        %742 = vst.msk [vmem:[#allocation3 + $0x14] sm:$0xf] %vm291, %v738
        %v743 = vld [vmem:[#allocation2] sm:$0xff]
        %v744 = vld [vmem:[#allocation2 + $0x8] sm:$0xf]
        %v745 = vld [vmem:[#allocation2 + $0xc] sm:$0xff]
        %v746 = vld [vmem:[#allocation2 + $0x14] sm:$0xf]
        %751 = vrot.lane.b32.xlu0 %v743, 112
        %v752 = vpop.permute.xlu0 %751
        %753 = vrot.lane.b32.xlu0 %v744, 112
        %v754 = vpop.permute.xlu0 %753
        %755 = vrot.lane.b32.xlu0 %v745, 112
        %v756 = vpop.permute.xlu0 %755
        %757 = vrot.lane.b32.xlu0 %v746, 112
        %v758 = vpop.permute.xlu0 %757
        %v759 = vrot.slane %v752, 4
        %v760 = vrot.slane %v754, 4
        %v761 = vrot.slane %v756, 4
        %v762 = vrot.slane %v758, 4
        %v763 = vsel %vm315, %v759, %v760
        %v764 = vsel %vm317, %v752, %v763
        %v765 = vsel %vm315, %v761, %v762
        %v766 = vsel %vm317, %v756, %v765
        %771 = vst [vmem:[#allocation3 + $0x18] sm:$0xff] %v764
        %772 = vst.msk [vmem:[#allocation3 + $0x20] sm:$0xf] %vm291, %v754
        %773 = vst [vmem:[#allocation3 + $0x24] sm:$0xff] %v766
        %774 = vst.msk [vmem:[#allocation3 + $0x2c] sm:$0xf] %vm291, %v758
        %v775 = vld [vmem:[#allocation2] sm:$0xff]
        %v776 = vld [vmem:[#allocation2 + $0x8] sm:$0xf]
        %v777 = vld [vmem:[#allocation2 + $0xc] sm:$0xff]
        %v778 = vld [vmem:[#allocation2 + $0x14] sm:$0xf]
        %783 = vrot.lane.b32.xlu0 %v775, 96
        %v784 = vpop.permute.xlu0 %783
        %785 = vrot.lane.b32.xlu0 %v776, 96
        %v786 = vpop.permute.xlu0 %785
        %787 = vrot.lane.b32.xlu0 %v777, 96
        %v788 = vpop.permute.xlu0 %787
        %789 = vrot.lane.b32.xlu0 %v778, 96
        %v790 = vpop.permute.xlu0 %789
        %v791 = vrot.slane %v784, 4
        %v792 = vrot.slane %v786, 4
        %v793 = vrot.slane %v788, 4
        %v794 = vrot.slane %v790, 4
        %v795 = vsel %vm315, %v791, %v792
        %v796 = vsel %vm350, %v784, %v795
        %v797 = vsel %vm315, %v793, %v794
        %v798 = vsel %vm350, %v788, %v797
        %803 = vst [vmem:[#allocation3 + $0x30] sm:$0xff] %v796
        %804 = vst.msk [vmem:[#allocation3 + $0x38] sm:$0xf] %vm291, %v786
        %805 = vst [vmem:[#allocation3 + $0x3c] sm:$0xff] %v798
        %806 = vst.msk [vmem:[#allocation3 + $0x44] sm:$0xf] %vm291, %v790
        %v807 = vld [vmem:[%s2] sm:$0xf]
        %v808 = vld [vmem:[%s2 + $0x4] sm:$0xf]
        %v809 = vld [vmem:[%s2 + $0x8] sm:$0xf]
        %v810 = vld [vmem:[%s2 + $0xc] sm:$0xf]
        %v811 = vld [vmem:[#allocation3] sm:$0xff]
        %v812 = vld [vmem:[#allocation3 + $0xc] sm:$0xff]
        %v813 = vld [vmem:[#allocation3 + $0x18] sm:$0xff]
        %v814 = vld [vmem:[#allocation3 + $0x24] sm:$0xff]
        %v815 = vld [vmem:[#allocation3 + $0x30] sm:$0xff]
        %v816 = vld [vmem:[#allocation3 + $0x3c] sm:$0xff]
        %v821 = vunpack.c.l.b16 %v807
        %v822 = vunpack.c.l.b16 %v808
        %v823 = vunpack.c.l.b16 %v809
        %v824 = vunpack.c.l.b16 %v810
        %v825 = vpack.c.b16 %v822, %v821
        %v826 = vpack.c.b16 %v824, %v823
        %v833 = vunpack.c.l.b16 %v811
        %v834 = vunpack.c.h.b16 %v811
        %v835 = vunpack.c.l.b16 %v812
        %v836 = vunpack.c.h.b16 %v812
        %v837 = vunpack.c.l.b16 %v813
        %v838 = vunpack.c.h.b16 %v813
        %v839 = vunpack.c.l.b16 %v814
        %v840 = vunpack.c.h.b16 %v814
        %v841 = vunpack.c.l.b16 %v815
        %v842 = vunpack.c.h.b16 %v815
        %v843 = vunpack.c.l.b16 %v816
        %v844 = vunpack.c.h.b16 %v816
        %v845 = vpack.c.b16 %v835, %v833
        %v846 = vpack.c.b16 %v836, %v834
        %v847 = vpack.c.b16 %v839, %v837
        %v848 = vpack.c.b16 %v840, %v838
        %v849 = vpack.c.b16 %v843, %v841
        %v850 = vpack.c.b16 %v844, %v842
        %v858 = vsel %vm405, %v825, 0
        %v861 = vsel %vm405, %v826, 0
        %863 = vmatpush.bf16.msra.mxu0 0
        %864 = vmatpush.bf16.msra.mxu0 0
        %865 = vmatpush.bf16.msra.mxu0 0
        %866 = vmatpush.bf16.msra.mxu0 0
        %867 = vmatpush.bf16.msra.mxu0 0
        %868 = vmatpush.bf16.msra.mxu0 %v849
        %869 = vmatpush.bf16.msra.mxu0 %v847
        %870 = vmatpush.bf16.msra.mxu0 %v845
        %871 = vmatmul.bf16.gmra.mxu0 %v858
        %v872 = vpop.f32.mrf.mxu0
        %v873 = vadd.f32 0.0, %v872
        %v874 = vpop.f32.mrf.mxu0
        %v875 = vadd.f32 0.0, %v874
        %876 = vmatmul.bf16.gmra.mxu0 %v861
        %v877 = vpop.f32.mrf.mxu0
        %v878 = vadd.f32 0.0, %v877
        %v879 = vpop.f32.mrf.mxu0
        %v880 = vadd.f32 0.0, %v879
        %881 = vdwg.mxu0
        %882 = vmatpush.bf16.msra.mxu0 0
        %883 = vmatpush.bf16.msra.mxu0 0
        %884 = vmatpush.bf16.msra.mxu0 0
        %885 = vmatpush.bf16.msra.mxu0 0
        %886 = vmatpush.bf16.msra.mxu0 0
        %887 = vmatpush.bf16.msra.mxu0 %v850
        %888 = vmatpush.bf16.msra.mxu0 %v848
        %889 = vmatpush.bf16.msra.mxu0 %v846
        %890 = vmatmul.bf16.gmra.mxu0 %v858
        %v891 = vpop.f32.mrf.mxu0
        %v892 = vadd.f32 0.0, %v891
        %v893 = vpop.f32.mrf.mxu0
        %v894 = vadd.f32 0.0, %v893
        %895 = vmatmul.bf16.gmra.mxu0 %v861
        %v896 = vpop.f32.mrf.mxu0
        %v897 = vadd.f32 0.0, %v896
        %v898 = vpop.f32.mrf.mxu0
        %v899 = vadd.f32 0.0, %v898
        %900 = vdwg.mxu0
        %901 = vst [vmem:[#allocation4] sm:$0xff] %v873
        %902 = vst [vmem:[#allocation4 + $0x8] sm:$0xff] %v892
        %903 = vst [vmem:[#allocation4 + $0x10] sm:$0xff] %v875
        %904 = vst [vmem:[#allocation4 + $0x18] sm:$0xff] %v894
        %905 = vst [vmem:[#allocation4 + $0x20] sm:$0xff] %v878
        %906 = vst [vmem:[#allocation4 + $0x28] sm:$0xff] %v897
        %907 = vst [vmem:[#allocation4 + $0x30] sm:$0xff] %v880
        %908 = vst [vmem:[#allocation4 + $0x38] sm:$0xff] %v899
        %s909 = scalar_lea.vmem %s2, 16
        %v910 = vld [vmem:[%s909] sm:$0xf]
        %v911 = vld [vmem:[%s909 + $0x4] sm:$0xf]
        %v912 = vld [vmem:[%s909 + $0x8] sm:$0xf]
        %v913 = vld [vmem:[%s909 + $0xc] sm:$0xf]
        %v914 = vld [vmem:[#allocation3] sm:$0xff]
        %v915 = vld [vmem:[#allocation3 + $0x8] sm:$0xf]
        %v916 = vld [vmem:[#allocation3 + $0xc] sm:$0xff]
        %v917 = vld [vmem:[#allocation3 + $0x14] sm:$0xf]
        %v918 = vld [vmem:[#allocation3 + $0x18] sm:$0xff]
        %v919 = vld [vmem:[#allocation3 + $0x20] sm:$0xf]
        %v920 = vld [vmem:[#allocation3 + $0x24] sm:$0xff]
        %v921 = vld [vmem:[#allocation3 + $0x2c] sm:$0xf]
        %v922 = vld [vmem:[#allocation3 + $0x30] sm:$0xff]
        %v923 = vld [vmem:[#allocation3 + $0x38] sm:$0xf]
        %v924 = vld [vmem:[#allocation3 + $0x3c] sm:$0xff]
        %v925 = vld [vmem:[#allocation3 + $0x44] sm:$0xf]
        %v930 = vunpack.c.l.b16 %v910
        %v931 = vunpack.c.l.b16 %v911
        %v932 = vunpack.c.l.b16 %v912
        %v933 = vunpack.c.l.b16 %v913
        %v934 = vpack.c.b16 %v931, %v930
        %v935 = vpack.c.b16 %v933, %v932
        %v948 = vunpack.c.l.b16 %v914
        %v949 = vunpack.c.h.b16 %v914
        %v950 = vunpack.c.l.b16 %v915
        %v951 = vunpack.c.l.b16 %v916
        %v952 = vunpack.c.h.b16 %v916
        %v953 = vunpack.c.l.b16 %v917
        %v954 = vunpack.c.l.b16 %v918
        %v955 = vunpack.c.h.b16 %v918
        %v956 = vunpack.c.l.b16 %v919
        %v957 = vunpack.c.l.b16 %v920
        %v958 = vunpack.c.h.b16 %v920
        %v959 = vunpack.c.l.b16 %v921
        %v960 = vunpack.c.l.b16 %v922
        %v961 = vunpack.c.h.b16 %v922
        %v962 = vunpack.c.l.b16 %v923
        %v963 = vunpack.c.l.b16 %v924
        %v964 = vunpack.c.h.b16 %v924
        %v965 = vunpack.c.l.b16 %v925
        %v966 = vpack.c.b16 %v951, %v948
        %v967 = vpack.c.b16 %v952, %v949
        %v968 = vpack.c.b16 %v953, %v950
        %v969 = vpack.c.b16 %v957, %v954
        %v970 = vpack.c.b16 %v958, %v955
        %v971 = vpack.c.b16 %v959, %v956
        %v972 = vpack.c.b16 %v963, %v960
        %v973 = vpack.c.b16 %v964, %v961
        %v974 = vpack.c.b16 %v965, %v962
        %975 = vrot.lane.b32.xlu0 %v966, 127
        %v976 = vpop.permute.xlu0 %975
        %977 = vrot.lane.b32.xlu0 %v967, 127
        %v978 = vpop.permute.xlu0 %977
        %979 = vrot.lane.b32.xlu0 %v968, 127
        %v980 = vpop.permute.xlu0 %979
        %981 = vrot.lane.b32.xlu0 %v969, 127
        %v982 = vpop.permute.xlu0 %981
        %983 = vrot.lane.b32.xlu0 %v970, 127
        %v984 = vpop.permute.xlu0 %983
        %985 = vrot.lane.b32.xlu0 %v971, 127
        %v986 = vpop.permute.xlu0 %985
        %987 = vrot.lane.b32.xlu0 %v972, 127
        %v988 = vpop.permute.xlu0 %987
        %989 = vrot.lane.b32.xlu0 %v973, 127
        %v990 = vpop.permute.xlu0 %989
        %991 = vrot.lane.b32.xlu0 %v974, 127
        %v992 = vpop.permute.xlu0 %991
        %v993 = vsel %vm518, %v976, %v978
        %v994 = vsel %vm518, %v978, %v980
        %v995 = vsel %vm518, %v982, %v984
        %v996 = vsel %vm518, %v984, %v986
        %v997 = vsel %vm518, %v988, %v990
        %v998 = vsel %vm518, %v990, %v992
        %v1006 = vsel %vm405, %v934, 0
        %v1009 = vsel %vm405, %v935, 0
        %1011 = vmatpush.bf16.msra.mxu0 0
        %1012 = vmatpush.bf16.msra.mxu0 0
        %1013 = vmatpush.bf16.msra.mxu0 0
        %1014 = vmatpush.bf16.msra.mxu0 0
        %1015 = vmatpush.bf16.msra.mxu0 0
        %1016 = vmatpush.bf16.msra.mxu0 %v997
        %1017 = vmatpush.bf16.msra.mxu0 %v995
        %1018 = vmatpush.bf16.msra.mxu0 %v993
        %1019 = vmatmul.bf16.gmra.mxu0 %v1006
        %v1020 = vpop.f32.mrf.mxu0
        %v1021 = vadd.f32 0.0, %v1020
        %v1022 = vpop.f32.mrf.mxu0
        %v1023 = vadd.f32 0.0, %v1022
        %1024 = vmatmul.bf16.gmra.mxu0 %v1009
        %v1025 = vpop.f32.mrf.mxu0
        %v1026 = vadd.f32 0.0, %v1025
        %v1027 = vpop.f32.mrf.mxu0
        %v1028 = vadd.f32 0.0, %v1027
        %1029 = vdwg.mxu0
        %1030 = vmatpush.bf16.msra.mxu0 0
        %1031 = vmatpush.bf16.msra.mxu0 0
        %1032 = vmatpush.bf16.msra.mxu0 0
        %1033 = vmatpush.bf16.msra.mxu0 0
        %1034 = vmatpush.bf16.msra.mxu0 0
        %1035 = vmatpush.bf16.msra.mxu0 %v998
        %1036 = vmatpush.bf16.msra.mxu0 %v996
        %1037 = vmatpush.bf16.msra.mxu0 %v994
        %1038 = vmatmul.bf16.gmra.mxu0 %v1006
        %v1039 = vpop.f32.mrf.mxu0
        %v1040 = vadd.f32 0.0, %v1039
        %v1041 = vpop.f32.mrf.mxu0
        %v1042 = vadd.f32 0.0, %v1041
        %1043 = vmatmul.bf16.gmra.mxu0 %v1009
        %v1044 = vpop.f32.mrf.mxu0
        %v1045 = vadd.f32 0.0, %v1044
        %v1046 = vpop.f32.mrf.mxu0
        %v1047 = vadd.f32 0.0, %v1046
        %1048 = vdwg.mxu0
        %v1049 = vld [vmem:[#allocation4] sm:$0xff]
        %v1050 = vld [vmem:[#allocation4 + $0x8] sm:$0xff]
        %v1051 = vld [vmem:[#allocation4 + $0x10] sm:$0xff]
        %v1052 = vld [vmem:[#allocation4 + $0x18] sm:$0xff]
        %v1053 = vld [vmem:[#allocation4 + $0x20] sm:$0xff]
        %v1054 = vld [vmem:[#allocation4 + $0x28] sm:$0xff]
        %v1055 = vld [vmem:[#allocation4 + $0x30] sm:$0xff]
        %v1056 = vld [vmem:[#allocation4 + $0x38] sm:$0xff]
        %v1057 = vadd.f32 %v1049, %v1021
        %v1058 = vadd.f32 %v1050, %v1040
        %v1059 = vadd.f32 %v1051, %v1023
        %v1060 = vadd.f32 %v1052, %v1042
        %v1061 = vadd.f32 %v1053, %v1026
        %v1062 = vadd.f32 %v1054, %v1045
        %v1063 = vadd.f32 %v1055, %v1028
        %v1064 = vadd.f32 %v1056, %v1047
        %1065 = vst [vmem:[#allocation4] sm:$0xff] %v1057
        %1066 = vst [vmem:[#allocation4 + $0x8] sm:$0xff] %v1058
        %1067 = vst [vmem:[#allocation4 + $0x10] sm:$0xff] %v1059
        %1068 = vst [vmem:[#allocation4 + $0x18] sm:$0xff] %v1060
        %1069 = vst [vmem:[#allocation4 + $0x20] sm:$0xff] %v1061
        %1070 = vst [vmem:[#allocation4 + $0x28] sm:$0xff] %v1062
        %1071 = vst [vmem:[#allocation4 + $0x30] sm:$0xff] %v1063
        %1072 = vst [vmem:[#allocation4 + $0x38] sm:$0xff] %v1064
        %s1073 = scalar_lea.vmem %s2, 32
        %v1074 = vld [vmem:[%s1073] sm:$0xf]
        %v1075 = vld [vmem:[%s1073 + $0x4] sm:$0xf]
        %v1076 = vld [vmem:[%s1073 + $0x8] sm:$0xf]
        %v1077 = vld [vmem:[%s1073 + $0xc] sm:$0xf]
        %v1078 = vld [vmem:[#allocation3] sm:$0xff]
        %v1079 = vld [vmem:[#allocation3 + $0x8] sm:$0xf]
        %v1080 = vld [vmem:[#allocation3 + $0xc] sm:$0xff]
        %v1081 = vld [vmem:[#allocation3 + $0x14] sm:$0xf]
        %v1082 = vld [vmem:[#allocation3 + $0x18] sm:$0xff]
        %v1083 = vld [vmem:[#allocation3 + $0x20] sm:$0xf]
        %v1084 = vld [vmem:[#allocation3 + $0x24] sm:$0xff]
        %v1085 = vld [vmem:[#allocation3 + $0x2c] sm:$0xf]
        %v1086 = vld [vmem:[#allocation3 + $0x30] sm:$0xff]
        %v1087 = vld [vmem:[#allocation3 + $0x38] sm:$0xf]
        %v1088 = vld [vmem:[#allocation3 + $0x3c] sm:$0xff]
        %v1089 = vld [vmem:[#allocation3 + $0x44] sm:$0xf]
        %v1094 = vunpack.c.l.b16 %v1074
        %v1095 = vunpack.c.l.b16 %v1075
        %v1096 = vunpack.c.l.b16 %v1076
        %v1097 = vunpack.c.l.b16 %v1077
        %v1098 = vpack.c.b16 %v1095, %v1094
        %v1099 = vpack.c.b16 %v1097, %v1096
        %v1112 = vunpack.c.l.b16 %v1078
        %v1113 = vunpack.c.h.b16 %v1078
        %v1114 = vunpack.c.l.b16 %v1079
        %v1115 = vunpack.c.l.b16 %v1080
        %v1116 = vunpack.c.h.b16 %v1080
        %v1117 = vunpack.c.l.b16 %v1081
        %v1118 = vunpack.c.l.b16 %v1082
        %v1119 = vunpack.c.h.b16 %v1082
        %v1120 = vunpack.c.l.b16 %v1083
        %v1121 = vunpack.c.l.b16 %v1084
        %v1122 = vunpack.c.h.b16 %v1084
        %v1123 = vunpack.c.l.b16 %v1085
        %v1124 = vunpack.c.l.b16 %v1086
        %v1125 = vunpack.c.h.b16 %v1086
        %v1126 = vunpack.c.l.b16 %v1087
        %v1127 = vunpack.c.l.b16 %v1088
        %v1128 = vunpack.c.h.b16 %v1088
        %v1129 = vunpack.c.l.b16 %v1089
        %v1130 = vpack.c.b16 %v1115, %v1112
        %v1131 = vpack.c.b16 %v1116, %v1113
        %v1132 = vpack.c.b16 %v1117, %v1114
        %v1133 = vpack.c.b16 %v1121, %v1118
        %v1134 = vpack.c.b16 %v1122, %v1119
        %v1135 = vpack.c.b16 %v1123, %v1120
        %v1136 = vpack.c.b16 %v1127, %v1124
        %v1137 = vpack.c.b16 %v1128, %v1125
        %v1138 = vpack.c.b16 %v1129, %v1126
        %1139 = vrot.lane.b32.xlu0 %v1130, 126
        %v1140 = vpop.permute.xlu0 %1139
        %1141 = vrot.lane.b32.xlu0 %v1131, 126
        %v1142 = vpop.permute.xlu0 %1141
        %1143 = vrot.lane.b32.xlu0 %v1132, 126
        %v1144 = vpop.permute.xlu0 %1143
        %1145 = vrot.lane.b32.xlu0 %v1133, 126
        %v1146 = vpop.permute.xlu0 %1145
        %1147 = vrot.lane.b32.xlu0 %v1134, 126
        %v1148 = vpop.permute.xlu0 %1147
        %1149 = vrot.lane.b32.xlu0 %v1135, 126
        %v1150 = vpop.permute.xlu0 %1149
        %1151 = vrot.lane.b32.xlu0 %v1136, 126
        %v1152 = vpop.permute.xlu0 %1151
        %1153 = vrot.lane.b32.xlu0 %v1137, 126
        %v1154 = vpop.permute.xlu0 %1153
        %1155 = vrot.lane.b32.xlu0 %v1138, 126
        %v1156 = vpop.permute.xlu0 %1155
        %v1157 = vsel %vm651, %v1140, %v1142
        %v1158 = vsel %vm651, %v1142, %v1144
        %v1159 = vsel %vm651, %v1146, %v1148
        %v1160 = vsel %vm651, %v1148, %v1150
        %v1161 = vsel %vm651, %v1152, %v1154
        %v1162 = vsel %vm651, %v1154, %v1156
        %v1170 = vsel %vm405, %v1098, 0
        %v1173 = vsel %vm405, %v1099, 0
        %1175 = vmatpush.bf16.msra.mxu0 0
        %1176 = vmatpush.bf16.msra.mxu0 0
        %1177 = vmatpush.bf16.msra.mxu0 0
        %1178 = vmatpush.bf16.msra.mxu0 0
        %1179 = vmatpush.bf16.msra.mxu0 0
        %1180 = vmatpush.bf16.msra.mxu0 %v1161
        %1181 = vmatpush.bf16.msra.mxu0 %v1159
        %1182 = vmatpush.bf16.msra.mxu0 %v1157
        %1183 = vmatmul.bf16.gmra.mxu0 %v1170
        %v1184 = vpop.f32.mrf.mxu0
        %v1185 = vadd.f32 0.0, %v1184
        %v1186 = vpop.f32.mrf.mxu0
        %v1187 = vadd.f32 0.0, %v1186
        %1188 = vmatmul.bf16.gmra.mxu0 %v1173
        %v1189 = vpop.f32.mrf.mxu0
        %v1190 = vadd.f32 0.0, %v1189
        %v1191 = vpop.f32.mrf.mxu0
        %v1192 = vadd.f32 0.0, %v1191
        %1193 = vdwg.mxu0
        %1194 = vmatpush.bf16.msra.mxu0 0
        %1195 = vmatpush.bf16.msra.mxu0 0
        %1196 = vmatpush.bf16.msra.mxu0 0
        %1197 = vmatpush.bf16.msra.mxu0 0
        %1198 = vmatpush.bf16.msra.mxu0 0
        %1199 = vmatpush.bf16.msra.mxu0 %v1162
        %1200 = vmatpush.bf16.msra.mxu0 %v1160
        %1201 = vmatpush.bf16.msra.mxu0 %v1158
        %1202 = vmatmul.bf16.gmra.mxu0 %v1170
        %v1203 = vpop.f32.mrf.mxu0
        %v1204 = vadd.f32 0.0, %v1203
        %v1205 = vpop.f32.mrf.mxu0
        %v1206 = vadd.f32 0.0, %v1205
        %1207 = vmatmul.bf16.gmra.mxu0 %v1173
        %v1208 = vpop.f32.mrf.mxu0
        %v1209 = vadd.f32 0.0, %v1208
        %v1210 = vpop.f32.mrf.mxu0
        %v1211 = vadd.f32 0.0, %v1210
        %1212 = vdwg.mxu0
        %v1213 = vld [vmem:[#allocation4] sm:$0xff]
        %v1214 = vld [vmem:[#allocation4 + $0x8] sm:$0xff]
        %v1215 = vld [vmem:[#allocation4 + $0x10] sm:$0xff]
        %v1216 = vld [vmem:[#allocation4 + $0x18] sm:$0xff]
        %v1217 = vld [vmem:[#allocation4 + $0x20] sm:$0xff]
        %v1218 = vld [vmem:[#allocation4 + $0x28] sm:$0xff]
        %v1219 = vld [vmem:[#allocation4 + $0x30] sm:$0xff]
        %v1220 = vld [vmem:[#allocation4 + $0x38] sm:$0xff]
        %v1221 = vadd.f32 %v1213, %v1185
        %v1222 = vadd.f32 %v1214, %v1204
        %v1223 = vadd.f32 %v1215, %v1187
        %v1224 = vadd.f32 %v1216, %v1206
        %v1225 = vadd.f32 %v1217, %v1190
        %v1226 = vadd.f32 %v1218, %v1209
        %v1227 = vadd.f32 %v1219, %v1192
        %v1228 = vadd.f32 %v1220, %v1211
        %1229 = vst [vmem:[#allocation4] sm:$0xff] %v1221
        %1230 = vst [vmem:[#allocation4 + $0x8] sm:$0xff] %v1222
        %1231 = vst [vmem:[#allocation4 + $0x10] sm:$0xff] %v1223
        %1232 = vst [vmem:[#allocation4 + $0x18] sm:$0xff] %v1224
        %1233 = vst [vmem:[#allocation4 + $0x20] sm:$0xff] %v1225
        %1234 = vst [vmem:[#allocation4 + $0x28] sm:$0xff] %v1226
        %1235 = vst [vmem:[#allocation4 + $0x30] sm:$0xff] %v1227
        %1236 = vst [vmem:[#allocation4 + $0x38] sm:$0xff] %v1228
        %v1237 = vld [vmem:[#allocation4] sm:$0xff]
        %v1238 = vld [vmem:[#allocation4 + $0x8] sm:$0xff]
        %v1239 = vld [vmem:[#allocation4 + $0x10] sm:$0xff]
        %v1240 = vld [vmem:[#allocation4 + $0x18] sm:$0xff]
        %v1241 = vld [vmem:[#allocation4 + $0x20] sm:$0xff]
        %v1242 = vld [vmem:[#allocation4 + $0x28] sm:$0xff]
        %v1243 = vld [vmem:[#allocation4 + $0x30] sm:$0xff]
        %v1244 = vld [vmem:[#allocation4 + $0x38] sm:$0xff]
        %s1245 = scalar_lea.vmem %s5, 64
        %v1246 = vld [vmem:[%s1245] sm:$0xff]
        %v1247 = vld [vmem:[%s1245 + $0x8] sm:$0xff]
        %v1248 = vld [vmem:[%s1245 + $0x10] sm:$0xff]
        %v1249 = vld [vmem:[%s1245 + $0x18] sm:$0xff]
        %1251 = vset.pattern.permute.xlu0 0
        %1252 = vperm.xlu0 %1251, %v1246
        %v1253 = vpop.permute.xlu0 %1252
        %1256 = vset.pattern.permute.xlu0 0
        %1257 = vperm.xlu0 %1256, %v1247
        %v1258 = vpop.permute.xlu0 %1257
        %1261 = vset.pattern.permute.xlu0 0
        %1262 = vperm.xlu0 %1261, %v1248
        %v1263 = vpop.permute.xlu0 %1262
        %1266 = vset.pattern.permute.xlu0 0
        %1267 = vperm.xlu0 %1266, %v1249
        %v1268 = vpop.permute.xlu0 %1267
        %v1270 = vadd.f32 %v1237, %v1253
        %v1271 = vadd.f32 %v1238, %v1253
        %v1272 = vadd.f32 %v1239, %v1258
        %v1273 = vadd.f32 %v1240, %v1258
        %v1274 = vadd.f32 %v1241, %v1263
        %v1275 = vadd.f32 %v1242, %v1263
        %v1276 = vadd.f32 %v1243, %v1268
        %v1277 = vadd.f32 %v1244, %v1268
        %v1278 = vmax.f32 %v1270, 0.0
        %v1279 = vmax.f32 %v1271, 0.0
        %v1280 = vmax.f32 %v1272, 0.0
        %v1281 = vmax.f32 %v1273, 0.0
        %v1282 = vmax.f32 %v1274, 0.0
        %v1283 = vmax.f32 %v1275, 0.0
        %v1284 = vmax.f32 %v1276, 0.0
        %v1285 = vmax.f32 %v1277, 0.0
        %v1286 = vpack.c.bf16 %v1279, %v1278
        %v1287 = vpack.c.bf16 %v1281, %v1280
        %v1288 = vpack.c.bf16 %v1283, %v1282
        %v1289 = vpack.c.bf16 %v1285, %v1284
        %1290 = vst [vmem:[#allocation2] sm:$0xff] %v1286
        %1291 = vst [vmem:[#allocation2 + $0xc] sm:$0xff] %v1287
        %1292 = vst [vmem:[#allocation2 + $0x18] sm:$0xff] %v1288
        %1293 = vst [vmem:[#allocation2 + $0x24] sm:$0xff] %v1289
        %v1294 = vld [vmem:[#allocation2] sm:$0xff]
        %v1295 = vld [vmem:[#allocation2 + $0x8] sm:$0xf]
        %v1296 = vld [vmem:[#allocation2 + $0xc] sm:$0xff]
        %v1297 = vld [vmem:[#allocation2 + $0x14] sm:$0xf]
        %v1298 = vld [vmem:[#allocation2 + $0x18] sm:$0xff]
        %v1299 = vld [vmem:[#allocation2 + $0x20] sm:$0xf]
        %v1300 = vld [vmem:[#allocation2 + $0x24] sm:$0xff]
        %v1301 = vld [vmem:[#allocation2 + $0x2c] sm:$0xf]
        %1302 = vst [vmem:[#allocation3] sm:$0xff] %v1294
        %1303 = vst.msk [vmem:[#allocation3 + $0x8] sm:$0xf] %vm291, %v1295
        %1304 = vst [vmem:[#allocation3 + $0xc] sm:$0xff] %v1296
        %1305 = vst.msk [vmem:[#allocation3 + $0x14] sm:$0xf] %vm291, %v1297
        %1306 = vst [vmem:[#allocation3 + $0x18] sm:$0xff] %v1298
        %1307 = vst.msk [vmem:[#allocation3 + $0x20] sm:$0xf] %vm291, %v1299
        %1308 = vst [vmem:[#allocation3 + $0x24] sm:$0xff] %v1300
        %1309 = vst.msk [vmem:[#allocation3 + $0x2c] sm:$0xf] %vm291, %v1301
        %v1310 = vld [vmem:[#allocation2] sm:$0xff]
        %v1311 = vld [vmem:[#allocation2 + $0x8] sm:$0xf]
        %v1312 = vld [vmem:[#allocation2 + $0xc] sm:$0xff]
        %v1313 = vld [vmem:[#allocation2 + $0x14] sm:$0xf]
        %v1314 = vld [vmem:[#allocation2 + $0x18] sm:$0xff]
        %v1315 = vld [vmem:[#allocation2 + $0x20] sm:$0xf]
        %v1316 = vld [vmem:[#allocation2 + $0x24] sm:$0xff]
        %v1317 = vld [vmem:[#allocation2 + $0x2c] sm:$0xf]
        %1326 = vrot.lane.b32.xlu0 %v1310, 96
        %v1327 = vpop.permute.xlu0 %1326
        %1328 = vrot.lane.b32.xlu0 %v1311, 96
        %v1329 = vpop.permute.xlu0 %1328
        %1330 = vrot.lane.b32.xlu0 %v1312, 96
        %v1331 = vpop.permute.xlu0 %1330
        %1332 = vrot.lane.b32.xlu0 %v1313, 96
        %v1333 = vpop.permute.xlu0 %1332
        %1334 = vrot.lane.b32.xlu0 %v1314, 96
        %v1335 = vpop.permute.xlu0 %1334
        %1336 = vrot.lane.b32.xlu0 %v1315, 96
        %v1337 = vpop.permute.xlu0 %1336
        %1338 = vrot.lane.b32.xlu0 %v1316, 96
        %v1339 = vpop.permute.xlu0 %1338
        %1340 = vrot.lane.b32.xlu0 %v1317, 96
        %v1341 = vpop.permute.xlu0 %1340
        %v1342 = vrot.slane %v1327, 4
        %v1343 = vrot.slane %v1329, 4
        %v1344 = vrot.slane %v1331, 4
        %v1345 = vrot.slane %v1333, 4
        %v1346 = vrot.slane %v1335, 4
        %v1347 = vrot.slane %v1337, 4
        %v1348 = vrot.slane %v1339, 4
        %v1349 = vrot.slane %v1341, 4
        %v1350 = vsel %vm315, %v1342, %v1343
        %v1351 = vsel %vm350, %v1327, %v1350
        %v1352 = vsel %vm315, %v1344, %v1345
        %v1353 = vsel %vm350, %v1331, %v1352
        %v1354 = vsel %vm315, %v1346, %v1347
        %v1355 = vsel %vm350, %v1335, %v1354
        %v1356 = vsel %vm315, %v1348, %v1349
        %v1357 = vsel %vm350, %v1339, %v1356
        %1366 = vst [vmem:[#allocation3 + $0x30] sm:$0xff] %v1351
        %1367 = vst.msk [vmem:[#allocation3 + $0x38] sm:$0xf] %vm291, %v1329
        %1368 = vst [vmem:[#allocation3 + $0x3c] sm:$0xff] %v1353
        %1369 = vst.msk [vmem:[#allocation3 + $0x44] sm:$0xf] %vm291, %v1333
        %1370 = vst [vmem:[#allocation3 + $0x48] sm:$0xff] %v1355
        %1371 = vst.msk [vmem:[#allocation3 + $0x50] sm:$0xf] %vm291, %v1337
        %1372 = vst [vmem:[#allocation3 + $0x54] sm:$0xff] %v1357
        %1373 = vst.msk [vmem:[#allocation3 + $0x5c] sm:$0xf] %vm291, %v1341
        %v1374 = vld [vmem:[#allocation2] sm:$0xff]
        %v1375 = vld [vmem:[#allocation2 + $0x8] sm:$0xf]
        %v1376 = vld [vmem:[#allocation2 + $0xc] sm:$0xff]
        %v1377 = vld [vmem:[#allocation2 + $0x14] sm:$0xf]
        %v1378 = vld [vmem:[#allocation2 + $0x18] sm:$0xff]
        %v1379 = vld [vmem:[#allocation2 + $0x20] sm:$0xf]
        %v1380 = vld [vmem:[#allocation2 + $0x24] sm:$0xff]
        %v1381 = vld [vmem:[#allocation2 + $0x2c] sm:$0xf]
        %1390 = vrot.lane.b32.xlu0 %v1374, 64
        %v1391 = vpop.permute.xlu0 %1390
        %1392 = vrot.lane.b32.xlu0 %v1375, 64
        %v1393 = vpop.permute.xlu0 %1392
        %1394 = vrot.lane.b32.xlu0 %v1376, 64
        %v1395 = vpop.permute.xlu0 %1394
        %1396 = vrot.lane.b32.xlu0 %v1377, 64
        %v1397 = vpop.permute.xlu0 %1396
        %1398 = vrot.lane.b32.xlu0 %v1378, 64
        %v1399 = vpop.permute.xlu0 %1398
        %1400 = vrot.lane.b32.xlu0 %v1379, 64
        %v1401 = vpop.permute.xlu0 %1400
        %1402 = vrot.lane.b32.xlu0 %v1380, 64
        %v1403 = vpop.permute.xlu0 %1402
        %1404 = vrot.lane.b32.xlu0 %v1381, 64
        %v1405 = vpop.permute.xlu0 %1404
        %v1406 = vrot.slane %v1391, 4
        %v1407 = vrot.slane %v1393, 4
        %v1408 = vrot.slane %v1395, 4
        %v1409 = vrot.slane %v1397, 4
        %v1410 = vrot.slane %v1399, 4
        %v1411 = vrot.slane %v1401, 4
        %v1412 = vrot.slane %v1403, 4
        %v1413 = vrot.slane %v1405, 4
        %v1414 = vsel %vm315, %v1406, %v1407
        %vm1415 = vcmask 523264
        %v1416 = vsel %vm1415, %v1391, %v1414
        %v1417 = vsel %vm315, %v1408, %v1409
        %v1418 = vsel %vm1415, %v1395, %v1417
        %v1419 = vsel %vm315, %v1410, %v1411
        %v1420 = vsel %vm1415, %v1399, %v1419
        %v1421 = vsel %vm315, %v1412, %v1413
        %v1422 = vsel %vm1415, %v1403, %v1421
        %1431 = vst [vmem:[#allocation3 + $0x60] sm:$0xff] %v1416
        %1432 = vst.msk [vmem:[#allocation3 + $0x68] sm:$0xf] %vm291, %v1393
        %1433 = vst [vmem:[#allocation3 + $0x6c] sm:$0xff] %v1418
        %1434 = vst.msk [vmem:[#allocation3 + $0x74] sm:$0xf] %vm291, %v1397
        %1435 = vst [vmem:[#allocation3 + $0x78] sm:$0xff] %v1420
        %1436 = vst.msk [vmem:[#allocation3 + $0x80] sm:$0xf] %vm291, %v1401
        %1437 = vst [vmem:[#allocation3 + $0x84] sm:$0xff] %v1422
        %1438 = vst.msk [vmem:[#allocation3 + $0x8c] sm:$0xf] %vm291, %v1405
        %v1439 = vld [vmem:[%s3] sm:$0xf]
        %v1440 = vld [vmem:[%s3 + $0x4] sm:$0xf]
        %v1441 = vld [vmem:[%s3 + $0x8] sm:$0xf]
        %v1442 = vld [vmem:[%s3 + $0xc] sm:$0xf]
        %v1443 = vld [vmem:[%s3 + $0x10] sm:$0xf]
        %v1444 = vld [vmem:[%s3 + $0x14] sm:$0xf]
        %v1445 = vld [vmem:[%s3 + $0x18] sm:$0xf]
        %v1446 = vld [vmem:[%s3 + $0x1c] sm:$0xf]
        %v1447 = vld [vmem:[#allocation3] sm:$0xff]
        %v1448 = vld [vmem:[#allocation3 + $0xc] sm:$0xff]
        %v1449 = vld [vmem:[#allocation3 + $0x18] sm:$0xff]
        %v1450 = vld [vmem:[#allocation3 + $0x24] sm:$0xff]
        %v1451 = vld [vmem:[#allocation3 + $0x30] sm:$0xff]
        %v1452 = vld [vmem:[#allocation3 + $0x3c] sm:$0xff]
        %v1453 = vld [vmem:[#allocation3 + $0x48] sm:$0xff]
        %v1454 = vld [vmem:[#allocation3 + $0x54] sm:$0xff]
        %v1455 = vld [vmem:[#allocation3 + $0x60] sm:$0xff]
        %v1456 = vld [vmem:[#allocation3 + $0x6c] sm:$0xff]
        %v1457 = vld [vmem:[#allocation3 + $0x78] sm:$0xff]
        %v1458 = vld [vmem:[#allocation3 + $0x84] sm:$0xff]
        %v1467 = vunpack.c.l.b16 %v1439
        %v1468 = vunpack.c.l.b16 %v1440
        %v1469 = vunpack.c.l.b16 %v1441
        %v1470 = vunpack.c.l.b16 %v1442
        %v1471 = vunpack.c.l.b16 %v1443
        %v1472 = vunpack.c.l.b16 %v1444
        %v1473 = vunpack.c.l.b16 %v1445
        %v1474 = vunpack.c.l.b16 %v1446
        %v1475 = vpack.c.b16 %v1468, %v1467
        %v1476 = vpack.c.b16 %v1470, %v1469
        %v1477 = vpack.c.b16 %v1472, %v1471
        %v1478 = vpack.c.b16 %v1474, %v1473
        %v1491 = vunpack.c.l.b16 %v1447
        %v1492 = vunpack.c.h.b16 %v1447
        %v1493 = vunpack.c.l.b16 %v1448
        %v1494 = vunpack.c.h.b16 %v1448
        %v1495 = vunpack.c.l.b16 %v1449
        %v1496 = vunpack.c.h.b16 %v1449
        %v1497 = vunpack.c.l.b16 %v1450
        %v1498 = vunpack.c.h.b16 %v1450
        %v1499 = vunpack.c.l.b16 %v1451
        %v1500 = vunpack.c.h.b16 %v1451
        %v1501 = vunpack.c.l.b16 %v1452
        %v1502 = vunpack.c.h.b16 %v1452
        %v1503 = vunpack.c.l.b16 %v1453
        %v1504 = vunpack.c.h.b16 %v1453
        %v1505 = vunpack.c.l.b16 %v1454
        %v1506 = vunpack.c.h.b16 %v1454
        %v1507 = vunpack.c.l.b16 %v1455
        %v1508 = vunpack.c.h.b16 %v1455
        %v1509 = vunpack.c.l.b16 %v1456
        %v1510 = vunpack.c.h.b16 %v1456
        %v1511 = vunpack.c.l.b16 %v1457
        %v1512 = vunpack.c.h.b16 %v1457
        %v1513 = vunpack.c.l.b16 %v1458
        %v1514 = vunpack.c.h.b16 %v1458
        %v1515 = vpack.c.b16 %v1493, %v1491
        %v1516 = vpack.c.b16 %v1494, %v1492
        %v1517 = vpack.c.b16 %v1497, %v1495
        %v1518 = vpack.c.b16 %v1498, %v1496
        %v1519 = vpack.c.b16 %v1501, %v1499
        %v1520 = vpack.c.b16 %v1502, %v1500
        %v1521 = vpack.c.b16 %v1505, %v1503
        %v1522 = vpack.c.b16 %v1506, %v1504
        %v1523 = vpack.c.b16 %v1509, %v1507
        %v1524 = vpack.c.b16 %v1510, %v1508
        %v1525 = vpack.c.b16 %v1513, %v1511
        %v1526 = vpack.c.b16 %v1514, %v1512
        %vm1539 = vcmask 785408
        %v1541 = vsel %vm1539, %v1475, 0
        %v1544 = vsel %vm1539, %v1476, 0
        %v1547 = vsel %vm1539, %v1477, 0
        %v1550 = vsel %vm1539, %v1478, 0
        %1552 = vmatpush.bf16.msra.mxu0 0
        %1553 = vmatpush.bf16.msra.mxu0 0
        %1554 = vmatpush.bf16.msra.mxu0 %v1525
        %1555 = vmatpush.bf16.msra.mxu0 %v1523
        %1556 = vmatpush.bf16.msra.mxu0 %v1521
        %1557 = vmatpush.bf16.msra.mxu0 %v1519
        %1558 = vmatpush.bf16.msra.mxu0 %v1517
        %1559 = vmatpush.bf16.msra.mxu0 %v1515
        %1560 = vmatmul.bf16.gmra.mxu0 %v1541
        %v1561 = vpop.f32.mrf.mxu0
        %v1562 = vadd.f32 0.0, %v1561
        %v1563 = vpop.f32.mrf.mxu0
        %v1564 = vadd.f32 0.0, %v1563
        %1565 = vmatmul.bf16.gmra.mxu0 %v1544
        %v1566 = vpop.f32.mrf.mxu0
        %v1567 = vadd.f32 0.0, %v1566
        %v1568 = vpop.f32.mrf.mxu0
        %v1569 = vadd.f32 0.0, %v1568
        %1570 = vmatmul.bf16.gmra.mxu0 %v1547
        %v1571 = vpop.f32.mrf.mxu0
        %v1572 = vadd.f32 0.0, %v1571
        %v1573 = vpop.f32.mrf.mxu0
        %v1574 = vadd.f32 0.0, %v1573
        %1575 = vmatmul.bf16.gmra.mxu0 %v1550
        %v1576 = vpop.f32.mrf.mxu0
        %v1577 = vadd.f32 0.0, %v1576
        %v1578 = vpop.f32.mrf.mxu0
        %v1579 = vadd.f32 0.0, %v1578
        %1580 = vdwg.mxu0
        %1581 = vmatpush.bf16.msra.mxu0 0
        %1582 = vmatpush.bf16.msra.mxu0 0
        %1583 = vmatpush.bf16.msra.mxu0 %v1526
        %1584 = vmatpush.bf16.msra.mxu0 %v1524
        %1585 = vmatpush.bf16.msra.mxu0 %v1522
        %1586 = vmatpush.bf16.msra.mxu0 %v1520
        %1587 = vmatpush.bf16.msra.mxu0 %v1518
        %1588 = vmatpush.bf16.msra.mxu0 %v1516
        %1589 = vmatmul.bf16.gmra.mxu0 %v1541
        %v1590 = vpop.f32.mrf.mxu0
        %v1591 = vadd.f32 0.0, %v1590
        %v1592 = vpop.f32.mrf.mxu0
        %v1593 = vadd.f32 0.0, %v1592
        %1594 = vmatmul.bf16.gmra.mxu0 %v1544
        %v1595 = vpop.f32.mrf.mxu0
        %v1596 = vadd.f32 0.0, %v1595
        %v1597 = vpop.f32.mrf.mxu0
        %v1598 = vadd.f32 0.0, %v1597
        %1599 = vmatmul.bf16.gmra.mxu0 %v1547
        %v1600 = vpop.f32.mrf.mxu0
        %v1601 = vadd.f32 0.0, %v1600
        %v1602 = vpop.f32.mrf.mxu0
        %v1603 = vadd.f32 0.0, %v1602
        %1604 = vmatmul.bf16.gmra.mxu0 %v1550
        %v1605 = vpop.f32.mrf.mxu0
        %v1606 = vadd.f32 0.0, %v1605
        %v1607 = vpop.f32.mrf.mxu0
        %v1608 = vadd.f32 0.0, %v1607
        %1609 = vdwg.mxu0
        %1610 = vst [vmem:[#allocation4] sm:$0xff] %v1562
        %1611 = vst [vmem:[#allocation4 + $0x8] sm:$0xff] %v1591
        %1612 = vst [vmem:[#allocation4 + $0x10] sm:$0xff] %v1564
        %1613 = vst [vmem:[#allocation4 + $0x18] sm:$0xff] %v1593
        %1614 = vst [vmem:[#allocation4 + $0x20] sm:$0xff] %v1567
        %1615 = vst [vmem:[#allocation4 + $0x28] sm:$0xff] %v1596
        %1616 = vst [vmem:[#allocation4 + $0x30] sm:$0xff] %v1569
        %1617 = vst [vmem:[#allocation4 + $0x38] sm:$0xff] %v1598
        %1618 = vst [vmem:[#allocation4 + $0x40] sm:$0xff] %v1572
        %1619 = vst [vmem:[#allocation4 + $0x48] sm:$0xff] %v1601
        %1620 = vst [vmem:[#allocation4 + $0x50] sm:$0xff] %v1574
        %1621 = vst [vmem:[#allocation4 + $0x58] sm:$0xff] %v1603
        %1622 = vst [vmem:[#allocation4 + $0x60] sm:$0xff] %v1577
        %1623 = vst [vmem:[#allocation4 + $0x68] sm:$0xff] %v1606
        %1624 = vst [vmem:[#allocation4 + $0x70] sm:$0xff] %v1579
        %1625 = vst [vmem:[#allocation4 + $0x78] sm:$0xff] %v1608
        %s1626 = scalar_lea.vmem %s3, 32
        %v1627 = vld [vmem:[%s1626] sm:$0xf]
        %v1628 = vld [vmem:[%s1626 + $0x4] sm:$0xf]
        %v1629 = vld [vmem:[%s1626 + $0x8] sm:$0xf]
        %v1630 = vld [vmem:[%s1626 + $0xc] sm:$0xf]
        %v1631 = vld [vmem:[%s1626 + $0x10] sm:$0xf]
        %v1632 = vld [vmem:[%s1626 + $0x14] sm:$0xf]
        %v1633 = vld [vmem:[%s1626 + $0x18] sm:$0xf]
        %v1634 = vld [vmem:[%s1626 + $0x1c] sm:$0xf]
        %v1635 = vld [vmem:[#allocation3] sm:$0xff]
        %v1636 = vld [vmem:[#allocation3 + $0x8] sm:$0xf]
        %v1637 = vld [vmem:[#allocation3 + $0xc] sm:$0xff]
        %v1638 = vld [vmem:[#allocation3 + $0x14] sm:$0xf]
        %v1639 = vld [vmem:[#allocation3 + $0x18] sm:$0xff]
        %v1640 = vld [vmem:[#allocation3 + $0x20] sm:$0xf]
        %v1641 = vld [vmem:[#allocation3 + $0x24] sm:$0xff]
        %v1642 = vld [vmem:[#allocation3 + $0x2c] sm:$0xf]
        %v1643 = vld [vmem:[#allocation3 + $0x30] sm:$0xff]
        %v1644 = vld [vmem:[#allocation3 + $0x38] sm:$0xf]
        %v1645 = vld [vmem:[#allocation3 + $0x3c] sm:$0xff]
        %v1646 = vld [vmem:[#allocation3 + $0x44] sm:$0xf]
        %v1647 = vld [vmem:[#allocation3 + $0x48] sm:$0xff]
        %v1648 = vld [vmem:[#allocation3 + $0x50] sm:$0xf]
        %v1649 = vld [vmem:[#allocation3 + $0x54] sm:$0xff]
        %v1650 = vld [vmem:[#allocation3 + $0x5c] sm:$0xf]
        %v1651 = vld [vmem:[#allocation3 + $0x60] sm:$0xff]
        %v1652 = vld [vmem:[#allocation3 + $0x68] sm:$0xf]
        %v1653 = vld [vmem:[#allocation3 + $0x6c] sm:$0xff]
        %v1654 = vld [vmem:[#allocation3 + $0x74] sm:$0xf]
        %v1655 = vld [vmem:[#allocation3 + $0x78] sm:$0xff]
        %v1656 = vld [vmem:[#allocation3 + $0x80] sm:$0xf]
        %v1657 = vld [vmem:[#allocation3 + $0x84] sm:$0xff]
        %v1658 = vld [vmem:[#allocation3 + $0x8c] sm:$0xf]
        %v1667 = vunpack.c.l.b16 %v1627
        %v1668 = vunpack.c.l.b16 %v1628
        %v1669 = vunpack.c.l.b16 %v1629
        %v1670 = vunpack.c.l.b16 %v1630
        %v1671 = vunpack.c.l.b16 %v1631
        %v1672 = vunpack.c.l.b16 %v1632
        %v1673 = vunpack.c.l.b16 %v1633
        %v1674 = vunpack.c.l.b16 %v1634
        %v1675 = vpack.c.b16 %v1668, %v1667
        %v1676 = vpack.c.b16 %v1670, %v1669
        %v1677 = vpack.c.b16 %v1672, %v1671
        %v1678 = vpack.c.b16 %v1674, %v1673
        %v1703 = vunpack.c.l.b16 %v1635
        %v1704 = vunpack.c.h.b16 %v1635
        %v1705 = vunpack.c.l.b16 %v1636
        %v1706 = vunpack.c.l.b16 %v1637
        %v1707 = vunpack.c.h.b16 %v1637
        %v1708 = vunpack.c.l.b16 %v1638
        %v1709 = vunpack.c.l.b16 %v1639
        %v1710 = vunpack.c.h.b16 %v1639
        %v1711 = vunpack.c.l.b16 %v1640
        %v1712 = vunpack.c.l.b16 %v1641
        %v1713 = vunpack.c.h.b16 %v1641
        %v1714 = vunpack.c.l.b16 %v1642
        %v1715 = vunpack.c.l.b16 %v1643
        %v1716 = vunpack.c.h.b16 %v1643
        %v1717 = vunpack.c.l.b16 %v1644
        %v1718 = vunpack.c.l.b16 %v1645
        %v1719 = vunpack.c.h.b16 %v1645
        %v1720 = vunpack.c.l.b16 %v1646
        %v1721 = vunpack.c.l.b16 %v1647
        %v1722 = vunpack.c.h.b16 %v1647
        %v1723 = vunpack.c.l.b16 %v1648
        %v1724 = vunpack.c.l.b16 %v1649
        %v1725 = vunpack.c.h.b16 %v1649
        %v1726 = vunpack.c.l.b16 %v1650
        %v1727 = vunpack.c.l.b16 %v1651
        %v1728 = vunpack.c.h.b16 %v1651
        %v1729 = vunpack.c.l.b16 %v1652
        %v1730 = vunpack.c.l.b16 %v1653
        %v1731 = vunpack.c.h.b16 %v1653
        %v1732 = vunpack.c.l.b16 %v1654
        %v1733 = vunpack.c.l.b16 %v1655
        %v1734 = vunpack.c.h.b16 %v1655
        %v1735 = vunpack.c.l.b16 %v1656
        %v1736 = vunpack.c.l.b16 %v1657
        %v1737 = vunpack.c.h.b16 %v1657
        %v1738 = vunpack.c.l.b16 %v1658
        %v1739 = vpack.c.b16 %v1706, %v1703
        %v1740 = vpack.c.b16 %v1707, %v1704
        %v1741 = vpack.c.b16 %v1708, %v1705
        %v1742 = vpack.c.b16 %v1712, %v1709
        %v1743 = vpack.c.b16 %v1713, %v1710
        %v1744 = vpack.c.b16 %v1714, %v1711
        %v1745 = vpack.c.b16 %v1718, %v1715
        %v1746 = vpack.c.b16 %v1719, %v1716
        %v1747 = vpack.c.b16 %v1720, %v1717
        %v1748 = vpack.c.b16 %v1724, %v1721
        %v1749 = vpack.c.b16 %v1725, %v1722
        %v1750 = vpack.c.b16 %v1726, %v1723
        %v1751 = vpack.c.b16 %v1730, %v1727
        %v1752 = vpack.c.b16 %v1731, %v1728
        %v1753 = vpack.c.b16 %v1732, %v1729
        %v1754 = vpack.c.b16 %v1736, %v1733
        %v1755 = vpack.c.b16 %v1737, %v1734
        %v1756 = vpack.c.b16 %v1738, %v1735
        %1757 = vrot.lane.b32.xlu0 %v1739, 126
        %v1758 = vpop.permute.xlu0 %1757
        %1759 = vrot.lane.b32.xlu0 %v1740, 126
        %v1760 = vpop.permute.xlu0 %1759
        %1761 = vrot.lane.b32.xlu0 %v1741, 126
        %v1762 = vpop.permute.xlu0 %1761
        %1763 = vrot.lane.b32.xlu0 %v1742, 126
        %v1764 = vpop.permute.xlu0 %1763
        %1765 = vrot.lane.b32.xlu0 %v1743, 126
        %v1766 = vpop.permute.xlu0 %1765
        %1767 = vrot.lane.b32.xlu0 %v1744, 126
        %v1768 = vpop.permute.xlu0 %1767
        %1769 = vrot.lane.b32.xlu0 %v1745, 126
        %v1770 = vpop.permute.xlu0 %1769
        %1771 = vrot.lane.b32.xlu0 %v1746, 126
        %v1772 = vpop.permute.xlu0 %1771
        %1773 = vrot.lane.b32.xlu0 %v1747, 126
        %v1774 = vpop.permute.xlu0 %1773
        %1775 = vrot.lane.b32.xlu0 %v1748, 126
        %v1776 = vpop.permute.xlu0 %1775
        %1777 = vrot.lane.b32.xlu0 %v1749, 126
        %v1778 = vpop.permute.xlu0 %1777
        %1779 = vrot.lane.b32.xlu0 %v1750, 126
        %v1780 = vpop.permute.xlu0 %1779
        %1781 = vrot.lane.b32.xlu0 %v1751, 126
        %v1782 = vpop.permute.xlu0 %1781
        %1783 = vrot.lane.b32.xlu0 %v1752, 126
        %v1784 = vpop.permute.xlu0 %1783
        %1785 = vrot.lane.b32.xlu0 %v1753, 126
        %v1786 = vpop.permute.xlu0 %1785
        %1787 = vrot.lane.b32.xlu0 %v1754, 126
        %v1788 = vpop.permute.xlu0 %1787
        %1789 = vrot.lane.b32.xlu0 %v1755, 126
        %v1790 = vpop.permute.xlu0 %1789
        %1791 = vrot.lane.b32.xlu0 %v1756, 126
        %v1792 = vpop.permute.xlu0 %1791
        %v1793 = vsel %vm651, %v1758, %v1760
        %v1794 = vsel %vm651, %v1760, %v1762
        %v1795 = vsel %vm651, %v1764, %v1766
        %v1796 = vsel %vm651, %v1766, %v1768
        %v1797 = vsel %vm651, %v1770, %v1772
        %v1798 = vsel %vm651, %v1772, %v1774
        %v1799 = vsel %vm651, %v1776, %v1778
        %v1800 = vsel %vm651, %v1778, %v1780
        %v1801 = vsel %vm651, %v1782, %v1784
        %v1802 = vsel %vm651, %v1784, %v1786
        %v1803 = vsel %vm651, %v1788, %v1790
        %v1804 = vsel %vm651, %v1790, %v1792
        %v1818 = vsel %vm1539, %v1675, 0
        %v1821 = vsel %vm1539, %v1676, 0
        %v1824 = vsel %vm1539, %v1677, 0
        %v1827 = vsel %vm1539, %v1678, 0
        %1829 = vmatpush.bf16.msra.mxu0 0
        %1830 = vmatpush.bf16.msra.mxu0 0
        %1831 = vmatpush.bf16.msra.mxu0 %v1803
        %1832 = vmatpush.bf16.msra.mxu0 %v1801
        %1833 = vmatpush.bf16.msra.mxu0 %v1799
        %1834 = vmatpush.bf16.msra.mxu0 %v1797
        %1835 = vmatpush.bf16.msra.mxu0 %v1795
        %1836 = vmatpush.bf16.msra.mxu0 %v1793
        %1837 = vmatmul.bf16.gmra.mxu0 %v1818
        %v1838 = vpop.f32.mrf.mxu0
        %v1839 = vadd.f32 0.0, %v1838
        %v1840 = vpop.f32.mrf.mxu0
        %v1841 = vadd.f32 0.0, %v1840
        %1842 = vmatmul.bf16.gmra.mxu0 %v1821
        %v1843 = vpop.f32.mrf.mxu0
        %v1844 = vadd.f32 0.0, %v1843
        %v1845 = vpop.f32.mrf.mxu0
        %v1846 = vadd.f32 0.0, %v1845
        %1847 = vmatmul.bf16.gmra.mxu0 %v1824
        %v1848 = vpop.f32.mrf.mxu0
        %v1849 = vadd.f32 0.0, %v1848
        %v1850 = vpop.f32.mrf.mxu0
        %v1851 = vadd.f32 0.0, %v1850
        %1852 = vmatmul.bf16.gmra.mxu0 %v1827
        %v1853 = vpop.f32.mrf.mxu0
        %v1854 = vadd.f32 0.0, %v1853
        %v1855 = vpop.f32.mrf.mxu0
        %v1856 = vadd.f32 0.0, %v1855
        %1857 = vdwg.mxu0
        %1858 = vmatpush.bf16.msra.mxu0 0
        %1859 = vmatpush.bf16.msra.mxu0 0
        %1860 = vmatpush.bf16.msra.mxu0 %v1804
        %1861 = vmatpush.bf16.msra.mxu0 %v1802
        %1862 = vmatpush.bf16.msra.mxu0 %v1800
        %1863 = vmatpush.bf16.msra.mxu0 %v1798
        %1864 = vmatpush.bf16.msra.mxu0 %v1796
        %1865 = vmatpush.bf16.msra.mxu0 %v1794
        %1866 = vmatmul.bf16.gmra.mxu0 %v1818
        %v1867 = vpop.f32.mrf.mxu0
        %v1868 = vadd.f32 0.0, %v1867
        %v1869 = vpop.f32.mrf.mxu0
        %v1870 = vadd.f32 0.0, %v1869
        %1871 = vmatmul.bf16.gmra.mxu0 %v1821
        %v1872 = vpop.f32.mrf.mxu0
        %v1873 = vadd.f32 0.0, %v1872
        %v1874 = vpop.f32.mrf.mxu0
        %v1875 = vadd.f32 0.0, %v1874
        %1876 = vmatmul.bf16.gmra.mxu0 %v1824
        %v1877 = vpop.f32.mrf.mxu0
        %v1878 = vadd.f32 0.0, %v1877
        %v1879 = vpop.f32.mrf.mxu0
        %v1880 = vadd.f32 0.0, %v1879
        %1881 = vmatmul.bf16.gmra.mxu0 %v1827
        %v1882 = vpop.f32.mrf.mxu0
        %v1883 = vadd.f32 0.0, %v1882
        %v1884 = vpop.f32.mrf.mxu0
        %v1885 = vadd.f32 0.0, %v1884
        %1886 = vdwg.mxu0
        %v1887 = vld [vmem:[#allocation4] sm:$0xff]
        %v1888 = vld [vmem:[#allocation4 + $0x8] sm:$0xff]
        %v1889 = vld [vmem:[#allocation4 + $0x10] sm:$0xff]
        %v1890 = vld [vmem:[#allocation4 + $0x18] sm:$0xff]
        %v1891 = vld [vmem:[#allocation4 + $0x20] sm:$0xff]
        %v1892 = vld [vmem:[#allocation4 + $0x28] sm:$0xff]
        %v1893 = vld [vmem:[#allocation4 + $0x30] sm:$0xff]
        %v1894 = vld [vmem:[#allocation4 + $0x38] sm:$0xff]
        %v1895 = vld [vmem:[#allocation4 + $0x40] sm:$0xff]
        %v1896 = vld [vmem:[#allocation4 + $0x48] sm:$0xff]
        %v1897 = vld [vmem:[#allocation4 + $0x50] sm:$0xff]
        %v1898 = vld [vmem:[#allocation4 + $0x58] sm:$0xff]
        %v1899 = vld [vmem:[#allocation4 + $0x60] sm:$0xff]
        %v1900 = vld [vmem:[#allocation4 + $0x68] sm:$0xff]
        %v1901 = vld [vmem:[#allocation4 + $0x70] sm:$0xff]
        %v1902 = vld [vmem:[#allocation4 + $0x78] sm:$0xff]
        %v1903 = vadd.f32 %v1887, %v1839
        %v1904 = vadd.f32 %v1888, %v1868
        %v1905 = vadd.f32 %v1889, %v1841
        %v1906 = vadd.f32 %v1890, %v1870
        %v1907 = vadd.f32 %v1891, %v1844
        %v1908 = vadd.f32 %v1892, %v1873
        %v1909 = vadd.f32 %v1893, %v1846
        %v1910 = vadd.f32 %v1894, %v1875
        %v1911 = vadd.f32 %v1895, %v1849
        %v1912 = vadd.f32 %v1896, %v1878
        %v1913 = vadd.f32 %v1897, %v1851
        %v1914 = vadd.f32 %v1898, %v1880
        %v1915 = vadd.f32 %v1899, %v1854
        %v1916 = vadd.f32 %v1900, %v1883
        %v1917 = vadd.f32 %v1901, %v1856
        %v1918 = vadd.f32 %v1902, %v1885
        %1919 = vst [vmem:[#allocation4] sm:$0xff] %v1903
        %1920 = vst [vmem:[#allocation4 + $0x8] sm:$0xff] %v1904
        %1921 = vst [vmem:[#allocation4 + $0x10] sm:$0xff] %v1905
        %1922 = vst [vmem:[#allocation4 + $0x18] sm:$0xff] %v1906
        %1923 = vst [vmem:[#allocation4 + $0x20] sm:$0xff] %v1907
        %1924 = vst [vmem:[#allocation4 + $0x28] sm:$0xff] %v1908
        %1925 = vst [vmem:[#allocation4 + $0x30] sm:$0xff] %v1909
        %1926 = vst [vmem:[#allocation4 + $0x38] sm:$0xff] %v1910
        %1927 = vst [vmem:[#allocation4 + $0x40] sm:$0xff] %v1911
        %1928 = vst [vmem:[#allocation4 + $0x48] sm:$0xff] %v1912
        %1929 = vst [vmem:[#allocation4 + $0x50] sm:$0xff] %v1913
        %1930 = vst [vmem:[#allocation4 + $0x58] sm:$0xff] %v1914
        %1931 = vst [vmem:[#allocation4 + $0x60] sm:$0xff] %v1915
        %1932 = vst [vmem:[#allocation4 + $0x68] sm:$0xff] %v1916
        %1933 = vst [vmem:[#allocation4 + $0x70] sm:$0xff] %v1917
        %1934 = vst [vmem:[#allocation4 + $0x78] sm:$0xff] %v1918
        %s1935 = scalar_lea.vmem %s3, 64
        %v1936 = vld [vmem:[%s1935] sm:$0xf]
        %v1937 = vld [vmem:[%s1935 + $0x4] sm:$0xf]
        %v1938 = vld [vmem:[%s1935 + $0x8] sm:$0xf]
        %v1939 = vld [vmem:[%s1935 + $0xc] sm:$0xf]
        %v1940 = vld [vmem:[%s1935 + $0x10] sm:$0xf]
        %v1941 = vld [vmem:[%s1935 + $0x14] sm:$0xf]
        %v1942 = vld [vmem:[%s1935 + $0x18] sm:$0xf]
        %v1943 = vld [vmem:[%s1935 + $0x1c] sm:$0xf]
        %v1944 = vld [vmem:[#allocation3] sm:$0xff]
        %v1945 = vld [vmem:[#allocation3 + $0x8] sm:$0xf]
        %v1946 = vld [vmem:[#allocation3 + $0xc] sm:$0xff]
        %v1947 = vld [vmem:[#allocation3 + $0x14] sm:$0xf]
        %v1948 = vld [vmem:[#allocation3 + $0x18] sm:$0xff]
        %v1949 = vld [vmem:[#allocation3 + $0x20] sm:$0xf]
        %v1950 = vld [vmem:[#allocation3 + $0x24] sm:$0xff]
        %v1951 = vld [vmem:[#allocation3 + $0x2c] sm:$0xf]
        %v1952 = vld [vmem:[#allocation3 + $0x30] sm:$0xff]
        %v1953 = vld [vmem:[#allocation3 + $0x38] sm:$0xf]
        %v1954 = vld [vmem:[#allocation3 + $0x3c] sm:$0xff]
        %v1955 = vld [vmem:[#allocation3 + $0x44] sm:$0xf]
        %v1956 = vld [vmem:[#allocation3 + $0x48] sm:$0xff]
        %v1957 = vld [vmem:[#allocation3 + $0x50] sm:$0xf]
        %v1958 = vld [vmem:[#allocation3 + $0x54] sm:$0xff]
        %v1959 = vld [vmem:[#allocation3 + $0x5c] sm:$0xf]
        %v1960 = vld [vmem:[#allocation3 + $0x60] sm:$0xff]
        %v1961 = vld [vmem:[#allocation3 + $0x68] sm:$0xf]
        %v1962 = vld [vmem:[#allocation3 + $0x6c] sm:$0xff]
        %v1963 = vld [vmem:[#allocation3 + $0x74] sm:$0xf]
        %v1964 = vld [vmem:[#allocation3 + $0x78] sm:$0xff]
        %v1965 = vld [vmem:[#allocation3 + $0x80] sm:$0xf]
        %v1966 = vld [vmem:[#allocation3 + $0x84] sm:$0xff]
        %v1967 = vld [vmem:[#allocation3 + $0x8c] sm:$0xf]
        %v1976 = vunpack.c.l.b16 %v1936
        %v1977 = vunpack.c.l.b16 %v1937
        %v1978 = vunpack.c.l.b16 %v1938
        %v1979 = vunpack.c.l.b16 %v1939
        %v1980 = vunpack.c.l.b16 %v1940
        %v1981 = vunpack.c.l.b16 %v1941
        %v1982 = vunpack.c.l.b16 %v1942
        %v1983 = vunpack.c.l.b16 %v1943
        %v1984 = vpack.c.b16 %v1977, %v1976
        %v1985 = vpack.c.b16 %v1979, %v1978
        %v1986 = vpack.c.b16 %v1981, %v1980
        %v1987 = vpack.c.b16 %v1983, %v1982
        %v2012 = vunpack.c.l.b16 %v1944
        %v2013 = vunpack.c.h.b16 %v1944
        %v2014 = vunpack.c.l.b16 %v1945
        %v2015 = vunpack.c.l.b16 %v1946
        %v2016 = vunpack.c.h.b16 %v1946
        %v2017 = vunpack.c.l.b16 %v1947
        %v2018 = vunpack.c.l.b16 %v1948
        %v2019 = vunpack.c.h.b16 %v1948
        %v2020 = vunpack.c.l.b16 %v1949
        %v2021 = vunpack.c.l.b16 %v1950
        %v2022 = vunpack.c.h.b16 %v1950
        %v2023 = vunpack.c.l.b16 %v1951
        %v2024 = vunpack.c.l.b16 %v1952
        %v2025 = vunpack.c.h.b16 %v1952
        %v2026 = vunpack.c.l.b16 %v1953
        %v2027 = vunpack.c.l.b16 %v1954
        %v2028 = vunpack.c.h.b16 %v1954
        %v2029 = vunpack.c.l.b16 %v1955
        %v2030 = vunpack.c.l.b16 %v1956
        %v2031 = vunpack.c.h.b16 %v1956
        %v2032 = vunpack.c.l.b16 %v1957
        %v2033 = vunpack.c.l.b16 %v1958
        %v2034 = vunpack.c.h.b16 %v1958
        %v2035 = vunpack.c.l.b16 %v1959
        %v2036 = vunpack.c.l.b16 %v1960
        %v2037 = vunpack.c.h.b16 %v1960
        %v2038 = vunpack.c.l.b16 %v1961
        %v2039 = vunpack.c.l.b16 %v1962
        %v2040 = vunpack.c.h.b16 %v1962
        %v2041 = vunpack.c.l.b16 %v1963
        %v2042 = vunpack.c.l.b16 %v1964
        %v2043 = vunpack.c.h.b16 %v1964
        %v2044 = vunpack.c.l.b16 %v1965
        %v2045 = vunpack.c.l.b16 %v1966
        %v2046 = vunpack.c.h.b16 %v1966
        %v2047 = vunpack.c.l.b16 %v1967
        %v2048 = vpack.c.b16 %v2015, %v2012
        %v2049 = vpack.c.b16 %v2016, %v2013
        %v2050 = vpack.c.b16 %v2017, %v2014
        %v2051 = vpack.c.b16 %v2021, %v2018
        %v2052 = vpack.c.b16 %v2022, %v2019
        %v2053 = vpack.c.b16 %v2023, %v2020
        %v2054 = vpack.c.b16 %v2027, %v2024
        %v2055 = vpack.c.b16 %v2028, %v2025
        %v2056 = vpack.c.b16 %v2029, %v2026
        %v2057 = vpack.c.b16 %v2033, %v2030
        %v2058 = vpack.c.b16 %v2034, %v2031
        %v2059 = vpack.c.b16 %v2035, %v2032
        %v2060 = vpack.c.b16 %v2039, %v2036
        %v2061 = vpack.c.b16 %v2040, %v2037
        %v2062 = vpack.c.b16 %v2041, %v2038
        %v2063 = vpack.c.b16 %v2045, %v2042
        %v2064 = vpack.c.b16 %v2046, %v2043
        %v2065 = vpack.c.b16 %v2047, %v2044
        %2066 = vrot.lane.b32.xlu0 %v2048, 124
        %v2067 = vpop.permute.xlu0 %2066
        %2068 = vrot.lane.b32.xlu0 %v2049, 124
        %v2069 = vpop.permute.xlu0 %2068
        %2070 = vrot.lane.b32.xlu0 %v2050, 124
        %v2071 = vpop.permute.xlu0 %2070
        %2072 = vrot.lane.b32.xlu0 %v2051, 124
        %v2073 = vpop.permute.xlu0 %2072
        %2074 = vrot.lane.b32.xlu0 %v2052, 124
        %v2075 = vpop.permute.xlu0 %2074
        %2076 = vrot.lane.b32.xlu0 %v2053, 124
        %v2077 = vpop.permute.xlu0 %2076
        %2078 = vrot.lane.b32.xlu0 %v2054, 124
        %v2079 = vpop.permute.xlu0 %2078
        %2080 = vrot.lane.b32.xlu0 %v2055, 124
        %v2081 = vpop.permute.xlu0 %2080
        %2082 = vrot.lane.b32.xlu0 %v2056, 124
        %v2083 = vpop.permute.xlu0 %2082
        %2084 = vrot.lane.b32.xlu0 %v2057, 124
        %v2085 = vpop.permute.xlu0 %2084
        %2086 = vrot.lane.b32.xlu0 %v2058, 124
        %v2087 = vpop.permute.xlu0 %2086
        %2088 = vrot.lane.b32.xlu0 %v2059, 124
        %v2089 = vpop.permute.xlu0 %2088
        %2090 = vrot.lane.b32.xlu0 %v2060, 124
        %v2091 = vpop.permute.xlu0 %2090
        %2092 = vrot.lane.b32.xlu0 %v2061, 124
        %v2093 = vpop.permute.xlu0 %2092
        %2094 = vrot.lane.b32.xlu0 %v2062, 124
        %v2095 = vpop.permute.xlu0 %2094
        %2096 = vrot.lane.b32.xlu0 %v2063, 124
        %v2097 = vpop.permute.xlu0 %2096
        %2098 = vrot.lane.b32.xlu0 %v2064, 124
        %v2099 = vpop.permute.xlu0 %2098
        %2100 = vrot.lane.b32.xlu0 %v2065, 124
        %v2101 = vpop.permute.xlu0 %2100
        %vm2102 = vcmask 1014784
        %v2103 = vsel %vm2102, %v2067, %v2069
        %v2104 = vsel %vm2102, %v2069, %v2071
        %v2105 = vsel %vm2102, %v2073, %v2075
        %v2106 = vsel %vm2102, %v2075, %v2077
        %v2107 = vsel %vm2102, %v2079, %v2081
        %v2108 = vsel %vm2102, %v2081, %v2083
        %v2109 = vsel %vm2102, %v2085, %v2087
        %v2110 = vsel %vm2102, %v2087, %v2089
        %v2111 = vsel %vm2102, %v2091, %v2093
        %v2112 = vsel %vm2102, %v2093, %v2095
        %v2113 = vsel %vm2102, %v2097, %v2099
        %v2114 = vsel %vm2102, %v2099, %v2101
        %v2128 = vsel %vm1539, %v1984, 0
        %v2131 = vsel %vm1539, %v1985, 0
        %v2134 = vsel %vm1539, %v1986, 0
        %v2137 = vsel %vm1539, %v1987, 0
        %2139 = vmatpush.bf16.msra.mxu0 0
        %2140 = vmatpush.bf16.msra.mxu0 0
        %2141 = vmatpush.bf16.msra.mxu0 %v2113
        %2142 = vmatpush.bf16.msra.mxu0 %v2111
        %2143 = vmatpush.bf16.msra.mxu0 %v2109
        %2144 = vmatpush.bf16.msra.mxu0 %v2107
        %2145 = vmatpush.bf16.msra.mxu0 %v2105
        %2146 = vmatpush.bf16.msra.mxu0 %v2103
        %2147 = vmatmul.bf16.gmra.mxu0 %v2128
        %v2148 = vpop.f32.mrf.mxu0
        %v2149 = vadd.f32 0.0, %v2148
        %v2150 = vpop.f32.mrf.mxu0
        %v2151 = vadd.f32 0.0, %v2150
        %2152 = vmatmul.bf16.gmra.mxu0 %v2131
        %v2153 = vpop.f32.mrf.mxu0
        %v2154 = vadd.f32 0.0, %v2153
        %v2155 = vpop.f32.mrf.mxu0
        %v2156 = vadd.f32 0.0, %v2155
        %2157 = vmatmul.bf16.gmra.mxu0 %v2134
        %v2158 = vpop.f32.mrf.mxu0
        %v2159 = vadd.f32 0.0, %v2158
        %v2160 = vpop.f32.mrf.mxu0
        %v2161 = vadd.f32 0.0, %v2160
        %2162 = vmatmul.bf16.gmra.mxu0 %v2137
        %v2163 = vpop.f32.mrf.mxu0
        %v2164 = vadd.f32 0.0, %v2163
        %v2165 = vpop.f32.mrf.mxu0
        %v2166 = vadd.f32 0.0, %v2165
        %2167 = vdwg.mxu0
        %2168 = vmatpush.bf16.msra.mxu0 0
        %2169 = vmatpush.bf16.msra.mxu0 0
        %2170 = vmatpush.bf16.msra.mxu0 %v2114
        %2171 = vmatpush.bf16.msra.mxu0 %v2112
        %2172 = vmatpush.bf16.msra.mxu0 %v2110
        %2173 = vmatpush.bf16.msra.mxu0 %v2108
        %2174 = vmatpush.bf16.msra.mxu0 %v2106
        %2175 = vmatpush.bf16.msra.mxu0 %v2104
        %2176 = vmatmul.bf16.gmra.mxu0 %v2128
        %v2177 = vpop.f32.mrf.mxu0
        %v2178 = vadd.f32 0.0, %v2177
        %v2179 = vpop.f32.mrf.mxu0
        %v2180 = vadd.f32 0.0, %v2179
        %2181 = vmatmul.bf16.gmra.mxu0 %v2131
        %v2182 = vpop.f32.mrf.mxu0
        %v2183 = vadd.f32 0.0, %v2182
        %v2184 = vpop.f32.mrf.mxu0
        %v2185 = vadd.f32 0.0, %v2184
        %2186 = vmatmul.bf16.gmra.mxu0 %v2134
        %v2187 = vpop.f32.mrf.mxu0
        %v2188 = vadd.f32 0.0, %v2187
        %v2189 = vpop.f32.mrf.mxu0
        %v2190 = vadd.f32 0.0, %v2189
        %2191 = vmatmul.bf16.gmra.mxu0 %v2137
        %v2192 = vpop.f32.mrf.mxu0
        %v2193 = vadd.f32 0.0, %v2192
        %v2194 = vpop.f32.mrf.mxu0
        %v2195 = vadd.f32 0.0, %v2194
        %2196 = vdwg.mxu0
        %v2197 = vld [vmem:[#allocation4] sm:$0xff]
        %v2198 = vld [vmem:[#allocation4 + $0x8] sm:$0xff]
        %v2199 = vld [vmem:[#allocation4 + $0x10] sm:$0xff]
        %v2200 = vld [vmem:[#allocation4 + $0x18] sm:$0xff]
        %v2201 = vld [vmem:[#allocation4 + $0x20] sm:$0xff]
        %v2202 = vld [vmem:[#allocation4 + $0x28] sm:$0xff]
        %v2203 = vld [vmem:[#allocation4 + $0x30] sm:$0xff]
        %v2204 = vld [vmem:[#allocation4 + $0x38] sm:$0xff]
        %v2205 = vld [vmem:[#allocation4 + $0x40] sm:$0xff]
        %v2206 = vld [vmem:[#allocation4 + $0x48] sm:$0xff]
        %v2207 = vld [vmem:[#allocation4 + $0x50] sm:$0xff]
        %v2208 = vld [vmem:[#allocation4 + $0x58] sm:$0xff]
        %v2209 = vld [vmem:[#allocation4 + $0x60] sm:$0xff]
        %v2210 = vld [vmem:[#allocation4 + $0x68] sm:$0xff]
        %v2211 = vld [vmem:[#allocation4 + $0x70] sm:$0xff]
        %v2212 = vld [vmem:[#allocation4 + $0x78] sm:$0xff]
        %v2213 = vadd.f32 %v2197, %v2149
        %v2214 = vadd.f32 %v2198, %v2178
        %v2215 = vadd.f32 %v2199, %v2151
        %v2216 = vadd.f32 %v2200, %v2180
        %v2217 = vadd.f32 %v2201, %v2154
        %v2218 = vadd.f32 %v2202, %v2183
        %v2219 = vadd.f32 %v2203, %v2156
        %v2220 = vadd.f32 %v2204, %v2185
        %v2221 = vadd.f32 %v2205, %v2159
        %v2222 = vadd.f32 %v2206, %v2188
        %v2223 = vadd.f32 %v2207, %v2161
        %v2224 = vadd.f32 %v2208, %v2190
        %v2225 = vadd.f32 %v2209, %v2164
        %v2226 = vadd.f32 %v2210, %v2193
        %v2227 = vadd.f32 %v2211, %v2166
        %v2228 = vadd.f32 %v2212, %v2195
        %2229 = vst [vmem:[#allocation4] sm:$0xff] %v2213
        %2230 = vst [vmem:[#allocation4 + $0x8] sm:$0xff] %v2214
        %2231 = vst [vmem:[#allocation4 + $0x10] sm:$0xff] %v2215
        %2232 = vst [vmem:[#allocation4 + $0x18] sm:$0xff] %v2216
        %2233 = vst [vmem:[#allocation4 + $0x20] sm:$0xff] %v2217
        %2234 = vst [vmem:[#allocation4 + $0x28] sm:$0xff] %v2218
        %2235 = vst [vmem:[#allocation4 + $0x30] sm:$0xff] %v2219
        %2236 = vst [vmem:[#allocation4 + $0x38] sm:$0xff] %v2220
        %2237 = vst [vmem:[#allocation4 + $0x40] sm:$0xff] %v2221
        %2238 = vst [vmem:[#allocation4 + $0x48] sm:$0xff] %v2222
        %2239 = vst [vmem:[#allocation4 + $0x50] sm:$0xff] %v2223
        %2240 = vst [vmem:[#allocation4 + $0x58] sm:$0xff] %v2224
        %2241 = vst [vmem:[#allocation4 + $0x60] sm:$0xff] %v2225
        %2242 = vst [vmem:[#allocation4 + $0x68] sm:$0xff] %v2226
        %2243 = vst [vmem:[#allocation4 + $0x70] sm:$0xff] %v2227
        %2244 = vst [vmem:[#allocation4 + $0x78] sm:$0xff] %v2228
        %v2245 = vld [vmem:[#allocation4] sm:$0xff]
        %v2246 = vld [vmem:[#allocation4 + $0x8] sm:$0xff]
        %v2247 = vld [vmem:[#allocation4 + $0x10] sm:$0xff]
        %v2248 = vld [vmem:[#allocation4 + $0x18] sm:$0xff]
        %v2249 = vld [vmem:[#allocation4 + $0x20] sm:$0xff]
        %v2250 = vld [vmem:[#allocation4 + $0x28] sm:$0xff]
        %v2251 = vld [vmem:[#allocation4 + $0x30] sm:$0xff]
        %v2252 = vld [vmem:[#allocation4 + $0x38] sm:$0xff]
        %v2253 = vld [vmem:[#allocation4 + $0x40] sm:$0xff]
        %v2254 = vld [vmem:[#allocation4 + $0x48] sm:$0xff]
        %v2255 = vld [vmem:[#allocation4 + $0x50] sm:$0xff]
        %v2256 = vld [vmem:[#allocation4 + $0x58] sm:$0xff]
        %v2257 = vld [vmem:[#allocation4 + $0x60] sm:$0xff]
        %v2258 = vld [vmem:[#allocation4 + $0x68] sm:$0xff]
        %v2259 = vld [vmem:[#allocation4 + $0x70] sm:$0xff]
        %v2260 = vld [vmem:[#allocation4 + $0x78] sm:$0xff]
        %s2261 = scalar_lea.vmem %s5, 128
        %v2262 = vld [vmem:[%s2261] sm:$0xff]
        %v2263 = vld [vmem:[%s2261 + $0x8] sm:$0xff]
        %v2264 = vld [vmem:[%s2261 + $0x10] sm:$0xff]
        %v2265 = vld [vmem:[%s2261 + $0x18] sm:$0xff]
        %v2266 = vld [vmem:[%s2261 + $0x20] sm:$0xff]
        %v2267 = vld [vmem:[%s2261 + $0x28] sm:$0xff]
        %v2268 = vld [vmem:[%s2261 + $0x30] sm:$0xff]
        %v2269 = vld [vmem:[%s2261 + $0x38] sm:$0xff]
        %2271 = vset.pattern.permute.xlu0 0
        %2272 = vperm.xlu0 %2271, %v2262
        %v2273 = vpop.permute.xlu0 %2272
        %2276 = vset.pattern.permute.xlu0 0
        %2277 = vperm.xlu0 %2276, %v2263
        %v2278 = vpop.permute.xlu0 %2277
        %2281 = vset.pattern.permute.xlu0 0
        %2282 = vperm.xlu0 %2281, %v2264
        %v2283 = vpop.permute.xlu0 %2282
        %2286 = vset.pattern.permute.xlu0 0
        %2287 = vperm.xlu0 %2286, %v2265
        %v2288 = vpop.permute.xlu0 %2287
        %2291 = vset.pattern.permute.xlu0 0
        %2292 = vperm.xlu0 %2291, %v2266
        %v2293 = vpop.permute.xlu0 %2292
        %2296 = vset.pattern.permute.xlu0 0
        %2297 = vperm.xlu0 %2296, %v2267
        %v2298 = vpop.permute.xlu0 %2297
        %2301 = vset.pattern.permute.xlu0 0
        %2302 = vperm.xlu0 %2301, %v2268
        %v2303 = vpop.permute.xlu0 %2302
        %2306 = vset.pattern.permute.xlu0 0
        %2307 = vperm.xlu0 %2306, %v2269
        %v2308 = vpop.permute.xlu0 %2307
        %v2310 = vadd.f32 %v2245, %v2273
        %v2311 = vadd.f32 %v2246, %v2273
        %v2312 = vadd.f32 %v2247, %v2278
        %v2313 = vadd.f32 %v2248, %v2278
        %v2314 = vadd.f32 %v2249, %v2283
        %v2315 = vadd.f32 %v2250, %v2283
        %v2316 = vadd.f32 %v2251, %v2288
        %v2317 = vadd.f32 %v2252, %v2288
        %v2318 = vadd.f32 %v2253, %v2293
        %v2319 = vadd.f32 %v2254, %v2293
        %v2320 = vadd.f32 %v2255, %v2298
        %v2321 = vadd.f32 %v2256, %v2298
        %v2322 = vadd.f32 %v2257, %v2303
        %v2323 = vadd.f32 %v2258, %v2303
        %v2324 = vadd.f32 %v2259, %v2308
        %v2325 = vadd.f32 %v2260, %v2308
        %v2326 = vmax.f32 %v2310, 0.0
        %v2327 = vmax.f32 %v2311, 0.0
        %v2328 = vmax.f32 %v2312, 0.0
        %v2329 = vmax.f32 %v2313, 0.0
        %v2330 = vmax.f32 %v2314, 0.0
        %v2331 = vmax.f32 %v2315, 0.0
        %v2332 = vmax.f32 %v2316, 0.0
        %v2333 = vmax.f32 %v2317, 0.0
        %v2334 = vmax.f32 %v2318, 0.0
        %v2335 = vmax.f32 %v2319, 0.0
        %v2336 = vmax.f32 %v2320, 0.0
        %v2337 = vmax.f32 %v2321, 0.0
        %v2338 = vmax.f32 %v2322, 0.0
        %v2339 = vmax.f32 %v2323, 0.0
        %v2340 = vmax.f32 %v2324, 0.0
        %v2341 = vmax.f32 %v2325, 0.0
        %v2342 = vpack.c.bf16 %v2327, %v2326
        %v2343 = vpack.c.bf16 %v2329, %v2328
        %v2344 = vpack.c.bf16 %v2331, %v2330
        %v2345 = vpack.c.bf16 %v2333, %v2332
        %v2346 = vpack.c.bf16 %v2335, %v2334
        %v2347 = vpack.c.bf16 %v2337, %v2336
        %v2348 = vpack.c.bf16 %v2339, %v2338
        %v2349 = vpack.c.bf16 %v2341, %v2340
        %2350 = vst [vmem:[#allocation2] sm:$0xff] %v2342
        %2351 = vst [vmem:[#allocation2 + $0xc] sm:$0xff] %v2343
        %2352 = vst [vmem:[#allocation2 + $0x18] sm:$0xff] %v2344
        %2353 = vst [vmem:[#allocation2 + $0x24] sm:$0xff] %v2345
        %2354 = vst [vmem:[#allocation2 + $0x30] sm:$0xff] %v2346
        %2355 = vst [vmem:[#allocation2 + $0x3c] sm:$0xff] %v2347
        %2356 = vst [vmem:[#allocation2 + $0x48] sm:$0xff] %v2348
        %2357 = vst [vmem:[#allocation2 + $0x54] sm:$0xff] %v2349
        %v2358 = vld [vmem:[#allocation2] sm:$0xff]
        %v2359 = vld [vmem:[#allocation2 + $0x8] sm:$0xf]
        %v2360 = vld [vmem:[#allocation2 + $0xc] sm:$0xff]
        %v2361 = vld [vmem:[#allocation2 + $0x14] sm:$0xf]
        %v2362 = vld [vmem:[#allocation2 + $0x18] sm:$0xff]
        %v2363 = vld [vmem:[#allocation2 + $0x20] sm:$0xf]
        %v2364 = vld [vmem:[#allocation2 + $0x24] sm:$0xff]
        %v2365 = vld [vmem:[#allocation2 + $0x2c] sm:$0xf]
        %v2366 = vld [vmem:[#allocation2 + $0x30] sm:$0xff]
        %v2367 = vld [vmem:[#allocation2 + $0x38] sm:$0xf]
        %v2368 = vld [vmem:[#allocation2 + $0x3c] sm:$0xff]
        %v2369 = vld [vmem:[#allocation2 + $0x44] sm:$0xf]
        %v2370 = vld [vmem:[#allocation2 + $0x48] sm:$0xff]
        %v2371 = vld [vmem:[#allocation2 + $0x50] sm:$0xf]
        %v2372 = vld [vmem:[#allocation2 + $0x54] sm:$0xff]
        %v2373 = vld [vmem:[#allocation2 + $0x5c] sm:$0xf]
        %2374 = vst [vmem:[#allocation3] sm:$0xff] %v2358
        %2375 = vst.msk [vmem:[#allocation3 + $0x8] sm:$0xf] %vm291, %v2359
        %2376 = vst [vmem:[#allocation3 + $0xc] sm:$0xff] %v2360
        %2377 = vst.msk [vmem:[#allocation3 + $0x14] sm:$0xf] %vm291, %v2361
        %2378 = vst [vmem:[#allocation3 + $0x18] sm:$0xff] %v2362
        %2379 = vst.msk [vmem:[#allocation3 + $0x20] sm:$0xf] %vm291, %v2363
        %2380 = vst [vmem:[#allocation3 + $0x24] sm:$0xff] %v2364
        %2381 = vst.msk [vmem:[#allocation3 + $0x2c] sm:$0xf] %vm291, %v2365
        %2382 = vst [vmem:[#allocation3 + $0x30] sm:$0xff] %v2366
        %2383 = vst.msk [vmem:[#allocation3 + $0x38] sm:$0xf] %vm291, %v2367
        %2384 = vst [vmem:[#allocation3 + $0x3c] sm:$0xff] %v2368
        %2385 = vst.msk [vmem:[#allocation3 + $0x44] sm:$0xf] %vm291, %v2369
        %2386 = vst [vmem:[#allocation3 + $0x48] sm:$0xff] %v2370
        %2387 = vst.msk [vmem:[#allocation3 + $0x50] sm:$0xf] %vm291, %v2371
        %2388 = vst [vmem:[#allocation3 + $0x54] sm:$0xff] %v2372
        %2389 = vst.msk [vmem:[#allocation3 + $0x5c] sm:$0xf] %vm291, %v2373
        %v2390 = vld [vmem:[#allocation2] sm:$0xff]
        %v2391 = vld [vmem:[#allocation2 + $0x8] sm:$0xf]
        %v2392 = vld [vmem:[#allocation2 + $0xc] sm:$0xff]
        %v2393 = vld [vmem:[#allocation2 + $0x14] sm:$0xf]
        %v2394 = vld [vmem:[#allocation2 + $0x18] sm:$0xff]
        %v2395 = vld [vmem:[#allocation2 + $0x20] sm:$0xf]
        %v2396 = vld [vmem:[#allocation2 + $0x24] sm:$0xff]
        %v2397 = vld [vmem:[#allocation2 + $0x2c] sm:$0xf]
        %v2398 = vld [vmem:[#allocation2 + $0x30] sm:$0xff]
        %v2399 = vld [vmem:[#allocation2 + $0x38] sm:$0xf]
        %v2400 = vld [vmem:[#allocation2 + $0x3c] sm:$0xff]
        %v2401 = vld [vmem:[#allocation2 + $0x44] sm:$0xf]
        %v2402 = vld [vmem:[#allocation2 + $0x48] sm:$0xff]
        %v2403 = vld [vmem:[#allocation2 + $0x50] sm:$0xf]
        %v2404 = vld [vmem:[#allocation2 + $0x54] sm:$0xff]
        %v2405 = vld [vmem:[#allocation2 + $0x5c] sm:$0xf]
        %2422 = vrot.lane.b32.xlu0 %v2390, 96
        %v2423 = vpop.permute.xlu0 %2422
        %2424 = vrot.lane.b32.xlu0 %v2391, 96
        %v2425 = vpop.permute.xlu0 %2424
        %2426 = vrot.lane.b32.xlu0 %v2392, 96
        %v2427 = vpop.permute.xlu0 %2426
        %2428 = vrot.lane.b32.xlu0 %v2393, 96
        %v2429 = vpop.permute.xlu0 %2428
        %2430 = vrot.lane.b32.xlu0 %v2394, 96
        %v2431 = vpop.permute.xlu0 %2430
        %2432 = vrot.lane.b32.xlu0 %v2395, 96
        %v2433 = vpop.permute.xlu0 %2432
        %2434 = vrot.lane.b32.xlu0 %v2396, 96
        %v2435 = vpop.permute.xlu0 %2434
        %2436 = vrot.lane.b32.xlu0 %v2397, 96
        %v2437 = vpop.permute.xlu0 %2436
        %2438 = vrot.lane.b32.xlu0 %v2398, 96
        %v2439 = vpop.permute.xlu0 %2438
        %2440 = vrot.lane.b32.xlu0 %v2399, 96
        %v2441 = vpop.permute.xlu0 %2440
        %2442 = vrot.lane.b32.xlu0 %v2400, 96
        %v2443 = vpop.permute.xlu0 %2442
        %2444 = vrot.lane.b32.xlu0 %v2401, 96
        %v2445 = vpop.permute.xlu0 %2444
        %2446 = vrot.lane.b32.xlu0 %v2402, 96
        %v2447 = vpop.permute.xlu0 %2446
        %2448 = vrot.lane.b32.xlu0 %v2403, 96
        %v2449 = vpop.permute.xlu0 %2448
        %2450 = vrot.lane.b32.xlu0 %v2404, 96
        %v2451 = vpop.permute.xlu0 %2450
        %2452 = vrot.lane.b32.xlu0 %v2405, 96
        %v2453 = vpop.permute.xlu0 %2452
        %v2454 = vrot.slane %v2423, 4
        %v2455 = vrot.slane %v2425, 4
        %v2456 = vrot.slane %v2427, 4
        %v2457 = vrot.slane %v2429, 4
        %v2458 = vrot.slane %v2431, 4
        %v2459 = vrot.slane %v2433, 4
        %v2460 = vrot.slane %v2435, 4
        %v2461 = vrot.slane %v2437, 4
        %v2462 = vrot.slane %v2439, 4
        %v2463 = vrot.slane %v2441, 4
        %v2464 = vrot.slane %v2443, 4
        %v2465 = vrot.slane %v2445, 4
        %v2466 = vrot.slane %v2447, 4
        %v2467 = vrot.slane %v2449, 4
        %v2468 = vrot.slane %v2451, 4
        %v2469 = vrot.slane %v2453, 4
        %v2470 = vsel %vm315, %v2454, %v2455
        %v2471 = vsel %vm350, %v2423, %v2470
        %v2472 = vsel %vm315, %v2456, %v2457
        %v2473 = vsel %vm350, %v2427, %v2472
        %v2474 = vsel %vm315, %v2458, %v2459
        %v2475 = vsel %vm350, %v2431, %v2474
        %v2476 = vsel %vm315, %v2460, %v2461
        %v2477 = vsel %vm350, %v2435, %v2476
        %v2478 = vsel %vm315, %v2462, %v2463
        %v2479 = vsel %vm350, %v2439, %v2478
        %v2480 = vsel %vm315, %v2464, %v2465
        %v2481 = vsel %vm350, %v2443, %v2480
        %v2482 = vsel %vm315, %v2466, %v2467
        %v2483 = vsel %vm350, %v2447, %v2482
        %v2484 = vsel %vm315, %v2468, %v2469
        %v2485 = vsel %vm350, %v2451, %v2484
        %2502 = vst [vmem:[#allocation3 + $0x60] sm:$0xff] %v2471
        %2503 = vst.msk [vmem:[#allocation3 + $0x68] sm:$0xf] %vm291, %v2425
        %2504 = vst [vmem:[#allocation3 + $0x6c] sm:$0xff] %v2473
        %2505 = vst.msk [vmem:[#allocation3 + $0x74] sm:$0xf] %vm291, %v2429
        %2506 = vst [vmem:[#allocation3 + $0x78] sm:$0xff] %v2475
        %2507 = vst.msk [vmem:[#allocation3 + $0x80] sm:$0xf] %vm291, %v2433
        %2508 = vst [vmem:[#allocation3 + $0x84] sm:$0xff] %v2477
        %2509 = vst.msk [vmem:[#allocation3 + $0x8c] sm:$0xf] %vm291, %v2437
        %2510 = vst [vmem:[#allocation3 + $0x90] sm:$0xff] %v2479
        %2511 = vst.msk [vmem:[#allocation3 + $0x98] sm:$0xf] %vm291, %v2441
        %2512 = vst [vmem:[#allocation3 + $0x9c] sm:$0xff] %v2481
        %2513 = vst.msk [vmem:[#allocation3 + $0xa4] sm:$0xf] %vm291, %v2445
        %2514 = vst [vmem:[#allocation3 + $0xa8] sm:$0xff] %v2483
        %2515 = vst.msk [vmem:[#allocation3 + $0xb0] sm:$0xf] %vm291, %v2449
        %2516 = vst [vmem:[#allocation3 + $0xb4] sm:$0xff] %v2485
        %2517 = vst.msk [vmem:[#allocation3 + $0xbc] sm:$0xf] %vm291, %v2453
        %v2518 = vld [vmem:[#allocation2] sm:$0xff]
        %v2519 = vld [vmem:[#allocation2 + $0x8] sm:$0xf]
        %v2520 = vld [vmem:[#allocation2 + $0xc] sm:$0xff]
        %v2521 = vld [vmem:[#allocation2 + $0x14] sm:$0xf]
        %v2522 = vld [vmem:[#allocation2 + $0x18] sm:$0xff]
        %v2523 = vld [vmem:[#allocation2 + $0x20] sm:$0xf]
        %v2524 = vld [vmem:[#allocation2 + $0x24] sm:$0xff]
        %v2525 = vld [vmem:[#allocation2 + $0x2c] sm:$0xf]
        %v2526 = vld [vmem:[#allocation2 + $0x30] sm:$0xff]
        %v2527 = vld [vmem:[#allocation2 + $0x38] sm:$0xf]
        %v2528 = vld [vmem:[#allocation2 + $0x3c] sm:$0xff]
        %v2529 = vld [vmem:[#allocation2 + $0x44] sm:$0xf]
        %v2530 = vld [vmem:[#allocation2 + $0x48] sm:$0xff]
        %v2531 = vld [vmem:[#allocation2 + $0x50] sm:$0xf]
        %v2532 = vld [vmem:[#allocation2 + $0x54] sm:$0xff]
        %v2533 = vld [vmem:[#allocation2 + $0x5c] sm:$0xf]
        %2550 = vrot.lane.b32.xlu0 %v2518, 64
        %v2551 = vpop.permute.xlu0 %2550
        %2552 = vrot.lane.b32.xlu0 %v2519, 64
        %v2553 = vpop.permute.xlu0 %2552
        %2554 = vrot.lane.b32.xlu0 %v2520, 64
        %v2555 = vpop.permute.xlu0 %2554
        %2556 = vrot.lane.b32.xlu0 %v2521, 64
        %v2557 = vpop.permute.xlu0 %2556
        %2558 = vrot.lane.b32.xlu0 %v2522, 64
        %v2559 = vpop.permute.xlu0 %2558
        %2560 = vrot.lane.b32.xlu0 %v2523, 64
        %v2561 = vpop.permute.xlu0 %2560
        %2562 = vrot.lane.b32.xlu0 %v2524, 64
        %v2563 = vpop.permute.xlu0 %2562
        %2564 = vrot.lane.b32.xlu0 %v2525, 64
        %v2565 = vpop.permute.xlu0 %2564
        %2566 = vrot.lane.b32.xlu0 %v2526, 64
        %v2567 = vpop.permute.xlu0 %2566
        %2568 = vrot.lane.b32.xlu0 %v2527, 64
        %v2569 = vpop.permute.xlu0 %2568
        %2570 = vrot.lane.b32.xlu0 %v2528, 64
        %v2571 = vpop.permute.xlu0 %2570
        %2572 = vrot.lane.b32.xlu0 %v2529, 64
        %v2573 = vpop.permute.xlu0 %2572
        %2574 = vrot.lane.b32.xlu0 %v2530, 64
        %v2575 = vpop.permute.xlu0 %2574
        %2576 = vrot.lane.b32.xlu0 %v2531, 64
        %v2577 = vpop.permute.xlu0 %2576
        %2578 = vrot.lane.b32.xlu0 %v2532, 64
        %v2579 = vpop.permute.xlu0 %2578
        %2580 = vrot.lane.b32.xlu0 %v2533, 64
        %v2581 = vpop.permute.xlu0 %2580
        %v2582 = vrot.slane %v2551, 4
        %v2583 = vrot.slane %v2553, 4
        %v2584 = vrot.slane %v2555, 4
        %v2585 = vrot.slane %v2557, 4
        %v2586 = vrot.slane %v2559, 4
        %v2587 = vrot.slane %v2561, 4
        %v2588 = vrot.slane %v2563, 4
        %v2589 = vrot.slane %v2565, 4
        %v2590 = vrot.slane %v2567, 4
        %v2591 = vrot.slane %v2569, 4
        %v2592 = vrot.slane %v2571, 4
        %v2593 = vrot.slane %v2573, 4
        %v2594 = vrot.slane %v2575, 4
        %v2595 = vrot.slane %v2577, 4
        %v2596 = vrot.slane %v2579, 4
        %v2597 = vrot.slane %v2581, 4
        %v2598 = vsel %vm315, %v2582, %v2583
        %v2599 = vsel %vm1415, %v2551, %v2598
        %v2600 = vsel %vm315, %v2584, %v2585
        %v2601 = vsel %vm1415, %v2555, %v2600
        %v2602 = vsel %vm315, %v2586, %v2587
        %v2603 = vsel %vm1415, %v2559, %v2602
        %v2604 = vsel %vm315, %v2588, %v2589
        %v2605 = vsel %vm1415, %v2563, %v2604
        %v2606 = vsel %vm315, %v2590, %v2591
        %v2607 = vsel %vm1415, %v2567, %v2606
        %v2608 = vsel %vm315, %v2592, %v2593
        %v2609 = vsel %vm1415, %v2571, %v2608
        %v2610 = vsel %vm315, %v2594, %v2595
        %v2611 = vsel %vm1415, %v2575, %v2610
        %v2612 = vsel %vm315, %v2596, %v2597
        %v2613 = vsel %vm1415, %v2579, %v2612
        %2630 = vst [vmem:[#allocation3 + $0xc0] sm:$0xff] %v2599
        %2631 = vst.msk [vmem:[#allocation3 + $0xc8] sm:$0xf] %vm291, %v2553
        %2632 = vst [vmem:[#allocation3 + $0xcc] sm:$0xff] %v2601
        %2633 = vst.msk [vmem:[#allocation3 + $0xd4] sm:$0xf] %vm291, %v2557
        %2634 = vst [vmem:[#allocation3 + $0xd8] sm:$0xff] %v2603
        %2635 = vst.msk [vmem:[#allocation3 + $0xe0] sm:$0xf] %vm291, %v2561
        %2636 = vst [vmem:[#allocation3 + $0xe4] sm:$0xff] %v2605
        %2637 = vst.msk [vmem:[#allocation3 + $0xec] sm:$0xf] %vm291, %v2565
        %2638 = vst [vmem:[#allocation3 + $0xf0] sm:$0xff] %v2607
        %2639 = vst.msk [vmem:[#allocation3 + $0xf8] sm:$0xf] %vm291, %v2569
        %2640 = vst [vmem:[#allocation3 + $0xfc] sm:$0xff] %v2609
        %2641 = vst.msk [vmem:[#allocation3 + $0x104] sm:$0xf] %vm291, %v2573
        %2642 = vst [vmem:[#allocation3 + $0x108] sm:$0xff] %v2611
        %2643 = vst.msk [vmem:[#allocation3 + $0x110] sm:$0xf] %vm291, %v2577
        %2644 = vst [vmem:[#allocation3 + $0x114] sm:$0xff] %v2613
        %2645 = vst.msk [vmem:[#allocation3 + $0x11c] sm:$0xf] %vm291, %v2581
        %v2646 = vld [vmem:[%s4] sm:$0xff]
        %v2647 = vld [vmem:[%s4 + $0x8] sm:$0xff]
        %v2648 = vld [vmem:[%s4 + $0x10] sm:$0xff]
        %v2649 = vld [vmem:[%s4 + $0x18] sm:$0xff]
        %v2650 = vld [vmem:[%s4 + $0x20] sm:$0xff]
        %v2651 = vld [vmem:[%s4 + $0x28] sm:$0xff]
        %v2652 = vld [vmem:[%s4 + $0x30] sm:$0xff]
        %v2653 = vld [vmem:[%s4 + $0x38] sm:$0xff]
        %v2654 = vld [vmem:[#allocation3] sm:$0xf]
        %v2655 = vld [vmem:[#allocation3 + $0xc] sm:$0xf]
        %v2656 = vld [vmem:[#allocation3 + $0x18] sm:$0xf]
        %v2657 = vld [vmem:[#allocation3 + $0x24] sm:$0xf]
        %v2658 = vld [vmem:[#allocation3 + $0x30] sm:$0xf]
        %v2659 = vld [vmem:[#allocation3 + $0x3c] sm:$0xf]
        %v2660 = vld [vmem:[#allocation3 + $0x48] sm:$0xf]
        %v2661 = vld [vmem:[#allocation3 + $0x54] sm:$0xf]
        %v2662 = vld [vmem:[#allocation3 + $0x60] sm:$0xf]
        %v2663 = vld [vmem:[#allocation3 + $0x6c] sm:$0xf]
        %v2664 = vld [vmem:[#allocation3 + $0x78] sm:$0xf]
        %v2665 = vld [vmem:[#allocation3 + $0x84] sm:$0xf]
        %v2666 = vld [vmem:[#allocation3 + $0x90] sm:$0xf]
        %v2667 = vld [vmem:[#allocation3 + $0x9c] sm:$0xf]
        %v2668 = vld [vmem:[#allocation3 + $0xa8] sm:$0xf]
        %v2669 = vld [vmem:[#allocation3 + $0xb4] sm:$0xf]
        %v2670 = vld [vmem:[#allocation3 + $0xc0] sm:$0xf]
        %v2671 = vld [vmem:[#allocation3 + $0xcc] sm:$0xf]
        %v2672 = vld [vmem:[#allocation3 + $0xd8] sm:$0xf]
        %v2673 = vld [vmem:[#allocation3 + $0xe4] sm:$0xf]
        %v2674 = vld [vmem:[#allocation3 + $0xf0] sm:$0xf]
        %v2675 = vld [vmem:[#allocation3 + $0xfc] sm:$0xf]
        %v2676 = vld [vmem:[#allocation3 + $0x108] sm:$0xf]
        %v2677 = vld [vmem:[#allocation3 + $0x114] sm:$0xf]
        %v2686 = vunpack.c.l.b16 %v2646
        %v2687 = vunpack.c.h.b16 %v2646
        %v2688 = vunpack.c.l.b16 %v2647
        %v2689 = vunpack.c.h.b16 %v2647
        %v2690 = vunpack.c.l.b16 %v2648
        %v2691 = vunpack.c.h.b16 %v2648
        %v2692 = vunpack.c.l.b16 %v2649
        %v2693 = vunpack.c.h.b16 %v2649
        %v2694 = vunpack.c.l.b16 %v2650
        %v2695 = vunpack.c.h.b16 %v2650
        %v2696 = vunpack.c.l.b16 %v2651
        %v2697 = vunpack.c.h.b16 %v2651
        %v2698 = vunpack.c.l.b16 %v2652
        %v2699 = vunpack.c.h.b16 %v2652
        %v2700 = vunpack.c.l.b16 %v2653
        %v2701 = vunpack.c.h.b16 %v2653
        %v2702 = vpack.c.b16 %v2688, %v2686
        %v2703 = vpack.c.b16 %v2689, %v2687
        %v2704 = vpack.c.b16 %v2692, %v2690
        %v2705 = vpack.c.b16 %v2693, %v2691
        %v2706 = vpack.c.b16 %v2696, %v2694
        %v2707 = vpack.c.b16 %v2697, %v2695
        %v2708 = vpack.c.b16 %v2700, %v2698
        %v2709 = vpack.c.b16 %v2701, %v2699
        %v2738 = vunpack.c.l.b16 %v2654
        %v2739 = vunpack.c.l.b16 %v2655
        %v2740 = vunpack.c.l.b16 %v2656
        %v2741 = vunpack.c.l.b16 %v2657
        %v2742 = vunpack.c.l.b16 %v2658
        %v2743 = vunpack.c.l.b16 %v2659
        %v2744 = vunpack.c.l.b16 %v2660
        %v2745 = vunpack.c.l.b16 %v2661
        %v2746 = vunpack.c.l.b16 %v2662
        %v2747 = vunpack.c.l.b16 %v2663
        %v2748 = vunpack.c.l.b16 %v2664
        %v2749 = vunpack.c.l.b16 %v2665
        %v2750 = vunpack.c.l.b16 %v2666
        %v2751 = vunpack.c.l.b16 %v2667
        %v2752 = vunpack.c.l.b16 %v2668
        %v2753 = vunpack.c.l.b16 %v2669
        %v2754 = vunpack.c.l.b16 %v2670
        %v2755 = vunpack.c.l.b16 %v2671
        %v2756 = vunpack.c.l.b16 %v2672
        %v2757 = vunpack.c.l.b16 %v2673
        %v2758 = vunpack.c.l.b16 %v2674
        %v2759 = vunpack.c.l.b16 %v2675
        %v2760 = vunpack.c.l.b16 %v2676
        %v2761 = vunpack.c.l.b16 %v2677
        %v2762 = vpack.c.b16 %v2739, %v2738
        %v2763 = vpack.c.b16 %v2741, %v2740
        %v2764 = vpack.c.b16 %v2743, %v2742
        %v2765 = vpack.c.b16 %v2745, %v2744
        %v2766 = vpack.c.b16 %v2747, %v2746
        %v2767 = vpack.c.b16 %v2749, %v2748
        %v2768 = vpack.c.b16 %v2751, %v2750
        %v2769 = vpack.c.b16 %v2753, %v2752
        %v2770 = vpack.c.b16 %v2755, %v2754
        %v2771 = vpack.c.b16 %v2757, %v2756
        %v2772 = vpack.c.b16 %v2759, %v2758
        %v2773 = vpack.c.b16 %v2761, %v2760
        %vm2786 = vcmask 523264
        %v2788 = vsel %vm2786, %v2703, 0
        %v2791 = vsel %vm2786, %v2705, 0
        %v2794 = vsel %vm2786, %v2707, 0
        %v2797 = vsel %vm2786, %v2709, 0
        %2799 = vmatpush.bf16.msra.mxu0 %v2769
        %2800 = vmatpush.bf16.msra.mxu0 %v2768
        %2801 = vmatpush.bf16.msra.mxu0 %v2767
        %2802 = vmatpush.bf16.msra.mxu0 %v2766
        %2803 = vmatpush.bf16.msra.mxu0 %v2765
        %2804 = vmatpush.bf16.msra.mxu0 %v2764
        %2805 = vmatpush.bf16.msra.mxu0 %v2763
        %2806 = vmatpush.bf16.msra.mxu0 %v2762
        %2807 = vmatmul.bf16.gmra.mxu0 %v2702
        %v2808 = vpop.f32.mrf.mxu0
        %v2809 = vadd.f32 0.0, %v2808
        %v2810 = vpop.f32.mrf.mxu0
        %v2811 = vadd.f32 0.0, %v2810
        %2812 = vmatmul.bf16.gmra.mxu0 %v2704
        %v2813 = vpop.f32.mrf.mxu0
        %v2814 = vadd.f32 0.0, %v2813
        %v2815 = vpop.f32.mrf.mxu0
        %v2816 = vadd.f32 0.0, %v2815
        %2817 = vmatmul.bf16.gmra.mxu0 %v2706
        %v2818 = vpop.f32.mrf.mxu0
        %v2819 = vadd.f32 0.0, %v2818
        %v2820 = vpop.f32.mrf.mxu0
        %v2821 = vadd.f32 0.0, %v2820
        %2822 = vmatmul.bf16.gmra.mxu0 %v2708
        %v2823 = vpop.f32.mrf.mxu0
        %v2824 = vadd.f32 0.0, %v2823
        %v2825 = vpop.f32.mrf.mxu0
        %v2826 = vadd.f32 0.0, %v2825
        %2827 = vdwg.mxu0
        %2828 = vmatpush.bf16.msra.mxu0 0
        %2829 = vmatpush.bf16.msra.mxu0 0
        %2830 = vmatpush.bf16.msra.mxu0 0
        %2831 = vmatpush.bf16.msra.mxu0 0
        %2832 = vmatpush.bf16.msra.mxu0 %v2773
        %2833 = vmatpush.bf16.msra.mxu0 %v2772
        %2834 = vmatpush.bf16.msra.mxu0 %v2771
        %2835 = vmatpush.bf16.msra.mxu0 %v2770
        %2836 = vmatmul.bf16.gmra.mxu0 %v2788
        %v2837 = vpop.f32.mrf.mxu0
        %v2838 = vadd.f32 %v2809, %v2837
        %v2839 = vpop.f32.mrf.mxu0
        %v2840 = vadd.f32 %v2811, %v2839
        %2841 = vmatmul.bf16.gmra.mxu0 %v2791
        %v2842 = vpop.f32.mrf.mxu0
        %v2843 = vadd.f32 %v2814, %v2842
        %v2844 = vpop.f32.mrf.mxu0
        %v2845 = vadd.f32 %v2816, %v2844
        %2846 = vmatmul.bf16.gmra.mxu0 %v2794
        %v2847 = vpop.f32.mrf.mxu0
        %v2848 = vadd.f32 %v2819, %v2847
        %v2849 = vpop.f32.mrf.mxu0
        %v2850 = vadd.f32 %v2821, %v2849
        %2851 = vmatmul.bf16.gmra.mxu0 %v2797
        %v2852 = vpop.f32.mrf.mxu0
        %v2853 = vadd.f32 %v2824, %v2852
        %v2854 = vpop.f32.mrf.mxu0
        %v2855 = vadd.f32 %v2826, %v2854
        %2856 = vdwg.mxu0
        %2857 = vst [vmem:[#allocation4] sm:$0xff] %v2838
        %2858 = vst [vmem:[#allocation4 + $0x10] sm:$0xff] %v2840
        %2859 = vst [vmem:[#allocation4 + $0x20] sm:$0xff] %v2843
        %2860 = vst [vmem:[#allocation4 + $0x30] sm:$0xff] %v2845
        %2861 = vst [vmem:[#allocation4 + $0x40] sm:$0xff] %v2848
        %2862 = vst [vmem:[#allocation4 + $0x50] sm:$0xff] %v2850
        %2863 = vst [vmem:[#allocation4 + $0x60] sm:$0xff] %v2853
        %2864 = vst [vmem:[#allocation4 + $0x70] sm:$0xff] %v2855
        %s2865 = scalar_lea.vmem %s4, 64
        %v2866 = vld [vmem:[%s2865] sm:$0xff]
        %v2867 = vld [vmem:[%s2865 + $0x8] sm:$0xff]
        %v2868 = vld [vmem:[%s2865 + $0x10] sm:$0xff]
        %v2869 = vld [vmem:[%s2865 + $0x18] sm:$0xff]
        %v2870 = vld [vmem:[%s2865 + $0x20] sm:$0xff]
        %v2871 = vld [vmem:[%s2865 + $0x28] sm:$0xff]
        %v2872 = vld [vmem:[%s2865 + $0x30] sm:$0xff]
        %v2873 = vld [vmem:[%s2865 + $0x38] sm:$0xff]
        %v2874 = vld [vmem:[#allocation3] sm:$0xff]
        %v2875 = vld [vmem:[#allocation3 + $0xc] sm:$0xff]
        %v2876 = vld [vmem:[#allocation3 + $0x18] sm:$0xff]
        %v2877 = vld [vmem:[#allocation3 + $0x24] sm:$0xff]
        %v2878 = vld [vmem:[#allocation3 + $0x30] sm:$0xff]
        %v2879 = vld [vmem:[#allocation3 + $0x3c] sm:$0xff]
        %v2880 = vld [vmem:[#allocation3 + $0x48] sm:$0xff]
        %v2881 = vld [vmem:[#allocation3 + $0x54] sm:$0xff]
        %v2882 = vld [vmem:[#allocation3 + $0x60] sm:$0xff]
        %v2883 = vld [vmem:[#allocation3 + $0x6c] sm:$0xff]
        %v2884 = vld [vmem:[#allocation3 + $0x78] sm:$0xff]
        %v2885 = vld [vmem:[#allocation3 + $0x84] sm:$0xff]
        %v2886 = vld [vmem:[#allocation3 + $0x90] sm:$0xff]
        %v2887 = vld [vmem:[#allocation3 + $0x9c] sm:$0xff]
        %v2888 = vld [vmem:[#allocation3 + $0xa8] sm:$0xff]
        %v2889 = vld [vmem:[#allocation3 + $0xb4] sm:$0xff]
        %v2890 = vld [vmem:[#allocation3 + $0xc0] sm:$0xff]
        %v2891 = vld [vmem:[#allocation3 + $0xcc] sm:$0xff]
        %v2892 = vld [vmem:[#allocation3 + $0xd8] sm:$0xff]
        %v2893 = vld [vmem:[#allocation3 + $0xe4] sm:$0xff]
        %v2894 = vld [vmem:[#allocation3 + $0xf0] sm:$0xff]
        %v2895 = vld [vmem:[#allocation3 + $0xfc] sm:$0xff]
        %v2896 = vld [vmem:[#allocation3 + $0x108] sm:$0xff]
        %v2897 = vld [vmem:[#allocation3 + $0x114] sm:$0xff]
        %v2906 = vunpack.c.l.b16 %v2866
        %v2907 = vunpack.c.h.b16 %v2866
        %v2908 = vunpack.c.l.b16 %v2867
        %v2909 = vunpack.c.h.b16 %v2867
        %v2910 = vunpack.c.l.b16 %v2868
        %v2911 = vunpack.c.h.b16 %v2868
        %v2912 = vunpack.c.l.b16 %v2869
        %v2913 = vunpack.c.h.b16 %v2869
        %v2914 = vunpack.c.l.b16 %v2870
        %v2915 = vunpack.c.h.b16 %v2870
        %v2916 = vunpack.c.l.b16 %v2871
        %v2917 = vunpack.c.h.b16 %v2871
        %v2918 = vunpack.c.l.b16 %v2872
        %v2919 = vunpack.c.h.b16 %v2872
        %v2920 = vunpack.c.l.b16 %v2873
        %v2921 = vunpack.c.h.b16 %v2873
        %v2922 = vpack.c.b16 %v2908, %v2906
        %v2923 = vpack.c.b16 %v2909, %v2907
        %v2924 = vpack.c.b16 %v2912, %v2910
        %v2925 = vpack.c.b16 %v2913, %v2911
        %v2926 = vpack.c.b16 %v2916, %v2914
        %v2927 = vpack.c.b16 %v2917, %v2915
        %v2928 = vpack.c.b16 %v2920, %v2918
        %v2929 = vpack.c.b16 %v2921, %v2919
        %v2958 = vunpack.c.l.b16 %v2874
        %v2959 = vunpack.c.h.b16 %v2874
        %v2960 = vunpack.c.l.b16 %v2875
        %v2961 = vunpack.c.h.b16 %v2875
        %v2962 = vunpack.c.l.b16 %v2876
        %v2963 = vunpack.c.h.b16 %v2876
        %v2964 = vunpack.c.l.b16 %v2877
        %v2965 = vunpack.c.h.b16 %v2877
        %v2966 = vunpack.c.l.b16 %v2878
        %v2967 = vunpack.c.h.b16 %v2878
        %v2968 = vunpack.c.l.b16 %v2879
        %v2969 = vunpack.c.h.b16 %v2879
        %v2970 = vunpack.c.l.b16 %v2880
        %v2971 = vunpack.c.h.b16 %v2880
        %v2972 = vunpack.c.l.b16 %v2881
        %v2973 = vunpack.c.h.b16 %v2881
        %v2974 = vunpack.c.l.b16 %v2882
        %v2975 = vunpack.c.h.b16 %v2882
        %v2976 = vunpack.c.l.b16 %v2883
        %v2977 = vunpack.c.h.b16 %v2883
        %v2978 = vunpack.c.l.b16 %v2884
        %v2979 = vunpack.c.h.b16 %v2884
        %v2980 = vunpack.c.l.b16 %v2885
        %v2981 = vunpack.c.h.b16 %v2885
        %v2982 = vunpack.c.l.b16 %v2886
        %v2983 = vunpack.c.h.b16 %v2886
        %v2984 = vunpack.c.l.b16 %v2887
        %v2985 = vunpack.c.h.b16 %v2887
        %v2986 = vunpack.c.l.b16 %v2888
        %v2987 = vunpack.c.h.b16 %v2888
        %v2988 = vunpack.c.l.b16 %v2889
        %v2989 = vunpack.c.h.b16 %v2889
        %v2990 = vunpack.c.l.b16 %v2890
        %v2991 = vunpack.c.h.b16 %v2890
        %v2992 = vunpack.c.l.b16 %v2891
        %v2993 = vunpack.c.h.b16 %v2891
        %v2994 = vunpack.c.l.b16 %v2892
        %v2995 = vunpack.c.h.b16 %v2892
        %v2996 = vunpack.c.l.b16 %v2893
        %v2997 = vunpack.c.h.b16 %v2893
        %v2998 = vunpack.c.l.b16 %v2894
        %v2999 = vunpack.c.h.b16 %v2894
        %v3000 = vunpack.c.l.b16 %v2895
        %v3001 = vunpack.c.h.b16 %v2895
        %v3002 = vunpack.c.l.b16 %v2896
        %v3003 = vunpack.c.h.b16 %v2896
        %v3004 = vunpack.c.l.b16 %v2897
        %v3005 = vunpack.c.h.b16 %v2897
        %v3006 = vpack.c.b16 %v2960, %v2958
        %v3007 = vpack.c.b16 %v2961, %v2959
        %v3008 = vpack.c.b16 %v2964, %v2962
        %v3009 = vpack.c.b16 %v2965, %v2963
        %v3010 = vpack.c.b16 %v2968, %v2966
        %v3011 = vpack.c.b16 %v2969, %v2967
        %v3012 = vpack.c.b16 %v2972, %v2970
        %v3013 = vpack.c.b16 %v2973, %v2971
        %v3014 = vpack.c.b16 %v2976, %v2974
        %v3015 = vpack.c.b16 %v2977, %v2975
        %v3016 = vpack.c.b16 %v2980, %v2978
        %v3017 = vpack.c.b16 %v2981, %v2979
        %v3018 = vpack.c.b16 %v2984, %v2982
        %v3019 = vpack.c.b16 %v2985, %v2983
        %v3020 = vpack.c.b16 %v2988, %v2986
        %v3021 = vpack.c.b16 %v2989, %v2987
        %v3022 = vpack.c.b16 %v2992, %v2990
        %v3023 = vpack.c.b16 %v2993, %v2991
        %v3024 = vpack.c.b16 %v2996, %v2994
        %v3025 = vpack.c.b16 %v2997, %v2995
        %v3026 = vpack.c.b16 %v3000, %v2998
        %v3027 = vpack.c.b16 %v3001, %v2999
        %v3028 = vpack.c.b16 %v3004, %v3002
        %v3029 = vpack.c.b16 %v3005, %v3003
        %3030 = vrot.lane.b32.xlu0 %v3006, 126
        %v3031 = vpop.permute.xlu0 %3030
        %3032 = vrot.lane.b32.xlu0 %v3007, 126
        %v3033 = vpop.permute.xlu0 %3032
        %3034 = vrot.lane.b32.xlu0 %v3008, 126
        %v3035 = vpop.permute.xlu0 %3034
        %3036 = vrot.lane.b32.xlu0 %v3009, 126
        %v3037 = vpop.permute.xlu0 %3036
        %3038 = vrot.lane.b32.xlu0 %v3010, 126
        %v3039 = vpop.permute.xlu0 %3038
        %3040 = vrot.lane.b32.xlu0 %v3011, 126
        %v3041 = vpop.permute.xlu0 %3040
        %3042 = vrot.lane.b32.xlu0 %v3012, 126
        %v3043 = vpop.permute.xlu0 %3042
        %3044 = vrot.lane.b32.xlu0 %v3013, 126
        %v3045 = vpop.permute.xlu0 %3044
        %3046 = vrot.lane.b32.xlu0 %v3014, 126
        %v3047 = vpop.permute.xlu0 %3046
        %3048 = vrot.lane.b32.xlu0 %v3015, 126
        %v3049 = vpop.permute.xlu0 %3048
        %3050 = vrot.lane.b32.xlu0 %v3016, 126
        %v3051 = vpop.permute.xlu0 %3050
        %3052 = vrot.lane.b32.xlu0 %v3017, 126
        %v3053 = vpop.permute.xlu0 %3052
        %3054 = vrot.lane.b32.xlu0 %v3018, 126
        %v3055 = vpop.permute.xlu0 %3054
        %3056 = vrot.lane.b32.xlu0 %v3019, 126
        %v3057 = vpop.permute.xlu0 %3056
        %3058 = vrot.lane.b32.xlu0 %v3020, 126
        %v3059 = vpop.permute.xlu0 %3058
        %3060 = vrot.lane.b32.xlu0 %v3021, 126
        %v3061 = vpop.permute.xlu0 %3060
        %3062 = vrot.lane.b32.xlu0 %v3022, 126
        %v3063 = vpop.permute.xlu0 %3062
        %3064 = vrot.lane.b32.xlu0 %v3023, 126
        %v3065 = vpop.permute.xlu0 %3064
        %3066 = vrot.lane.b32.xlu0 %v3024, 126
        %v3067 = vpop.permute.xlu0 %3066
        %3068 = vrot.lane.b32.xlu0 %v3025, 126
        %v3069 = vpop.permute.xlu0 %3068
        %3070 = vrot.lane.b32.xlu0 %v3026, 126
        %v3071 = vpop.permute.xlu0 %3070
        %3072 = vrot.lane.b32.xlu0 %v3027, 126
        %v3073 = vpop.permute.xlu0 %3072
        %3074 = vrot.lane.b32.xlu0 %v3028, 126
        %v3075 = vpop.permute.xlu0 %3074
        %3076 = vrot.lane.b32.xlu0 %v3029, 126
        %v3077 = vpop.permute.xlu0 %3076
        %v3078 = vsel %vm651, %v3031, %v3033
        %v3079 = vsel %vm651, %v3035, %v3037
        %v3080 = vsel %vm651, %v3039, %v3041
        %v3081 = vsel %vm651, %v3043, %v3045
        %v3082 = vsel %vm651, %v3047, %v3049
        %v3083 = vsel %vm651, %v3051, %v3053
        %v3084 = vsel %vm651, %v3055, %v3057
        %v3085 = vsel %vm651, %v3059, %v3061
        %v3086 = vsel %vm651, %v3063, %v3065
        %v3087 = vsel %vm651, %v3067, %v3069
        %v3088 = vsel %vm651, %v3071, %v3073
        %v3089 = vsel %vm651, %v3075, %v3077
        %v3103 = vsel %vm2786, %v2923, 0
        %v3106 = vsel %vm2786, %v2925, 0
        %v3109 = vsel %vm2786, %v2927, 0
        %v3112 = vsel %vm2786, %v2929, 0
        %3114 = vmatpush.bf16.msra.mxu0 %v3085
        %3115 = vmatpush.bf16.msra.mxu0 %v3084
        %3116 = vmatpush.bf16.msra.mxu0 %v3083
        %3117 = vmatpush.bf16.msra.mxu0 %v3082
        %3118 = vmatpush.bf16.msra.mxu0 %v3081
        %3119 = vmatpush.bf16.msra.mxu0 %v3080
        %3120 = vmatpush.bf16.msra.mxu0 %v3079
        %3121 = vmatpush.bf16.msra.mxu0 %v3078
        %3122 = vmatmul.bf16.gmra.mxu0 %v2922
        %v3123 = vpop.f32.mrf.mxu0
        %v3124 = vadd.f32 0.0, %v3123
        %v3125 = vpop.f32.mrf.mxu0
        %v3126 = vadd.f32 0.0, %v3125
        %3127 = vmatmul.bf16.gmra.mxu0 %v2924
        %v3128 = vpop.f32.mrf.mxu0
        %v3129 = vadd.f32 0.0, %v3128
        %v3130 = vpop.f32.mrf.mxu0
        %v3131 = vadd.f32 0.0, %v3130
        %3132 = vmatmul.bf16.gmra.mxu0 %v2926
        %v3133 = vpop.f32.mrf.mxu0
        %v3134 = vadd.f32 0.0, %v3133
        %v3135 = vpop.f32.mrf.mxu0
        %v3136 = vadd.f32 0.0, %v3135
        %3137 = vmatmul.bf16.gmra.mxu0 %v2928
        %v3138 = vpop.f32.mrf.mxu0
        %v3139 = vadd.f32 0.0, %v3138
        %v3140 = vpop.f32.mrf.mxu0
        %v3141 = vadd.f32 0.0, %v3140
        %3142 = vdwg.mxu0
        %3143 = vmatpush.bf16.msra.mxu0 0
        %3144 = vmatpush.bf16.msra.mxu0 0
        %3145 = vmatpush.bf16.msra.mxu0 0
        %3146 = vmatpush.bf16.msra.mxu0 0
        %3147 = vmatpush.bf16.msra.mxu0 %v3089
        %3148 = vmatpush.bf16.msra.mxu0 %v3088
        %3149 = vmatpush.bf16.msra.mxu0 %v3087
        %3150 = vmatpush.bf16.msra.mxu0 %v3086
        %3151 = vmatmul.bf16.gmra.mxu0 %v3103
        %v3152 = vpop.f32.mrf.mxu0
        %v3153 = vadd.f32 %v3124, %v3152
        %v3154 = vpop.f32.mrf.mxu0
        %v3155 = vadd.f32 %v3126, %v3154
        %3156 = vmatmul.bf16.gmra.mxu0 %v3106
        %v3157 = vpop.f32.mrf.mxu0
        %v3158 = vadd.f32 %v3129, %v3157
        %v3159 = vpop.f32.mrf.mxu0
        %v3160 = vadd.f32 %v3131, %v3159
        %3161 = vmatmul.bf16.gmra.mxu0 %v3109
        %v3162 = vpop.f32.mrf.mxu0
        %v3163 = vadd.f32 %v3134, %v3162
        %v3164 = vpop.f32.mrf.mxu0
        %v3165 = vadd.f32 %v3136, %v3164
        %3166 = vmatmul.bf16.gmra.mxu0 %v3112
        %v3167 = vpop.f32.mrf.mxu0
        %v3168 = vadd.f32 %v3139, %v3167
        %v3169 = vpop.f32.mrf.mxu0
        %v3170 = vadd.f32 %v3141, %v3169
        %3171 = vdwg.mxu0
        %v3172 = vld [vmem:[#allocation4] sm:$0xff]
        %v3173 = vld [vmem:[#allocation4 + $0x10] sm:$0xff]
        %v3174 = vld [vmem:[#allocation4 + $0x20] sm:$0xff]
        %v3175 = vld [vmem:[#allocation4 + $0x30] sm:$0xff]
        %v3176 = vld [vmem:[#allocation4 + $0x40] sm:$0xff]
        %v3177 = vld [vmem:[#allocation4 + $0x50] sm:$0xff]
        %v3178 = vld [vmem:[#allocation4 + $0x60] sm:$0xff]
        %v3179 = vld [vmem:[#allocation4 + $0x70] sm:$0xff]
        %v3180 = vadd.f32 %v3172, %v3153
        %v3181 = vadd.f32 %v3173, %v3155
        %v3182 = vadd.f32 %v3174, %v3158
        %v3183 = vadd.f32 %v3175, %v3160
        %v3184 = vadd.f32 %v3176, %v3163
        %v3185 = vadd.f32 %v3177, %v3165
        %v3186 = vadd.f32 %v3178, %v3168
        %v3187 = vadd.f32 %v3179, %v3170
        %3188 = vst [vmem:[#allocation4] sm:$0xff] %v3180
        %3189 = vst [vmem:[#allocation4 + $0x10] sm:$0xff] %v3181
        %3190 = vst [vmem:[#allocation4 + $0x20] sm:$0xff] %v3182
        %3191 = vst [vmem:[#allocation4 + $0x30] sm:$0xff] %v3183
        %3192 = vst [vmem:[#allocation4 + $0x40] sm:$0xff] %v3184
        %3193 = vst [vmem:[#allocation4 + $0x50] sm:$0xff] %v3185
        %3194 = vst [vmem:[#allocation4 + $0x60] sm:$0xff] %v3186
        %3195 = vst [vmem:[#allocation4 + $0x70] sm:$0xff] %v3187
        %s3196 = scalar_lea.vmem %s4, 128
        %v3197 = vld [vmem:[%s3196] sm:$0xff]
        %v3198 = vld [vmem:[%s3196 + $0x8] sm:$0xff]
        %v3199 = vld [vmem:[%s3196 + $0x10] sm:$0xff]
        %v3200 = vld [vmem:[%s3196 + $0x18] sm:$0xff]
        %v3201 = vld [vmem:[%s3196 + $0x20] sm:$0xff]
        %v3202 = vld [vmem:[%s3196 + $0x28] sm:$0xff]
        %v3203 = vld [vmem:[%s3196 + $0x30] sm:$0xff]
        %v3204 = vld [vmem:[%s3196 + $0x38] sm:$0xff]
        %v3205 = vld [vmem:[#allocation3] sm:$0xff]
        %v3206 = vld [vmem:[#allocation3 + $0xc] sm:$0xff]
        %v3207 = vld [vmem:[#allocation3 + $0x18] sm:$0xff]
        %v3208 = vld [vmem:[#allocation3 + $0x24] sm:$0xff]
        %v3209 = vld [vmem:[#allocation3 + $0x30] sm:$0xff]
        %v3210 = vld [vmem:[#allocation3 + $0x3c] sm:$0xff]
        %v3211 = vld [vmem:[#allocation3 + $0x48] sm:$0xff]
        %v3212 = vld [vmem:[#allocation3 + $0x54] sm:$0xff]
        %v3213 = vld [vmem:[#allocation3 + $0x60] sm:$0xff]
        %v3214 = vld [vmem:[#allocation3 + $0x6c] sm:$0xff]
        %v3215 = vld [vmem:[#allocation3 + $0x78] sm:$0xff]
        %v3216 = vld [vmem:[#allocation3 + $0x84] sm:$0xff]
        %v3217 = vld [vmem:[#allocation3 + $0x90] sm:$0xff]
        %v3218 = vld [vmem:[#allocation3 + $0x9c] sm:$0xff]
        %v3219 = vld [vmem:[#allocation3 + $0xa8] sm:$0xff]
        %v3220 = vld [vmem:[#allocation3 + $0xb4] sm:$0xff]
        %v3221 = vld [vmem:[#allocation3 + $0xc0] sm:$0xff]
        %v3222 = vld [vmem:[#allocation3 + $0xcc] sm:$0xff]
        %v3223 = vld [vmem:[#allocation3 + $0xd8] sm:$0xff]
        %v3224 = vld [vmem:[#allocation3 + $0xe4] sm:$0xff]
        %v3225 = vld [vmem:[#allocation3 + $0xf0] sm:$0xff]
        %v3226 = vld [vmem:[#allocation3 + $0xfc] sm:$0xff]
        %v3227 = vld [vmem:[#allocation3 + $0x108] sm:$0xff]
        %v3228 = vld [vmem:[#allocation3 + $0x114] sm:$0xff]
        %v3237 = vunpack.c.l.b16 %v3197
        %v3238 = vunpack.c.h.b16 %v3197
        %v3239 = vunpack.c.l.b16 %v3198
        %v3240 = vunpack.c.h.b16 %v3198
        %v3241 = vunpack.c.l.b16 %v3199
        %v3242 = vunpack.c.h.b16 %v3199
        %v3243 = vunpack.c.l.b16 %v3200
        %v3244 = vunpack.c.h.b16 %v3200
        %v3245 = vunpack.c.l.b16 %v3201
        %v3246 = vunpack.c.h.b16 %v3201
        %v3247 = vunpack.c.l.b16 %v3202
        %v3248 = vunpack.c.h.b16 %v3202
        %v3249 = vunpack.c.l.b16 %v3203
        %v3250 = vunpack.c.h.b16 %v3203
        %v3251 = vunpack.c.l.b16 %v3204
        %v3252 = vunpack.c.h.b16 %v3204
        %v3253 = vpack.c.b16 %v3239, %v3237
        %v3254 = vpack.c.b16 %v3240, %v3238
        %v3255 = vpack.c.b16 %v3243, %v3241
        %v3256 = vpack.c.b16 %v3244, %v3242
        %v3257 = vpack.c.b16 %v3247, %v3245
        %v3258 = vpack.c.b16 %v3248, %v3246
        %v3259 = vpack.c.b16 %v3251, %v3249
        %v3260 = vpack.c.b16 %v3252, %v3250
        %v3289 = vunpack.c.l.b16 %v3205
        %v3290 = vunpack.c.h.b16 %v3205
        %v3291 = vunpack.c.l.b16 %v3206
        %v3292 = vunpack.c.h.b16 %v3206
        %v3293 = vunpack.c.l.b16 %v3207
        %v3294 = vunpack.c.h.b16 %v3207
        %v3295 = vunpack.c.l.b16 %v3208
        %v3296 = vunpack.c.h.b16 %v3208
        %v3297 = vunpack.c.l.b16 %v3209
        %v3298 = vunpack.c.h.b16 %v3209
        %v3299 = vunpack.c.l.b16 %v3210
        %v3300 = vunpack.c.h.b16 %v3210
        %v3301 = vunpack.c.l.b16 %v3211
        %v3302 = vunpack.c.h.b16 %v3211
        %v3303 = vunpack.c.l.b16 %v3212
        %v3304 = vunpack.c.h.b16 %v3212
        %v3305 = vunpack.c.l.b16 %v3213
        %v3306 = vunpack.c.h.b16 %v3213
        %v3307 = vunpack.c.l.b16 %v3214
        %v3308 = vunpack.c.h.b16 %v3214
        %v3309 = vunpack.c.l.b16 %v3215
        %v3310 = vunpack.c.h.b16 %v3215
        %v3311 = vunpack.c.l.b16 %v3216
        %v3312 = vunpack.c.h.b16 %v3216
        %v3313 = vunpack.c.l.b16 %v3217
        %v3314 = vunpack.c.h.b16 %v3217
        %v3315 = vunpack.c.l.b16 %v3218
        %v3316 = vunpack.c.h.b16 %v3218
        %v3317 = vunpack.c.l.b16 %v3219
        %v3318 = vunpack.c.h.b16 %v3219
        %v3319 = vunpack.c.l.b16 %v3220
        %v3320 = vunpack.c.h.b16 %v3220
        %v3321 = vunpack.c.l.b16 %v3221
        %v3322 = vunpack.c.h.b16 %v3221
        %v3323 = vunpack.c.l.b16 %v3222
        %v3324 = vunpack.c.h.b16 %v3222
        %v3325 = vunpack.c.l.b16 %v3223
        %v3326 = vunpack.c.h.b16 %v3223
        %v3327 = vunpack.c.l.b16 %v3224
        %v3328 = vunpack.c.h.b16 %v3224
        %v3329 = vunpack.c.l.b16 %v3225
        %v3330 = vunpack.c.h.b16 %v3225
        %v3331 = vunpack.c.l.b16 %v3226
        %v3332 = vunpack.c.h.b16 %v3226
        %v3333 = vunpack.c.l.b16 %v3227
        %v3334 = vunpack.c.h.b16 %v3227
        %v3335 = vunpack.c.l.b16 %v3228
        %v3336 = vunpack.c.h.b16 %v3228
        %v3337 = vpack.c.b16 %v3291, %v3289
        %v3338 = vpack.c.b16 %v3292, %v3290
        %v3339 = vpack.c.b16 %v3295, %v3293
        %v3340 = vpack.c.b16 %v3296, %v3294
        %v3341 = vpack.c.b16 %v3299, %v3297
        %v3342 = vpack.c.b16 %v3300, %v3298
        %v3343 = vpack.c.b16 %v3303, %v3301
        %v3344 = vpack.c.b16 %v3304, %v3302
        %v3345 = vpack.c.b16 %v3307, %v3305
        %v3346 = vpack.c.b16 %v3308, %v3306
        %v3347 = vpack.c.b16 %v3311, %v3309
        %v3348 = vpack.c.b16 %v3312, %v3310
        %v3349 = vpack.c.b16 %v3315, %v3313
        %v3350 = vpack.c.b16 %v3316, %v3314
        %v3351 = vpack.c.b16 %v3319, %v3317
        %v3352 = vpack.c.b16 %v3320, %v3318
        %v3353 = vpack.c.b16 %v3323, %v3321
        %v3354 = vpack.c.b16 %v3324, %v3322
        %v3355 = vpack.c.b16 %v3327, %v3325
        %v3356 = vpack.c.b16 %v3328, %v3326
        %v3357 = vpack.c.b16 %v3331, %v3329
        %v3358 = vpack.c.b16 %v3332, %v3330
        %v3359 = vpack.c.b16 %v3335, %v3333
        %v3360 = vpack.c.b16 %v3336, %v3334
        %3361 = vrot.lane.b32.xlu0 %v3337, 124
        %v3362 = vpop.permute.xlu0 %3361
        %3363 = vrot.lane.b32.xlu0 %v3338, 124
        %v3364 = vpop.permute.xlu0 %3363
        %3365 = vrot.lane.b32.xlu0 %v3339, 124
        %v3366 = vpop.permute.xlu0 %3365
        %3367 = vrot.lane.b32.xlu0 %v3340, 124
        %v3368 = vpop.permute.xlu0 %3367
        %3369 = vrot.lane.b32.xlu0 %v3341, 124
        %v3370 = vpop.permute.xlu0 %3369
        %3371 = vrot.lane.b32.xlu0 %v3342, 124
        %v3372 = vpop.permute.xlu0 %3371
        %3373 = vrot.lane.b32.xlu0 %v3343, 124
        %v3374 = vpop.permute.xlu0 %3373
        %3375 = vrot.lane.b32.xlu0 %v3344, 124
        %v3376 = vpop.permute.xlu0 %3375
        %3377 = vrot.lane.b32.xlu0 %v3345, 124
        %v3378 = vpop.permute.xlu0 %3377
        %3379 = vrot.lane.b32.xlu0 %v3346, 124
        %v3380 = vpop.permute.xlu0 %3379
        %3381 = vrot.lane.b32.xlu0 %v3347, 124
        %v3382 = vpop.permute.xlu0 %3381
        %3383 = vrot.lane.b32.xlu0 %v3348, 124
        %v3384 = vpop.permute.xlu0 %3383
        %3385 = vrot.lane.b32.xlu0 %v3349, 124
        %v3386 = vpop.permute.xlu0 %3385
        %3387 = vrot.lane.b32.xlu0 %v3350, 124
        %v3388 = vpop.permute.xlu0 %3387
        %3389 = vrot.lane.b32.xlu0 %v3351, 124
        %v3390 = vpop.permute.xlu0 %3389
        %3391 = vrot.lane.b32.xlu0 %v3352, 124
        %v3392 = vpop.permute.xlu0 %3391
        %3393 = vrot.lane.b32.xlu0 %v3353, 124
        %v3394 = vpop.permute.xlu0 %3393
        %3395 = vrot.lane.b32.xlu0 %v3354, 124
        %v3396 = vpop.permute.xlu0 %3395
        %3397 = vrot.lane.b32.xlu0 %v3355, 124
        %v3398 = vpop.permute.xlu0 %3397
        %3399 = vrot.lane.b32.xlu0 %v3356, 124
        %v3400 = vpop.permute.xlu0 %3399
        %3401 = vrot.lane.b32.xlu0 %v3357, 124
        %v3402 = vpop.permute.xlu0 %3401
        %3403 = vrot.lane.b32.xlu0 %v3358, 124
        %v3404 = vpop.permute.xlu0 %3403
        %3405 = vrot.lane.b32.xlu0 %v3359, 124
        %v3406 = vpop.permute.xlu0 %3405
        %3407 = vrot.lane.b32.xlu0 %v3360, 124
        %v3408 = vpop.permute.xlu0 %3407
        %v3409 = vsel %vm2102, %v3362, %v3364
        %v3410 = vsel %vm2102, %v3366, %v3368
        %v3411 = vsel %vm2102, %v3370, %v3372
        %v3412 = vsel %vm2102, %v3374, %v3376
        %v3413 = vsel %vm2102, %v3378, %v3380
        %v3414 = vsel %vm2102, %v3382, %v3384
        %v3415 = vsel %vm2102, %v3386, %v3388
        %v3416 = vsel %vm2102, %v3390, %v3392
        %v3417 = vsel %vm2102, %v3394, %v3396
        %v3418 = vsel %vm2102, %v3398, %v3400
        %v3419 = vsel %vm2102, %v3402, %v3404
        %v3420 = vsel %vm2102, %v3406, %v3408
        %v3434 = vsel %vm2786, %v3254, 0
        %v3437 = vsel %vm2786, %v3256, 0
        %v3440 = vsel %vm2786, %v3258, 0
        %v3443 = vsel %vm2786, %v3260, 0
        %3445 = vmatpush.bf16.msra.mxu0 %v3416
        %3446 = vmatpush.bf16.msra.mxu0 %v3415
        %3447 = vmatpush.bf16.msra.mxu0 %v3414
        %3448 = vmatpush.bf16.msra.mxu0 %v3413
        %3449 = vmatpush.bf16.msra.mxu0 %v3412
        %3450 = vmatpush.bf16.msra.mxu0 %v3411
        %3451 = vmatpush.bf16.msra.mxu0 %v3410
        %3452 = vmatpush.bf16.msra.mxu0 %v3409
        %3453 = vmatmul.bf16.gmra.mxu0 %v3253
        %v3454 = vpop.f32.mrf.mxu0
        %v3455 = vadd.f32 0.0, %v3454
        %v3456 = vpop.f32.mrf.mxu0
        %v3457 = vadd.f32 0.0, %v3456
        %3458 = vmatmul.bf16.gmra.mxu0 %v3255
        %v3459 = vpop.f32.mrf.mxu0
        %v3460 = vadd.f32 0.0, %v3459
        %v3461 = vpop.f32.mrf.mxu0
        %v3462 = vadd.f32 0.0, %v3461
        %3463 = vmatmul.bf16.gmra.mxu0 %v3257
        %v3464 = vpop.f32.mrf.mxu0
        %v3465 = vadd.f32 0.0, %v3464
        %v3466 = vpop.f32.mrf.mxu0
        %v3467 = vadd.f32 0.0, %v3466
        %3468 = vmatmul.bf16.gmra.mxu0 %v3259
        %v3469 = vpop.f32.mrf.mxu0
        %v3470 = vadd.f32 0.0, %v3469
        %v3471 = vpop.f32.mrf.mxu0
        %v3472 = vadd.f32 0.0, %v3471
        %3473 = vdwg.mxu0
        %3474 = vmatpush.bf16.msra.mxu0 0
        %3475 = vmatpush.bf16.msra.mxu0 0
        %3476 = vmatpush.bf16.msra.mxu0 0
        %3477 = vmatpush.bf16.msra.mxu0 0
        %3478 = vmatpush.bf16.msra.mxu0 %v3420
        %3479 = vmatpush.bf16.msra.mxu0 %v3419
        %3480 = vmatpush.bf16.msra.mxu0 %v3418
        %3481 = vmatpush.bf16.msra.mxu0 %v3417
        %3482 = vmatmul.bf16.gmra.mxu0 %v3434
        %v3483 = vpop.f32.mrf.mxu0
        %v3484 = vadd.f32 %v3455, %v3483
        %v3485 = vpop.f32.mrf.mxu0
        %v3486 = vadd.f32 %v3457, %v3485
        %3487 = vmatmul.bf16.gmra.mxu0 %v3437
        %v3488 = vpop.f32.mrf.mxu0
        %v3489 = vadd.f32 %v3460, %v3488
        %v3490 = vpop.f32.mrf.mxu0
        %v3491 = vadd.f32 %v3462, %v3490
        %3492 = vmatmul.bf16.gmra.mxu0 %v3440
        %v3493 = vpop.f32.mrf.mxu0
        %v3494 = vadd.f32 %v3465, %v3493
        %v3495 = vpop.f32.mrf.mxu0
        %v3496 = vadd.f32 %v3467, %v3495
        %3497 = vmatmul.bf16.gmra.mxu0 %v3443
        %v3498 = vpop.f32.mrf.mxu0
        %v3499 = vadd.f32 %v3470, %v3498
        %v3500 = vpop.f32.mrf.mxu0
        %v3501 = vadd.f32 %v3472, %v3500
        %3502 = vdwg.mxu0
        %v3503 = vld [vmem:[#allocation4] sm:$0xff]
        %v3504 = vld [vmem:[#allocation4 + $0x10] sm:$0xff]
        %v3505 = vld [vmem:[#allocation4 + $0x20] sm:$0xff]
        %v3506 = vld [vmem:[#allocation4 + $0x30] sm:$0xff]
        %v3507 = vld [vmem:[#allocation4 + $0x40] sm:$0xff]
        %v3508 = vld [vmem:[#allocation4 + $0x50] sm:$0xff]
        %v3509 = vld [vmem:[#allocation4 + $0x60] sm:$0xff]
        %v3510 = vld [vmem:[#allocation4 + $0x70] sm:$0xff]
        %v3511 = vadd.f32 %v3503, %v3484
        %v3512 = vadd.f32 %v3504, %v3486
        %v3513 = vadd.f32 %v3505, %v3489
        %v3514 = vadd.f32 %v3506, %v3491
        %v3515 = vadd.f32 %v3507, %v3494
        %v3516 = vadd.f32 %v3508, %v3496
        %v3517 = vadd.f32 %v3509, %v3499
        %v3518 = vadd.f32 %v3510, %v3501
        %3519 = vst [vmem:[#allocation4] sm:$0xff] %v3511
        %3520 = vst [vmem:[#allocation4 + $0x10] sm:$0xff] %v3512
        %3521 = vst [vmem:[#allocation4 + $0x20] sm:$0xff] %v3513
        %3522 = vst [vmem:[#allocation4 + $0x30] sm:$0xff] %v3514
        %3523 = vst [vmem:[#allocation4 + $0x40] sm:$0xff] %v3515
        %3524 = vst [vmem:[#allocation4 + $0x50] sm:$0xff] %v3516
        %3525 = vst [vmem:[#allocation4 + $0x60] sm:$0xff] %v3517
        %3526 = vst [vmem:[#allocation4 + $0x70] sm:$0xff] %v3518
        %v3527 = vld [vmem:[#allocation4] sm:$0xff]
        %v3528 = vld [vmem:[#allocation4 + $0x10] sm:$0xff]
        %v3529 = vld [vmem:[#allocation4 + $0x20] sm:$0xff]
        %v3530 = vld [vmem:[#allocation4 + $0x30] sm:$0xff]
        %v3531 = vld [vmem:[#allocation4 + $0x40] sm:$0xff]
        %v3532 = vld [vmem:[#allocation4 + $0x50] sm:$0xff]
        %v3533 = vld [vmem:[#allocation4 + $0x60] sm:$0xff]
        %v3534 = vld [vmem:[#allocation4 + $0x70] sm:$0xff]
        %s3535 = scalar_lea.vmem %s5, 192
        %v3536 = vld [vmem:[%s3535] sm:$0xff]
        %v3537 = vld [vmem:[%s3535 + $0x8] sm:$0xff]
        %v3538 = vld [vmem:[%s3535 + $0x10] sm:$0xff]
        %v3539 = vld [vmem:[%s3535 + $0x18] sm:$0xff]
        %v3540 = vld [vmem:[%s3535 + $0x20] sm:$0xff]
        %v3541 = vld [vmem:[%s3535 + $0x28] sm:$0xff]
        %v3542 = vld [vmem:[%s3535 + $0x30] sm:$0xff]
        %v3543 = vld [vmem:[%s3535 + $0x38] sm:$0xff]
        %3545 = vset.pattern.permute.xlu0 0
        %3546 = vperm.xlu0 %3545, %v3536
        %v3547 = vpop.permute.xlu0 %3546
        %3550 = vset.pattern.permute.xlu0 0
        %3551 = vperm.xlu0 %3550, %v3537
        %v3552 = vpop.permute.xlu0 %3551
        %3555 = vset.pattern.permute.xlu0 0
        %3556 = vperm.xlu0 %3555, %v3538
        %v3557 = vpop.permute.xlu0 %3556
        %3560 = vset.pattern.permute.xlu0 0
        %3561 = vperm.xlu0 %3560, %v3539
        %v3562 = vpop.permute.xlu0 %3561
        %3565 = vset.pattern.permute.xlu0 0
        %3566 = vperm.xlu0 %3565, %v3540
        %v3567 = vpop.permute.xlu0 %3566
        %3570 = vset.pattern.permute.xlu0 0
        %3571 = vperm.xlu0 %3570, %v3541
        %v3572 = vpop.permute.xlu0 %3571
        %3575 = vset.pattern.permute.xlu0 0
        %3576 = vperm.xlu0 %3575, %v3542
        %v3577 = vpop.permute.xlu0 %3576
        %3580 = vset.pattern.permute.xlu0 0
        %3581 = vperm.xlu0 %3580, %v3543
        %v3582 = vpop.permute.xlu0 %3581
        %v3584 = vadd.f32 %v3527, %v3547
        %v3585 = vadd.f32 %v3528, %v3552
        %v3586 = vadd.f32 %v3529, %v3557
        %v3587 = vadd.f32 %v3530, %v3562
        %v3588 = vadd.f32 %v3531, %v3567
        %v3589 = vadd.f32 %v3532, %v3572
        %v3590 = vadd.f32 %v3533, %v3577
        %v3591 = vadd.f32 %v3534, %v3582
        %3592 = vst [vmem:[%s268] sm:$0xff] %v3584
        %3593 = vst [vmem:[%s268 + $0x8] sm:$0xff] %v3585
        %3594 = vst [vmem:[%s268 + $0x10] sm:$0xff] %v3586
        %3595 = vst [vmem:[%s268 + $0x18] sm:$0xff] %v3587
        %3596 = vst [vmem:[%s268 + $0x20] sm:$0xff] %v3588
        %3597 = vst [vmem:[%s268 + $0x28] sm:$0xff] %v3589
        %3598 = vst [vmem:[%s268 + $0x30] sm:$0xff] %v3590
        %3599 = vst [vmem:[%s268 + $0x38] sm:$0xff] %v3591
        %p3600 = scmp.lt.s32.totalorder %s18, 1
        %s3601 = scalar_select %p3600, %s18, 1
        %s3602 = smul.addr %s3601, 8
        %s3603 = smul.addr %s3602, 8
        %s3604 = scalar_lea.vmem %s6, %s3603
        // Predicated region
        $region49: #{conv_encoder_forward.1} parent=43 // pred_check
          %p3605 = pneg %p167
        $region50: #{conv_encoder_forward.1} parent=43 // pred_check_branch
          %3607 = sbr.rel (%p3605) target = $region52
        $region51: #{conv_encoder_forward.1} parent=43 // pred_region
          _
        $region52: #{conv_encoder_forward.1} parent=43 // pred_fallthru
          _
      $region44: #{conv_encoder_forward.1} parent=5 // pred_fallthru
        _
      %p3608 = scmp.le.s32.totalorder 2, %s13
      // Predicated region
      $region53: #{conv_encoder_forward.1} parent=5 // pred_check
        %p3609 = pneg %p3608
      $region54: #{conv_encoder_forward.1} parent=5 // pred_check_branch
        %3611 = sbr.rel (%p3609) target = $region56
      $region55: #{conv_encoder_forward.1} parent=5 // pred_region
        %s3612 = ssub.s32 %s13, 2
        // Predicated region
        $region57: #{conv_encoder_forward.1} parent=55 // pred_check
          %p3613 = pneg %p173
        $region58: #{conv_encoder_forward.1} parent=55 // pred_check_branch
          %3615 = sbr.rel (%p3613) target = $region60
        $region59: #{conv_encoder_forward.1} parent=55 // pred_region
          %p3616 = scmp.lt.s32.totalorder %s19, 1
          %s3617 = scalar_select %p3616, %s19, 1
          %s3618 = smul.addr %s3617, 8
          %s3619 = smul.addr %s3618, 8
          %s3620 = scalar_lea.vmem %s6, %s3619
        $region60: #{conv_encoder_forward.1} parent=55 // pred_fallthru
          _
      $region56: #{conv_encoder_forward.1} parent=5 // pred_fallthru
        _
    $region6: #{conv_encoder_forward.1} parent=1 // loop_footer
      %s17 = sadd.s32 1, %s13
    $region7: #{conv_encoder_forward.1} parent=1 // loop_footer_branch
      %12 = sbr.rel target = $region3
    $region8: #{conv_encoder_forward.1} parent=1 // loop_exit
      _
    %3621 = vsyncpa [#allocation6], 1
    %s3622 = scalar_lea.sflag [#allocation6], 1
    %3623 = vsyncpa %s3622, 1

</llo_original>
